<compile_context>
chip_gen: v6e
topology: v6e:2x2x1
jax: 0.10.0
libtpu: 0.0.40
codegen_flags: <defaults>
</compile_context>

<pallas_src>
import math
from functools import lru_cache

import numpy as np
import jax
import jax.numpy as jnp
from jax.experimental import pallas as pl
from jax.experimental.pallas import tpu as pltpu


_LN_EPS = 1e-5


def _layernorm(x, gamma, beta):
    mu = jnp.mean(x, axis=-1, keepdims=True)
    xc = x - mu
    var = jnp.mean(xc * xc, axis=-1, keepdims=True)
    return xc * jax.lax.rsqrt(var + _LN_EPS) * gamma + beta


def _gelu_tanh(x):
    # TODO(synk): PyTorch nn.GELU defaults to the exact erf form; the tanh
    # approximation is used here (max deviation ~1e-3).
    c = math.sqrt(2.0 / math.pi)
    return 0.5 * x * (1.0 + jnp.tanh(c * (x + 0.044715 * x * x * x)))


def _block_kernel(x_ref, g1_ref, b1_ref,
                  fr_ref, fi_ref, gr_ref, gni_ref, wr_ref, wi_ref,
                  g2_ref, b2_ref, w1_ref, bb1_ref, w2_ref, bb2_ref,
                  o_ref):
    x = x_ref[0]                                           # (N, C) f32

    # ---- norm1 (f32 elementwise) ----
    xn = _layernorm(x, g1_ref[...], b1_ref[...])
    xn_b = xn.astype(jnp.bfloat16)                         # bf16 only at MXU

    # ---- GlobalFilter: split real 2-D DFT (4 MXU matmuls, f32 accumulate) --
    xr = jnp.dot(fr_ref[...], xn_b, preferred_element_type=jnp.float32)  # (P, C)
    xi = jnp.dot(fi_ref[...], xn_b, preferred_element_type=jnp.float32)  # (P, C)
    wr = wr_ref[...].astype(jnp.float32)
    wi = wi_ref[...].astype(jnp.float32)
    yr = (xr * wr - xi * wi).astype(jnp.bfloat16)          # complex filter (f32 math)
    yi = (xr * wi + xi * wr).astype(jnp.bfloat16)
    y = (jnp.dot(gr_ref[...], yr, preferred_element_type=jnp.float32)
         + jnp.dot(gni_ref[...], yi, preferred_element_type=jnp.float32))  # (N, C)

    x1 = x + y                                             # residual 1 (drop_path = id)

    # ---- norm2 + MLP ----
    x2 = _layernorm(x1, g2_ref[...], b2_ref[...]).astype(jnp.bfloat16)
    h = jnp.dot(x2, w1_ref[...],
                preferred_element_type=jnp.float32) + bb1_ref[...]        # (N, H) f32
    h = _gelu_tanh(h).astype(jnp.bfloat16)
    m = jnp.dot(h, w2_ref[...],
                preferred_element_type=jnp.float32) + bb2_ref[...]        # (N, C) f32

    o_ref[0] = (x1 + m).astype(o_ref.dtype)                # residual 2


@lru_cache(maxsize=None)
def _dft2_tables(a, b):
    """Split ortho 2-D real DFT matrices, built once on host, stored as bf16.

    Forward:  Xr = Fr @ x_flat,  Xi = Fi @ x_flat          (x_flat: (N, C))
    Inverse:  x_flat = Gr @ Yr + Gni @ Yi                  (Hermitian doubling folded)
    with spatial index q = m*b + n and frequency index p = k1*w + k2.
    """
    w = b // 2 + 1
    k1 = np.arange(a, dtype=np.float64)
    k2 = np.arange(w, dtype=np.float64)
    m = np.arange(a, dtype=np.float64)
    n = np.arange(b, dtype=np.float64)
    phi = 2.0 * np.pi * (k1[:, None, None, None] * m[None, None, :, None] / a
                         + k2[None, :, None, None] * n[None, None, None, :] / b)
    scale = 1.0 / math.sqrt(a * b)
    P, N = a * w, a * b

    fr = (np.cos(phi) * scale).reshape(P, N)
    fi = (-np.sin(phi) * scale).reshape(P, N)

    mult = np.full((w,), 2.0)            # Hermitian doubling
    mult[0] = 1.0                        # DC column
    if b % 2 == 0:
        mult[w - 1] = 1.0                # Nyquist column
    multb = mult[None, :, None, None]
    gr = (multb * np.cos(phi) * scale).reshape(P, N).T     # (N, P)
    gni = (-multb * np.sin(phi) * scale).reshape(P, N).T   # (N, P)  (= -Gi)

    cast = lambda t: jnp.asarray(t.astype(np.float32), dtype=jnp.bfloat16)
    return cast(fr), cast(fi), cast(gr), cast(gni)


def gfnet_block_pallas(x, params, spatial_size=None):
    """Forward pass of `Block` (eval mode). x: (B, N, C) -> (B, N, C) f32."""
    B, N, C = x.shape
    if spatial_size is None:
        a = b = int(math.sqrt(N))
    else:
        a, b = spatial_size
    assert a * b == N, f"spatial size {a}x{b} does not match sequence length {N}"
    w = b // 2 + 1
    P = a * w
    H = params["fc1_w"].shape[1]

    fr, fi, gr, gni = _dft2_tables(a, b)                   # bf16 host-precomputed

    cw = params["complex_weight"].astype(jnp.float32)      # (a, w, C, 2)
    wr = cw[..., 0].reshape(P, C).astype(jnp.bfloat16)
    wi = cw[..., 1].reshape(P, C).astype(jnp.bfloat16)

    g1 = params["norm1_gamma"].reshape(1, C).astype(jnp.float32)
    b1 = params["norm1_beta"].reshape(1, C).astype(jnp.float32)
    g2 = params["norm2_gamma"].reshape(1, C).astype(jnp.float32)
    b2 = params["norm2_beta"].reshape(1, C).astype(jnp.float32)
    w1 = params["fc1_w"].astype(jnp.bfloat16)              # (C, H) bf16
    bb1 = params["fc1_b"].reshape(1, H).astype(jnp.float32)
    w2 = params["fc2_w"].astype(jnp.bfloat16)              # (H, C) bf16
    bb2 = params["fc2_b"].reshape(1, C).astype(jnp.float32)

    x = x.astype(jnp.float32)
    const = lambda i: (0, 0)

    def cspec(shape):
        # Constant (grid-invariant) operand: fetch once, single-buffered.
        return pl.BlockSpec(shape, const, pipeline_mode=pl.Buffered(1))

    # ---- VMEM budget (bf16 constants, f32 activations) ----
    bf2, f4 = 2, 4
    weight_bytes = ((4 * P * N + 2 * P * C + 2 * C * H) * bf2
                    + (6 * C + 2 * H) * f4)
    io_bytes = 2 * 2 * N * C * f4                          # x + out, double-buffered
    interm_bytes = (6 * N * C + 4 * P * C + 2 * N * H) * f4
    vmem_limit = int(1.5 * (weight_bytes + io_bytes + interm_bytes)) + (8 << 20)
    vmem_limit = max(32 << 20, min(vmem_limit, 64 << 20))  # stay under v7x physical

    flops = B * (8 * N * P * C + 4 * N * C * H)            # 4 DFT dots + 2 MLP dots
    cost = pl.CostEstimate(
        flops=flops,
        transcendentals=B * N * H,                          # tanh in GELU
        bytes_accessed=2 * B * N * C * f4 + weight_bytes)

    out = pl.pallas_call(
        _block_kernel,
        out_shape=jax.ShapeDtypeStruct((B, N, C), jnp.float32),
        grid_spec=pltpu.PrefetchScalarGridSpec(
            num_scalar_prefetch=0,
            grid=(B,),
            in_specs=[
                pl.BlockSpec((1, N, C), lambda i: (i, 0, 0)),   # x (per-image)
                cspec((1, C)),                                  # norm1 gamma
                cspec((1, C)),                                  # norm1 beta
                cspec((P, N)),                                  # forward DFT (real)
                cspec((P, N)),                                  # forward DFT (imag)
                cspec((N, P)),                                  # inverse DFT (real)
                cspec((N, P)),                                  # inverse DFT (-imag)
                cspec((P, C)),                                  # filter weight (real)
                cspec((P, C)),                                  # filter weight (imag)
                cspec((1, C)),                                  # norm2 gamma
                cspec((1, C)),                                  # norm2 beta
                cspec((C, H)),                                  # fc1 weight
                cspec((1, H)),                                  # fc1 bias
                cspec((H, C)),                                  # fc2 weight
                cspec((1, C)),                                  # fc2 bias
            ],
            out_specs=pl.BlockSpec((1, N, C), lambda i: (i, 0, 0)),
        ),
        compiler_params=pltpu.CompilerParams(
            dimension_semantics=("parallel",),
            vmem_limit_bytes=vmem_limit),
        cost_estimate=cost,
    )(x, g1, b1, fr, fi, gr, gni, wr, wi, g2, b2, w1, bb1, w2, bb2)

    return out


if __name__ == "__main__":
    key = jax.random.PRNGKey(0)
    B, C = 2, 4
    a = b_sp = 16
    N = a * b_sp
    wf = b_sp // 2 + 1
    H = int(C * 4.0)

    keys = jax.random.split(key, 10)
    x = jax.random.normal(keys[0], (B, N, C), dtype=jnp.float32)
    params = dict(
        norm1_gamma=1.0 + 0.1 * jax.random.normal(keys[1], (C,), jnp.float32),
        norm1_beta=0.1 * jax.random.normal(keys[2], (C,), jnp.float32),
        complex_weight=0.02 * jax.random.normal(keys[3], (a, wf, C, 2), jnp.float32),
        norm2_gamma=1.0 + 0.1 * jax.random.normal(keys[4], (C,), jnp.float32),
        norm2_beta=0.1 * jax.random.normal(keys[5], (C,), jnp.float32),
        fc1_w=0.1 * jax.random.normal(keys[6], (C, H), jnp.float32),
        fc1_b=0.1 * jax.random.normal(keys[7], (H,), jnp.float32),
        fc2_w=0.1 * jax.random.normal(keys[8], (H, C), jnp.float32),
        fc2_b=0.1 * jax.random.normal(keys[9], (C,), jnp.float32),
    )

    y = jax.block_until_ready(gfnet_block_pallas(x, params))

    # ---- pure-JAX reference (eval mode: drop_path / dropout are identity) ----
    def ln_ref(v, g, be):
        mu = v.mean(-1, keepdims=True)
        var = ((v - mu) ** 2).mean(-1, keepdims=True)
        return (v - mu) / jnp.sqrt(var + _LN_EPS) * g + be

    h1 = ln_ref(x, params["norm1_gamma"], params["norm1_beta"])
    Wc = params["complex_weight"][..., 0] + 1j * params["complex_weight"][..., 1]
    Xf = jnp.fft.rfft2(h1.reshape(B, a, b_sp, C), axes=(1, 2), norm="ortho")
    filt = jnp.fft.irfft2(Xf * Wc, s=(a, b_sp), axes=(1, 2),
                          norm="ortho").reshape(B, N, C)
    x1 = x + filt
    h2 = ln_ref(x1, params["norm2_gamma"], params["norm2_beta"])
    mlp = _gelu_tanh(h2 @ params["fc1_w"] + params["fc1_b"]) @ params["fc2_w"] \
        + params["fc2_b"]
    y_ref = x1 + mlp

    err = float(jnp.max(jnp.abs(y - y_ref)))
    assert err < 2e-2, f"max abs error too large: {err}"
    print("KERNEL_OK")
</pallas_src>

<mosaic_0001>
module attributes {stable_mosaic.version = 11 : i64} {
  func.func @_block_kernel(%arg0: i32, %arg1: memref<1x256x4xf32, #tpu.memory_space<vmem>>, %arg2: memref<1x4xf32, #tpu.memory_space<vmem>>, %arg3: memref<1x4xf32, #tpu.memory_space<vmem>>, %arg4: memref<144x256xbf16, #tpu.memory_space<vmem>>, %arg5: memref<144x256xbf16, #tpu.memory_space<vmem>>, %arg6: memref<256x144xbf16, #tpu.memory_space<vmem>>, %arg7: memref<256x144xbf16, #tpu.memory_space<vmem>>, %arg8: memref<144x4xbf16, #tpu.memory_space<vmem>>, %arg9: memref<144x4xbf16, #tpu.memory_space<vmem>>, %arg10: memref<1x4xf32, #tpu.memory_space<vmem>>, %arg11: memref<1x4xf32, #tpu.memory_space<vmem>>, %arg12: memref<4x16xbf16, #tpu.memory_space<vmem>>, %arg13: memref<1x16xf32, #tpu.memory_space<vmem>>, %arg14: memref<16x4xbf16, #tpu.memory_space<vmem>>, %arg15: memref<1x4xf32, #tpu.memory_space<vmem>>, %arg16: memref<1x256x4xf32, #tpu.memory_space<vmem>>) attributes {dimension_semantics = [#tpu.dimension_semantics<parallel>], iteration_bounds = array<i64: 2>, scalar_prefetch = 0 : i64, scratch_operands = 0 : i64, tpu.core_type = #tpu.core_type<tc>, window_params = [{transform_indices = @transform_0, window_bounds = array<i64: 1, 256, 4>}, {pipeline_mode = #tpu.pipeline_mode<synchronous>, transform_indices = @transform_1, window_bounds = array<i64: 1, 4>}, {pipeline_mode = #tpu.pipeline_mode<synchronous>, transform_indices = @transform_2, window_bounds = array<i64: 1, 4>}, {pipeline_mode = #tpu.pipeline_mode<synchronous>, transform_indices = @transform_3, window_bounds = array<i64: 144, 256>}, {pipeline_mode = #tpu.pipeline_mode<synchronous>, transform_indices = @transform_4, window_bounds = array<i64: 144, 256>}, {pipeline_mode = #tpu.pipeline_mode<synchronous>, transform_indices = @transform_5, window_bounds = array<i64: 256, 144>}, {pipeline_mode = #tpu.pipeline_mode<synchronous>, transform_indices = @transform_6, window_bounds = array<i64: 256, 144>}, {pipeline_mode = #tpu.pipeline_mode<synchronous>, transform_indices = @transform_7, window_bounds = array<i64: 144, 4>}, {pipeline_mode = #tpu.pipeline_mode<synchronous>, transform_indices = @transform_8, window_bounds = array<i64: 144, 4>}, {pipeline_mode = #tpu.pipeline_mode<synchronous>, transform_indices = @transform_9, window_bounds = array<i64: 1, 4>}, {pipeline_mode = #tpu.pipeline_mode<synchronous>, transform_indices = @transform_10, window_bounds = array<i64: 1, 4>}, {pipeline_mode = #tpu.pipeline_mode<synchronous>, transform_indices = @transform_11, window_bounds = array<i64: 4, 16>}, {pipeline_mode = #tpu.pipeline_mode<synchronous>, transform_indices = @transform_12, window_bounds = array<i64: 1, 16>}, {pipeline_mode = #tpu.pipeline_mode<synchronous>, transform_indices = @transform_13, window_bounds = array<i64: 16, 4>}, {pipeline_mode = #tpu.pipeline_mode<synchronous>, transform_indices = @transform_14, window_bounds = array<i64: 1, 4>}, {transform_indices = @transform_15, window_bounds = array<i64: 1, 256, 4>}]} {
    %c0 = arith.constant 0 : index
    %c0_0 = arith.constant 0 : index
    %c0_1 = arith.constant 0 : index
    %0 = vector.load %arg1[%c0, %c0_0, %c0_1] : memref<1x256x4xf32, #tpu.memory_space<vmem>>, vector<1x256x4xf32>
    %1 = vector.shape_cast %0 : vector<1x256x4xf32> to vector<256x4xf32>
    %c0_2 = arith.constant 0 : index
    %c0_3 = arith.constant 0 : index
    %2 = vector.load %arg2[%c0_2, %c0_3] : memref<1x4xf32, #tpu.memory_space<vmem>>, vector<1x4xf32>
    %c0_4 = arith.constant 0 : index
    %c0_5 = arith.constant 0 : index
    %3 = vector.load %arg3[%c0_4, %c0_5] : memref<1x4xf32, #tpu.memory_space<vmem>>, vector<1x4xf32>
    %cst = arith.constant dense<0.000000e+00> : vector<256xf32>
    %4 = vector.multi_reduction <add>, %1, %cst [1] : vector<256x4xf32> to vector<256xf32>
    %5 = vector.shape_cast %4 : vector<256xf32> to vector<256x1xf32>
    %cst_6 = arith.constant 4.000000e+00 : f32
    %6 = vector.broadcast %cst_6 : f32 to vector<256x1xf32>
    %7 = arith.divf %5, %6 : vector<256x1xf32>
    %8 = vector.broadcast %7 : vector<256x1xf32> to vector<256x4xf32>
    %9 = arith.subf %1, %8 : vector<256x4xf32>
    %10 = arith.mulf %9, %9 : vector<256x4xf32>
    %cst_7 = arith.constant dense<0.000000e+00> : vector<256xf32>
    %11 = vector.multi_reduction <add>, %10, %cst_7 [1] : vector<256x4xf32> to vector<256xf32>
    %12 = vector.shape_cast %11 : vector<256xf32> to vector<256x1xf32>
    %cst_8 = arith.constant 4.000000e+00 : f32
    %13 = vector.broadcast %cst_8 : f32 to vector<256x1xf32>
    %14 = arith.divf %12, %13 : vector<256x1xf32>
    %cst_9 = arith.constant 9.99999974E-6 : f32
    %15 = vector.broadcast %cst_9 : f32 to vector<256x1xf32>
    %16 = arith.addf %14, %15 : vector<256x1xf32>
    %17 = math.rsqrt %16 : vector<256x1xf32>
    %18 = vector.broadcast %17 : vector<256x1xf32> to vector<256x4xf32>
    %19 = arith.mulf %9, %18 : vector<256x4xf32>
    %20 = vector.broadcast %2 : vector<1x4xf32> to vector<256x4xf32>
    %21 = arith.mulf %19, %20 : vector<256x4xf32>
    %22 = vector.broadcast %3 : vector<1x4xf32> to vector<256x4xf32>
    %23 = arith.addf %21, %22 : vector<256x4xf32>
    %24 = arith.truncf %23 : vector<256x4xf32> to vector<256x4xbf16>
    %c0_10 = arith.constant 0 : index
    %c0_11 = arith.constant 0 : index
    %25 = vector.load %arg4[%c0_10, %c0_11] : memref<144x256xbf16, #tpu.memory_space<vmem>>, vector<144x256xbf16>
    %cst_12 = arith.constant dense<0.000000e+00> : vector<144x4xf32>
    %26 = tpu.matmul %25, %24, %cst_12 {dimension_numbers = #tpu.dot_dimension_numbers<[1], [0], [0], [1], [0, 0, 1, 1], [], []>} : vector<144x256xbf16>, vector<256x4xbf16>, vector<144x4xf32> -> vector<144x4xf32>
    %c0_13 = arith.constant 0 : index
    %c0_14 = arith.constant 0 : index
    %27 = vector.load %arg5[%c0_13, %c0_14] : memref<144x256xbf16, #tpu.memory_space<vmem>>, vector<144x256xbf16>
    %cst_15 = arith.constant dense<0.000000e+00> : vector<144x4xf32>
    %28 = tpu.matmul %27, %24, %cst_15 {dimension_numbers = #tpu.dot_dimension_numbers<[1], [0], [0], [1], [0, 0, 1, 1], [], []>} : vector<144x256xbf16>, vector<256x4xbf16>, vector<144x4xf32> -> vector<144x4xf32>
    %c0_16 = arith.constant 0 : index
    %c0_17 = arith.constant 0 : index
    %29 = vector.load %arg8[%c0_16, %c0_17] : memref<144x4xbf16, #tpu.memory_space<vmem>>, vector<144x4xbf16>
    %30 = arith.extf %29 : vector<144x4xbf16> to vector<144x4xf32>
    %c0_18 = arith.constant 0 : index
    %c0_19 = arith.constant 0 : index
    %31 = vector.load %arg9[%c0_18, %c0_19] : memref<144x4xbf16, #tpu.memory_space<vmem>>, vector<144x4xbf16>
    %32 = arith.extf %31 : vector<144x4xbf16> to vector<144x4xf32>
    %33 = arith.mulf %26, %30 : vector<144x4xf32>
    %34 = arith.mulf %28, %32 : vector<144x4xf32>
    %35 = arith.subf %33, %34 : vector<144x4xf32>
    %36 = arith.truncf %35 : vector<144x4xf32> to vector<144x4xbf16>
    %37 = arith.mulf %26, %32 : vector<144x4xf32>
    %38 = arith.mulf %28, %30 : vector<144x4xf32>
    %39 = arith.addf %37, %38 : vector<144x4xf32>
    %40 = arith.truncf %39 : vector<144x4xf32> to vector<144x4xbf16>
    %c0_20 = arith.constant 0 : index
    %c0_21 = arith.constant 0 : index
    %41 = vector.load %arg6[%c0_20, %c0_21] : memref<256x144xbf16, #tpu.memory_space<vmem>>, vector<256x144xbf16>
    %cst_22 = arith.constant dense<0.000000e+00> : vector<256x4xf32>
    %42 = tpu.matmul %41, %36, %cst_22 {dimension_numbers = #tpu.dot_dimension_numbers<[1], [0], [0], [1], [0, 0, 1, 1], [], []>} : vector<256x144xbf16>, vector<144x4xbf16>, vector<256x4xf32> -> vector<256x4xf32>
    %c0_23 = arith.constant 0 : index
    %c0_24 = arith.constant 0 : index
    %43 = vector.load %arg7[%c0_23, %c0_24] : memref<256x144xbf16, #tpu.memory_space<vmem>>, vector<256x144xbf16>
    %cst_25 = arith.constant dense<0.000000e+00> : vector<256x4xf32>
    %44 = tpu.matmul %43, %40, %cst_25 {dimension_numbers = #tpu.dot_dimension_numbers<[1], [0], [0], [1], [0, 0, 1, 1], [], []>} : vector<256x144xbf16>, vector<144x4xbf16>, vector<256x4xf32> -> vector<256x4xf32>
    %45 = arith.addf %42, %44 : vector<256x4xf32>
    %46 = arith.addf %1, %45 : vector<256x4xf32>
    %c0_26 = arith.constant 0 : index
    %c0_27 = arith.constant 0 : index
    %47 = vector.load %arg10[%c0_26, %c0_27] : memref<1x4xf32, #tpu.memory_space<vmem>>, vector<1x4xf32>
    %c0_28 = arith.constant 0 : index
    %c0_29 = arith.constant 0 : index
    %48 = vector.load %arg11[%c0_28, %c0_29] : memref<1x4xf32, #tpu.memory_space<vmem>>, vector<1x4xf32>
    %cst_30 = arith.constant dense<0.000000e+00> : vector<256xf32>
    %49 = vector.multi_reduction <add>, %46, %cst_30 [1] : vector<256x4xf32> to vector<256xf32>
    %50 = vector.shape_cast %49 : vector<256xf32> to vector<256x1xf32>
    %cst_31 = arith.constant 4.000000e+00 : f32
    %51 = vector.broadcast %cst_31 : f32 to vector<256x1xf32>
    %52 = arith.divf %50, %51 : vector<256x1xf32>
    %53 = vector.broadcast %52 : vector<256x1xf32> to vector<256x4xf32>
    %54 = arith.subf %46, %53 : vector<256x4xf32>
    %55 = arith.mulf %54, %54 : vector<256x4xf32>
    %cst_32 = arith.constant dense<0.000000e+00> : vector<256xf32>
    %56 = vector.multi_reduction <add>, %55, %cst_32 [1] : vector<256x4xf32> to vector<256xf32>
    %57 = vector.shape_cast %56 : vector<256xf32> to vector<256x1xf32>
    %cst_33 = arith.constant 4.000000e+00 : f32
    %58 = vector.broadcast %cst_33 : f32 to vector<256x1xf32>
    %59 = arith.divf %57, %58 : vector<256x1xf32>
    %cst_34 = arith.constant 9.99999974E-6 : f32
    %60 = vector.broadcast %cst_34 : f32 to vector<256x1xf32>
    %61 = arith.addf %59, %60 : vector<256x1xf32>
    %62 = math.rsqrt %61 : vector<256x1xf32>
    %63 = vector.broadcast %62 : vector<256x1xf32> to vector<256x4xf32>
    %64 = arith.mulf %54, %63 : vector<256x4xf32>
    %65 = vector.broadcast %47 : vector<1x4xf32> to vector<256x4xf32>
    %66 = arith.mulf %64, %65 : vector<256x4xf32>
    %67 = vector.broadcast %48 : vector<1x4xf32> to vector<256x4xf32>
    %68 = arith.addf %66, %67 : vector<256x4xf32>
    %69 = arith.truncf %68 : vector<256x4xf32> to vector<256x4xbf16>
    %c0_35 = arith.constant 0 : index
    %c0_36 = arith.constant 0 : index
    %70 = vector.load %arg12[%c0_35, %c0_36] : memref<4x16xbf16, #tpu.memory_space<vmem>>, vector<4x16xbf16>
    %cst_37 = arith.constant dense<0.000000e+00> : vector<256x16xf32>
    %71 = tpu.matmul %69, %70, %cst_37 {dimension_numbers = #tpu.dot_dimension_numbers<[1], [0], [0], [1], [0, 0, 1, 1], [], []>} : vector<256x4xbf16>, vector<4x16xbf16>, vector<256x16xf32> -> vector<256x16xf32>
    %c0_38 = arith.constant 0 : index
    %c0_39 = arith.constant 0 : index
    %72 = vector.load %arg13[%c0_38, %c0_39] : memref<1x16xf32, #tpu.memory_space<vmem>>, vector<1x16xf32>
    %73 = vector.broadcast %72 : vector<1x16xf32> to vector<256x16xf32>
    %74 = arith.addf %71, %73 : vector<256x16xf32>
    %cst_40 = arith.constant 5.000000e-01 : f32
    %75 = vector.broadcast %cst_40 : f32 to vector<256x16xf32>
    %76 = arith.mulf %75, %74 : vector<256x16xf32>
    %cst_41 = arith.constant 4.471500e-02 : f32
    %77 = vector.broadcast %cst_41 : f32 to vector<256x16xf32>
    %78 = arith.mulf %77, %74 : vector<256x16xf32>
    %79 = arith.mulf %78, %74 : vector<256x16xf32>
    %80 = arith.mulf %79, %74 : vector<256x16xf32>
    %81 = arith.addf %74, %80 : vector<256x16xf32>
    %cst_42 = arith.constant 0.797884583 : f32
    %82 = vector.broadcast %cst_42 : f32 to vector<256x16xf32>
    %83 = arith.mulf %82, %81 : vector<256x16xf32>
    %84 = math.tanh %83 : vector<256x16xf32>
    %cst_43 = arith.constant 1.000000e+00 : f32
    %85 = vector.broadcast %cst_43 : f32 to vector<256x16xf32>
    %86 = arith.addf %85, %84 : vector<256x16xf32>
    %87 = arith.mulf %76, %86 : vector<256x16xf32>
    %88 = arith.truncf %87 : vector<256x16xf32> to vector<256x16xbf16>
    %c0_44 = arith.constant 0 : index
    %c0_45 = arith.constant 0 : index
    %89 = vector.load %arg14[%c0_44, %c0_45] : memref<16x4xbf16, #tpu.memory_space<vmem>>, vector<16x4xbf16>
    %cst_46 = arith.constant dense<0.000000e+00> : vector<256x4xf32>
    %90 = tpu.matmul %88, %89, %cst_46 {dimension_numbers = #tpu.dot_dimension_numbers<[1], [0], [0], [1], [0, 0, 1, 1], [], []>} : vector<256x16xbf16>, vector<16x4xbf16>, vector<256x4xf32> -> vector<256x4xf32>
    %c0_47 = arith.constant 0 : index
    %c0_48 = arith.constant 0 : index
    %91 = vector.load %arg15[%c0_47, %c0_48] : memref<1x4xf32, #tpu.memory_space<vmem>>, vector<1x4xf32>
    %92 = vector.broadcast %91 : vector<1x4xf32> to vector<256x4xf32>
    %93 = arith.addf %90, %92 : vector<256x4xf32>
    %94 = arith.addf %46, %93 : vector<256x4xf32>
    %c0_49 = arith.constant 0 : index
    %c0_50 = arith.constant 0 : index
    %c0_51 = arith.constant 0 : index
    %95 = vector.load %arg16[%c0_49, %c0_50, %c0_51] : memref<1x256x4xf32, #tpu.memory_space<vmem>>, vector<1x256x4xf32>
    %96 = vector.shape_cast %95 : vector<1x256x4xf32> to vector<256x4xf32>
    %97 = vector.shape_cast %94 : vector<256x4xf32> to vector<1x256x4xf32>
    tpu.vector_store %arg16[%c0_49, %c0_50, %c0_51], %97 {strides = array<i32>} : memref<1x256x4xf32, #tpu.memory_space<vmem>>, vector<1x256x4xf32>,
    return
  }
  func.func @transform_0(%arg0: i32) -> (i32, i32, i32) {
    %c0_i32 = arith.constant 0 : i32
    %c0_i32_0 = arith.constant 0 : i32
    %c0_i32_1 = arith.constant 0 : i32
    return %arg0, %c0_i32, %c0_i32_0 : i32, i32, i32
  }
  func.func @transform_1(%arg0: i32) -> (i32, i32) {
    %c0_i32 = arith.constant 0 : i32
    %c0_i32_0 = arith.constant 0 : i32
    %c0_i32_1 = arith.constant 0 : i32
    return %c0_i32, %c0_i32_0 : i32, i32
  }
  func.func @transform_2(%arg0: i32) -> (i32, i32) {
    %c0_i32 = arith.constant 0 : i32
    %c0_i32_0 = arith.constant 0 : i32
    %c0_i32_1 = arith.constant 0 : i32
    return %c0_i32, %c0_i32_0 : i32, i32
  }
  func.func @transform_3(%arg0: i32) -> (i32, i32) {
    %c0_i32 = arith.constant 0 : i32
    %c0_i32_0 = arith.constant 0 : i32
    %c0_i32_1 = arith.constant 0 : i32
    return %c0_i32, %c0_i32_0 : i32, i32
  }
  func.func @transform_4(%arg0: i32) -> (i32, i32) {
    %c0_i32 = arith.constant 0 : i32
    %c0_i32_0 = arith.constant 0 : i32
    %c0_i32_1 = arith.constant 0 : i32
    return %c0_i32, %c0_i32_0 : i32, i32
  }
  func.func @transform_5(%arg0: i32) -> (i32, i32) {
    %c0_i32 = arith.constant 0 : i32
    %c0_i32_0 = arith.constant 0 : i32
    %c0_i32_1 = arith.constant 0 : i32
    return %c0_i32, %c0_i32_0 : i32, i32
  }
  func.func @transform_6(%arg0: i32) -> (i32, i32) {
    %c0_i32 = arith.constant 0 : i32
    %c0_i32_0 = arith.constant 0 : i32
    %c0_i32_1 = arith.constant 0 : i32
    return %c0_i32, %c0_i32_0 : i32, i32
  }
  func.func @transform_7(%arg0: i32) -> (i32, i32) {
    %c0_i32 = arith.constant 0 : i32
    %c0_i32_0 = arith.constant 0 : i32
    %c0_i32_1 = arith.constant 0 : i32
    return %c0_i32, %c0_i32_0 : i32, i32
  }
  func.func @transform_8(%arg0: i32) -> (i32, i32) {
    %c0_i32 = arith.constant 0 : i32
    %c0_i32_0 = arith.constant 0 : i32
    %c0_i32_1 = arith.constant 0 : i32
    return %c0_i32, %c0_i32_0 : i32, i32
  }
  func.func @transform_9(%arg0: i32) -> (i32, i32) {
    %c0_i32 = arith.constant 0 : i32
    %c0_i32_0 = arith.constant 0 : i32
    %c0_i32_1 = arith.constant 0 : i32
    return %c0_i32, %c0_i32_0 : i32, i32
  }
  func.func @transform_10(%arg0: i32) -> (i32, i32) {
    %c0_i32 = arith.constant 0 : i32
    %c0_i32_0 = arith.constant 0 : i32
    %c0_i32_1 = arith.constant 0 : i32
    return %c0_i32, %c0_i32_0 : i32, i32
  }
  func.func @transform_11(%arg0: i32) -> (i32, i32) {
    %c0_i32 = arith.constant 0 : i32
    %c0_i32_0 = arith.constant 0 : i32
    %c0_i32_1 = arith.constant 0 : i32
    return %c0_i32, %c0_i32_0 : i32, i32
  }
  func.func @transform_12(%arg0: i32) -> (i32, i32) {
    %c0_i32 = arith.constant 0 : i32
    %c0_i32_0 = arith.constant 0 : i32
    %c0_i32_1 = arith.constant 0 : i32
    return %c0_i32, %c0_i32_0 : i32, i32
  }
  func.func @transform_13(%arg0: i32) -> (i32, i32) {
    %c0_i32 = arith.constant 0 : i32
    %c0_i32_0 = arith.constant 0 : i32
    %c0_i32_1 = arith.constant 0 : i32
    return %c0_i32, %c0_i32_0 : i32, i32
  }
  func.func @transform_14(%arg0: i32) -> (i32, i32) {
    %c0_i32 = arith.constant 0 : i32
    %c0_i32_0 = arith.constant 0 : i32
    %c0_i32_1 = arith.constant 0 : i32
    return %c0_i32, %c0_i32_0 : i32, i32
  }
  func.func @transform_15(%arg0: i32) -> (i32, i32, i32) {
    %c0_i32 = arith.constant 0 : i32
    %c0_i32_0 = arith.constant 0 : i32
    %c0_i32_1 = arith.constant 0 : i32
    return %arg0, %c0_i32, %c0_i32_0 : i32, i32, i32
  }
}

</mosaic_0001>

<llo_original>
// kernel: tpu_custom_call.1
$region0: #{tpu_custom_call.1}
  #allocation0 [shape = 'u32[]', space=smem, size = 0x4, offset = 0x4, fixed_abs, tag = 'smem constant byte address 0x4 - core index']
  #allocation1 [shape = 'u32[144,128]{1,0:T(1,128)}', space=vmem, size = 0x12000, scoped, tag = 'internal scratch']
  %s0 = inlined_call_operand.vmem [shape: f32[2,256,4], index: 0, kind: input, shape index: {}]
  %s1 = inlined_call_operand.vmem [shape: f32[1,4], index: 1, kind: input, shape index: {}]
  %s2 = inlined_call_operand.vmem [shape: f32[1,4], index: 2, kind: input, shape index: {}]
  %s3 = inlined_call_operand.vmem [shape: bf16[144,256], index: 3, kind: input, shape index: {}]
  %s4 = inlined_call_operand.vmem [shape: bf16[144,256], index: 4, kind: input, shape index: {}]
  %s5 = inlined_call_operand.vmem [shape: bf16[256,144], index: 5, kind: input, shape index: {}]
  %s6 = inlined_call_operand.vmem [shape: bf16[256,144], index: 6, kind: input, shape index: {}]
  %s7 = inlined_call_operand.vmem [shape: bf16[144,4], index: 7, kind: input, shape index: {}]
  %s8 = inlined_call_operand.vmem [shape: bf16[144,4], index: 8, kind: input, shape index: {}]
  %s9 = inlined_call_operand.vmem [shape: f32[1,4], index: 9, kind: input, shape index: {}]
  %s10 = inlined_call_operand.vmem [shape: f32[1,4], index: 10, kind: input, shape index: {}]
  %s11 = inlined_call_operand.vmem [shape: bf16[4,16], index: 11, kind: input, shape index: {}]
  %s12 = inlined_call_operand.vmem [shape: f32[1,16], index: 12, kind: input, shape index: {}]
  %s13 = inlined_call_operand.vmem [shape: bf16[16,4], index: 13, kind: input, shape index: {}]
  %s14 = inlined_call_operand.vmem [shape: f32[1,4], index: 14, kind: input, shape index: {}]
  %s15 = inlined_call_operand.vmem [shape: f32[2,256,4], index: 15, kind: output, shape index: {}]
  %s16 = sld [smem:[#allocation0]]
  $region93: #{tpu_custom_call.1} parent=0
    _
  %s18 = ssub.s32 1, %s16
  %s19 = scalar_select 0, %s18, %s16
  loop: start=0, step=1, limit=4
  $region2: #{tpu_custom_call.1} parent=0 // loop_pre_header
    _
  $region3: #{tpu_custom_call.1} parent=0 // loop_header
    %s21 = sphi 0, %s25
    %p22 = scmp.ge.s32.totalorder %s21, 4
    %s31 = sphi 0, %s33
    %s34 = sphi 0, %s31
    %s35 = sphi 0, %s34
    %s51 = sphi 0, %s35
    %s55 = sphi 0, %s55
    %s57 = sphi 0, %s55
    %s58 = sphi 0, %s57
    %s72 = sphi 0, %s58
    %s76 = sphi 0, %s76
    %s78 = sphi 0, %s76
    %s79 = sphi 0, %s78
    %s93 = sphi 0, %s79
    %s97 = sphi 0, %s97
    %s99 = sphi 0, %s97
    %s100 = sphi 0, %s99
    %s114 = sphi 0, %s100
    %s118 = sphi 0, %s118
    %s120 = sphi 0, %s118
    %s121 = sphi 0, %s120
    %s135 = sphi 0, %s121
    %s139 = sphi 0, %s139
    %s141 = sphi 0, %s139
    %s142 = sphi 0, %s141
    %s156 = sphi 0, %s142
    %s160 = sphi 0, %s160
    %s162 = sphi 0, %s160
    %s163 = sphi 0, %s162
    %s177 = sphi 0, %s163
    %s181 = sphi 0, %s181
    %s183 = sphi 0, %s181
    %s184 = sphi 0, %s183
    %s198 = sphi 0, %s184
    %s202 = sphi 0, %s202
    %s204 = sphi 0, %s202
    %s205 = sphi 0, %s204
    %s219 = sphi 0, %s205
    %s223 = sphi 0, %s223
    %s225 = sphi 0, %s223
    %s226 = sphi 0, %s225
    %s240 = sphi 0, %s226
    %s244 = sphi 0, %s244
    %s246 = sphi 0, %s244
    %s247 = sphi 0, %s246
    %s261 = sphi 0, %s247
    %s265 = sphi 0, %s265
    %s267 = sphi 0, %s265
    %s268 = sphi 0, %s267
    %s282 = sphi 0, %s268
    %s286 = sphi 0, %s286
    %s288 = sphi 0, %s286
    %s289 = sphi 0, %s288
    %s303 = sphi 0, %s289
    %s307 = sphi 0, %s307
    %s309 = sphi 0, %s307
    %s310 = sphi 0, %s309
    %s324 = sphi 0, %s310
    %s328 = sphi 0, %s328
    %s330 = sphi 0, %s328
    %s331 = sphi 0, %s330
    %s345 = sphi 0, %s331
    %s351 = sphi 0, %s353
    %s354 = sphi 0, %s351
    %s355 = sphi 0, %s354
    %s371 = sphi 0, %s355
  $region4: #{tpu_custom_call.1} parent=0 // loop_header_branch
    %24 = sbr.rel (%p22) target = $region8
  $region5: #{tpu_custom_call.1} parent=0 // loop_body
    %s26 = ssub.s32 %s21, 1
    %s27 = ssub.s32 %s21, 2
    %s28 = sadd.s32 %s21, 1
    %s29 = ssub.s32 %s21, %s28
    %p30 = scmp.eq.s32.totalorder %s29, 0
    %s32 = sadd.s32 %s31, 1
    %s33 = scalar_select %p30, %s31, %s32
    %p36 = pneg %p30
    %p37 = scmp.eq.s32.totalorder %s21, 1
    %p38 = por %p36, %p37
    %p39 = scmp.ne.s32.totalorder %s31, %s34
    %p40 = scmp.eq.s32.totalorder %s21, 0
    %p41 = por %p39, %p40
    %p42 = scmp.ne.s32.totalorder %s31, %s34
    %p43 = scmp.eq.s32.totalorder %s26, 1
    %p44 = por %p42, %p43
    %p45 = scmp.ne.s32.totalorder %s34, %s35
    %p46 = scmp.eq.s32.totalorder %s26, 0
    %p47 = por %p45, %p46
    %p48 = scmp.ne.s32.totalorder %s34, %s35
    %p49 = scmp.eq.s32.totalorder %s27, 1
    %p50 = por %p48, %p49
    %p52 = scmp.ne.s32.totalorder %s35, %s51
    %p53 = scmp.eq.s32.totalorder %s27, 0
    %p54 = por %p52, %p53
    %s56 = sadd.s32 %s55, 1
    %p59 = scmp.eq.s32.totalorder %s21, 1
    %p60 = scmp.ne.s32.totalorder %s55, %s57
    %p61 = scmp.eq.s32.totalorder %s21, 0
    %p62 = por %p60, %p61
    %p63 = scmp.ne.s32.totalorder %s55, %s57
    %p64 = scmp.eq.s32.totalorder %s26, 1
    %p65 = por %p63, %p64
    %p66 = scmp.ne.s32.totalorder %s57, %s58
    %p67 = scmp.eq.s32.totalorder %s26, 0
    %p68 = por %p66, %p67
    %p69 = scmp.ne.s32.totalorder %s57, %s58
    %p70 = scmp.eq.s32.totalorder %s27, 1
    %p71 = por %p69, %p70
    %p73 = scmp.ne.s32.totalorder %s58, %s72
    %p74 = scmp.eq.s32.totalorder %s27, 0
    %p75 = por %p73, %p74
    %s77 = sadd.s32 %s76, 1
    %p80 = scmp.eq.s32.totalorder %s21, 1
    %p81 = scmp.ne.s32.totalorder %s76, %s78
    %p82 = scmp.eq.s32.totalorder %s21, 0
    %p83 = por %p81, %p82
    %p84 = scmp.ne.s32.totalorder %s76, %s78
    %p85 = scmp.eq.s32.totalorder %s26, 1
    %p86 = por %p84, %p85
    %p87 = scmp.ne.s32.totalorder %s78, %s79
    %p88 = scmp.eq.s32.totalorder %s26, 0
    %p89 = por %p87, %p88
    %p90 = scmp.ne.s32.totalorder %s78, %s79
    %p91 = scmp.eq.s32.totalorder %s27, 1
    %p92 = por %p90, %p91
    %p94 = scmp.ne.s32.totalorder %s79, %s93
    %p95 = scmp.eq.s32.totalorder %s27, 0
    %p96 = por %p94, %p95
    %s98 = sadd.s32 %s97, 1
    %p101 = scmp.eq.s32.totalorder %s21, 1
    %p102 = scmp.ne.s32.totalorder %s97, %s99
    %p103 = scmp.eq.s32.totalorder %s21, 0
    %p104 = por %p102, %p103
    %p105 = scmp.ne.s32.totalorder %s97, %s99
    %p106 = scmp.eq.s32.totalorder %s26, 1
    %p107 = por %p105, %p106
    %p108 = scmp.ne.s32.totalorder %s99, %s100
    %p109 = scmp.eq.s32.totalorder %s26, 0
    %p110 = por %p108, %p109
    %p111 = scmp.ne.s32.totalorder %s99, %s100
    %p112 = scmp.eq.s32.totalorder %s27, 1
    %p113 = por %p111, %p112
    %p115 = scmp.ne.s32.totalorder %s100, %s114
    %p116 = scmp.eq.s32.totalorder %s27, 0
    %p117 = por %p115, %p116
    %s119 = sadd.s32 %s118, 1
    %p122 = scmp.eq.s32.totalorder %s21, 1
    %p123 = scmp.ne.s32.totalorder %s118, %s120
    %p124 = scmp.eq.s32.totalorder %s21, 0
    %p125 = por %p123, %p124
    %p126 = scmp.ne.s32.totalorder %s118, %s120
    %p127 = scmp.eq.s32.totalorder %s26, 1
    %p128 = por %p126, %p127
    %p129 = scmp.ne.s32.totalorder %s120, %s121
    %p130 = scmp.eq.s32.totalorder %s26, 0
    %p131 = por %p129, %p130
    %p132 = scmp.ne.s32.totalorder %s120, %s121
    %p133 = scmp.eq.s32.totalorder %s27, 1
    %p134 = por %p132, %p133
    %p136 = scmp.ne.s32.totalorder %s121, %s135
    %p137 = scmp.eq.s32.totalorder %s27, 0
    %p138 = por %p136, %p137
    %s140 = sadd.s32 %s139, 1
    %p143 = scmp.eq.s32.totalorder %s21, 1
    %p144 = scmp.ne.s32.totalorder %s139, %s141
    %p145 = scmp.eq.s32.totalorder %s21, 0
    %p146 = por %p144, %p145
    %p147 = scmp.ne.s32.totalorder %s139, %s141
    %p148 = scmp.eq.s32.totalorder %s26, 1
    %p149 = por %p147, %p148
    %p150 = scmp.ne.s32.totalorder %s141, %s142
    %p151 = scmp.eq.s32.totalorder %s26, 0
    %p152 = por %p150, %p151
    %p153 = scmp.ne.s32.totalorder %s141, %s142
    %p154 = scmp.eq.s32.totalorder %s27, 1
    %p155 = por %p153, %p154
    %p157 = scmp.ne.s32.totalorder %s142, %s156
    %p158 = scmp.eq.s32.totalorder %s27, 0
    %p159 = por %p157, %p158
    %s161 = sadd.s32 %s160, 1
    %p164 = scmp.eq.s32.totalorder %s21, 1
    %p165 = scmp.ne.s32.totalorder %s160, %s162
    %p166 = scmp.eq.s32.totalorder %s21, 0
    %p167 = por %p165, %p166
    %p168 = scmp.ne.s32.totalorder %s160, %s162
    %p169 = scmp.eq.s32.totalorder %s26, 1
    %p170 = por %p168, %p169
    %p171 = scmp.ne.s32.totalorder %s162, %s163
    %p172 = scmp.eq.s32.totalorder %s26, 0
    %p173 = por %p171, %p172
    %p174 = scmp.ne.s32.totalorder %s162, %s163
    %p175 = scmp.eq.s32.totalorder %s27, 1
    %p176 = por %p174, %p175
    %p178 = scmp.ne.s32.totalorder %s163, %s177
    %p179 = scmp.eq.s32.totalorder %s27, 0
    %p180 = por %p178, %p179
    %s182 = sadd.s32 %s181, 1
    %p185 = scmp.eq.s32.totalorder %s21, 1
    %p186 = scmp.ne.s32.totalorder %s181, %s183
    %p187 = scmp.eq.s32.totalorder %s21, 0
    %p188 = por %p186, %p187
    %p189 = scmp.ne.s32.totalorder %s181, %s183
    %p190 = scmp.eq.s32.totalorder %s26, 1
    %p191 = por %p189, %p190
    %p192 = scmp.ne.s32.totalorder %s183, %s184
    %p193 = scmp.eq.s32.totalorder %s26, 0
    %p194 = por %p192, %p193
    %p195 = scmp.ne.s32.totalorder %s183, %s184
    %p196 = scmp.eq.s32.totalorder %s27, 1
    %p197 = por %p195, %p196
    %p199 = scmp.ne.s32.totalorder %s184, %s198
    %p200 = scmp.eq.s32.totalorder %s27, 0
    %p201 = por %p199, %p200
    %s203 = sadd.s32 %s202, 1
    %p206 = scmp.eq.s32.totalorder %s21, 1
    %p207 = scmp.ne.s32.totalorder %s202, %s204
    %p208 = scmp.eq.s32.totalorder %s21, 0
    %p209 = por %p207, %p208
    %p210 = scmp.ne.s32.totalorder %s202, %s204
    %p211 = scmp.eq.s32.totalorder %s26, 1
    %p212 = por %p210, %p211
    %p213 = scmp.ne.s32.totalorder %s204, %s205
    %p214 = scmp.eq.s32.totalorder %s26, 0
    %p215 = por %p213, %p214
    %p216 = scmp.ne.s32.totalorder %s204, %s205
    %p217 = scmp.eq.s32.totalorder %s27, 1
    %p218 = por %p216, %p217
    %p220 = scmp.ne.s32.totalorder %s205, %s219
    %p221 = scmp.eq.s32.totalorder %s27, 0
    %p222 = por %p220, %p221
    %s224 = sadd.s32 %s223, 1
    %p227 = scmp.eq.s32.totalorder %s21, 1
    %p228 = scmp.ne.s32.totalorder %s223, %s225
    %p229 = scmp.eq.s32.totalorder %s21, 0
    %p230 = por %p228, %p229
    %p231 = scmp.ne.s32.totalorder %s223, %s225
    %p232 = scmp.eq.s32.totalorder %s26, 1
    %p233 = por %p231, %p232
    %p234 = scmp.ne.s32.totalorder %s225, %s226
    %p235 = scmp.eq.s32.totalorder %s26, 0
    %p236 = por %p234, %p235
    %p237 = scmp.ne.s32.totalorder %s225, %s226
    %p238 = scmp.eq.s32.totalorder %s27, 1
    %p239 = por %p237, %p238
    %p241 = scmp.ne.s32.totalorder %s226, %s240
    %p242 = scmp.eq.s32.totalorder %s27, 0
    %p243 = por %p241, %p242
    %s245 = sadd.s32 %s244, 1
    %p248 = scmp.eq.s32.totalorder %s21, 1
    %p249 = scmp.ne.s32.totalorder %s244, %s246
    %p250 = scmp.eq.s32.totalorder %s21, 0
    %p251 = por %p249, %p250
    %p252 = scmp.ne.s32.totalorder %s244, %s246
    %p253 = scmp.eq.s32.totalorder %s26, 1
    %p254 = por %p252, %p253
    %p255 = scmp.ne.s32.totalorder %s246, %s247
    %p256 = scmp.eq.s32.totalorder %s26, 0
    %p257 = por %p255, %p256
    %p258 = scmp.ne.s32.totalorder %s246, %s247
    %p259 = scmp.eq.s32.totalorder %s27, 1
    %p260 = por %p258, %p259
    %p262 = scmp.ne.s32.totalorder %s247, %s261
    %p263 = scmp.eq.s32.totalorder %s27, 0
    %p264 = por %p262, %p263
    %s266 = sadd.s32 %s265, 1
    %p269 = scmp.eq.s32.totalorder %s21, 1
    %p270 = scmp.ne.s32.totalorder %s265, %s267
    %p271 = scmp.eq.s32.totalorder %s21, 0
    %p272 = por %p270, %p271
    %p273 = scmp.ne.s32.totalorder %s265, %s267
    %p274 = scmp.eq.s32.totalorder %s26, 1
    %p275 = por %p273, %p274
    %p276 = scmp.ne.s32.totalorder %s267, %s268
    %p277 = scmp.eq.s32.totalorder %s26, 0
    %p278 = por %p276, %p277
    %p279 = scmp.ne.s32.totalorder %s267, %s268
    %p280 = scmp.eq.s32.totalorder %s27, 1
    %p281 = por %p279, %p280
    %p283 = scmp.ne.s32.totalorder %s268, %s282
    %p284 = scmp.eq.s32.totalorder %s27, 0
    %p285 = por %p283, %p284
    %s287 = sadd.s32 %s286, 1
    %p290 = scmp.eq.s32.totalorder %s21, 1
    %p291 = scmp.ne.s32.totalorder %s286, %s288
    %p292 = scmp.eq.s32.totalorder %s21, 0
    %p293 = por %p291, %p292
    %p294 = scmp.ne.s32.totalorder %s286, %s288
    %p295 = scmp.eq.s32.totalorder %s26, 1
    %p296 = por %p294, %p295
    %p297 = scmp.ne.s32.totalorder %s288, %s289
    %p298 = scmp.eq.s32.totalorder %s26, 0
    %p299 = por %p297, %p298
    %p300 = scmp.ne.s32.totalorder %s288, %s289
    %p301 = scmp.eq.s32.totalorder %s27, 1
    %p302 = por %p300, %p301
    %p304 = scmp.ne.s32.totalorder %s289, %s303
    %p305 = scmp.eq.s32.totalorder %s27, 0
    %p306 = por %p304, %p305
    %s308 = sadd.s32 %s307, 1
    %p311 = scmp.eq.s32.totalorder %s21, 1
    %p312 = scmp.ne.s32.totalorder %s307, %s309
    %p313 = scmp.eq.s32.totalorder %s21, 0
    %p314 = por %p312, %p313
    %p315 = scmp.ne.s32.totalorder %s307, %s309
    %p316 = scmp.eq.s32.totalorder %s26, 1
    %p317 = por %p315, %p316
    %p318 = scmp.ne.s32.totalorder %s309, %s310
    %p319 = scmp.eq.s32.totalorder %s26, 0
    %p320 = por %p318, %p319
    %p321 = scmp.ne.s32.totalorder %s309, %s310
    %p322 = scmp.eq.s32.totalorder %s27, 1
    %p323 = por %p321, %p322
    %p325 = scmp.ne.s32.totalorder %s310, %s324
    %p326 = scmp.eq.s32.totalorder %s27, 0
    %p327 = por %p325, %p326
    %s329 = sadd.s32 %s328, 1
    %p332 = scmp.eq.s32.totalorder %s21, 1
    %p333 = scmp.ne.s32.totalorder %s328, %s330
    %p334 = scmp.eq.s32.totalorder %s21, 0
    %p335 = por %p333, %p334
    %p336 = scmp.ne.s32.totalorder %s328, %s330
    %p337 = scmp.eq.s32.totalorder %s26, 1
    %p338 = por %p336, %p337
    %p339 = scmp.ne.s32.totalorder %s330, %s331
    %p340 = scmp.eq.s32.totalorder %s26, 0
    %p341 = por %p339, %p340
    %p342 = scmp.ne.s32.totalorder %s330, %s331
    %p343 = scmp.eq.s32.totalorder %s27, 1
    %p344 = por %p342, %p343
    %p346 = scmp.ne.s32.totalorder %s331, %s345
    %p347 = scmp.eq.s32.totalorder %s27, 0
    %p348 = por %p346, %p347
    %s349 = ssub.s32 %s21, %s28
    %p350 = scmp.eq.s32.totalorder %s349, 0
    %s352 = sadd.s32 %s351, 1
    %s353 = scalar_select %p350, %s351, %s352
    %p356 = pneg %p350
    %p357 = scmp.eq.s32.totalorder %s21, 1
    %p358 = por %p356, %p357
    %p359 = scmp.ne.s32.totalorder %s351, %s354
    %p360 = scmp.eq.s32.totalorder %s21, 0
    %p361 = por %p359, %p360
    %p362 = scmp.ne.s32.totalorder %s351, %s354
    %p363 = scmp.eq.s32.totalorder %s26, 1
    %p364 = por %p362, %p363
    %p365 = scmp.ne.s32.totalorder %s354, %s355
    %p366 = scmp.eq.s32.totalorder %s26, 0
    %p367 = por %p365, %p366
    %p368 = scmp.ne.s32.totalorder %s354, %s355
    %p369 = scmp.eq.s32.totalorder %s27, 1
    %p370 = por %p368, %p369
    %p372 = scmp.ne.s32.totalorder %s355, %s371
    %p373 = scmp.eq.s32.totalorder %s27, 0
    %p374 = por %p372, %p373
    %p375 = scmp.le.s32.totalorder 1, %s21
    %p376 = scmp.lt.s32.totalorder %s21, 3
    %p377 = pnand %p375, %p376
    %p378 = pneg %p377
    // Predicated region
    $region9: #{tpu_custom_call.1} parent=5 // pred_check
      _
    $region10: #{tpu_custom_call.1} parent=5 // pred_check_branch
      %380 = sbr.rel (%p377) target = $region12
    $region11: #{tpu_custom_call.1} parent=5 // pred_region
      %s381 = ssub.s32 %s21, 1
      // Predicated region
      $region13: #{tpu_custom_call.1} parent=11 // pred_check
        %p382 = pneg %p68
      $region14: #{tpu_custom_call.1} parent=11 // pred_check_branch
        %384 = sbr.rel (%p382) target = $region16
      $region15: #{tpu_custom_call.1} parent=11 // pred_region
        _
      $region16: #{tpu_custom_call.1} parent=11 // pred_fallthru
        _
      // Predicated region
      $region17: #{tpu_custom_call.1} parent=11 // pred_check
        %p385 = pneg %p89
      $region18: #{tpu_custom_call.1} parent=11 // pred_check_branch
        %387 = sbr.rel (%p385) target = $region20
      $region19: #{tpu_custom_call.1} parent=11 // pred_region
        _
      $region20: #{tpu_custom_call.1} parent=11 // pred_fallthru
        _
      // Predicated region
      $region21: #{tpu_custom_call.1} parent=11 // pred_check
        %p388 = pneg %p110
      $region22: #{tpu_custom_call.1} parent=11 // pred_check_branch
        %390 = sbr.rel (%p388) target = $region24
      $region23: #{tpu_custom_call.1} parent=11 // pred_region
        _
      $region24: #{tpu_custom_call.1} parent=11 // pred_fallthru
        _
      // Predicated region
      $region25: #{tpu_custom_call.1} parent=11 // pred_check
        %p391 = pneg %p131
      $region26: #{tpu_custom_call.1} parent=11 // pred_check_branch
        %393 = sbr.rel (%p391) target = $region28
      $region27: #{tpu_custom_call.1} parent=11 // pred_region
        _
      $region28: #{tpu_custom_call.1} parent=11 // pred_fallthru
        _
      // Predicated region
      $region29: #{tpu_custom_call.1} parent=11 // pred_check
        %p394 = pneg %p152
      $region30: #{tpu_custom_call.1} parent=11 // pred_check_branch
        %396 = sbr.rel (%p394) target = $region32
      $region31: #{tpu_custom_call.1} parent=11 // pred_region
        _
      $region32: #{tpu_custom_call.1} parent=11 // pred_fallthru
        _
      // Predicated region
      $region33: #{tpu_custom_call.1} parent=11 // pred_check
        %p397 = pneg %p173
      $region34: #{tpu_custom_call.1} parent=11 // pred_check_branch
        %399 = sbr.rel (%p397) target = $region36
      $region35: #{tpu_custom_call.1} parent=11 // pred_region
        _
      $region36: #{tpu_custom_call.1} parent=11 // pred_fallthru
        _
      // Predicated region
      $region37: #{tpu_custom_call.1} parent=11 // pred_check
        %p400 = pneg %p194
      $region38: #{tpu_custom_call.1} parent=11 // pred_check_branch
        %402 = sbr.rel (%p400) target = $region40
      $region39: #{tpu_custom_call.1} parent=11 // pred_region
        _
      $region40: #{tpu_custom_call.1} parent=11 // pred_fallthru
        _
      // Predicated region
      $region41: #{tpu_custom_call.1} parent=11 // pred_check
        %p403 = pneg %p215
      $region42: #{tpu_custom_call.1} parent=11 // pred_check_branch
        %405 = sbr.rel (%p403) target = $region44
      $region43: #{tpu_custom_call.1} parent=11 // pred_region
        _
      $region44: #{tpu_custom_call.1} parent=11 // pred_fallthru
        _
      // Predicated region
      $region45: #{tpu_custom_call.1} parent=11 // pred_check
        %p406 = pneg %p236
      $region46: #{tpu_custom_call.1} parent=11 // pred_check_branch
        %408 = sbr.rel (%p406) target = $region48
      $region47: #{tpu_custom_call.1} parent=11 // pred_region
        _
      $region48: #{tpu_custom_call.1} parent=11 // pred_fallthru
        _
      // Predicated region
      $region49: #{tpu_custom_call.1} parent=11 // pred_check
        %p409 = pneg %p257
      $region50: #{tpu_custom_call.1} parent=11 // pred_check_branch
        %411 = sbr.rel (%p409) target = $region52
      $region51: #{tpu_custom_call.1} parent=11 // pred_region
        _
      $region52: #{tpu_custom_call.1} parent=11 // pred_fallthru
        _
      // Predicated region
      $region53: #{tpu_custom_call.1} parent=11 // pred_check
        %p412 = pneg %p278
      $region54: #{tpu_custom_call.1} parent=11 // pred_check_branch
        %414 = sbr.rel (%p412) target = $region56
      $region55: #{tpu_custom_call.1} parent=11 // pred_region
        _
      $region56: #{tpu_custom_call.1} parent=11 // pred_fallthru
        _
      // Predicated region
      $region57: #{tpu_custom_call.1} parent=11 // pred_check
        %p415 = pneg %p299
      $region58: #{tpu_custom_call.1} parent=11 // pred_check_branch
        %417 = sbr.rel (%p415) target = $region60
      $region59: #{tpu_custom_call.1} parent=11 // pred_region
        _
      $region60: #{tpu_custom_call.1} parent=11 // pred_fallthru
        _
      // Predicated region
      $region61: #{tpu_custom_call.1} parent=11 // pred_check
        %p418 = pneg %p320
      $region62: #{tpu_custom_call.1} parent=11 // pred_check_branch
        %420 = sbr.rel (%p418) target = $region64
      $region63: #{tpu_custom_call.1} parent=11 // pred_region
        _
      $region64: #{tpu_custom_call.1} parent=11 // pred_fallthru
        _
      // Predicated region
      $region65: #{tpu_custom_call.1} parent=11 // pred_check
        %p421 = pneg %p341
      $region66: #{tpu_custom_call.1} parent=11 // pred_check_branch
        %423 = sbr.rel (%p421) target = $region68
      $region67: #{tpu_custom_call.1} parent=11 // pred_region
        _
      $region68: #{tpu_custom_call.1} parent=11 // pred_fallthru
        _
    $region12: #{tpu_custom_call.1} parent=5 // pred_fallthru
      _
    %p424 = scmp.lt.s32.totalorder %s21, 2
    // Predicated region
    $region69: #{tpu_custom_call.1} parent=5 // pred_check
      %p425 = pneg %p424
    $region70: #{tpu_custom_call.1} parent=5 // pred_check_branch
      %427 = sbr.rel (%p425) target = $region72
    $region71: #{tpu_custom_call.1} parent=5 // pred_region
      // Predicated region
      $region73: #{tpu_custom_call.1} parent=71 // pred_check
        %p428 = pneg %p41
      $region74: #{tpu_custom_call.1} parent=71 // pred_check_branch
        %430 = sbr.rel (%p428) target = $region76
      $region75: #{tpu_custom_call.1} parent=71 // pred_region
        %p431 = scmp.lt.s32.totalorder %s21, 1
        %s432 = scalar_select %p431, %s21, 1
        %s433 = smul.addr %s432, 32
        %s434 = smul.addr %s433, 8
        %s435 = scalar_lea.vmem %s0, %s434
      $region76: #{tpu_custom_call.1} parent=71 // pred_fallthru
        _
    $region72: #{tpu_custom_call.1} parent=5 // pred_fallthru
      _
    %p436 = scmp.le.s32.totalorder 1, %s21
    %p437 = scmp.lt.s32.totalorder %s21, 3
    %p438 = pnand %p436, %p437
    %p439 = pneg %p438
    // Predicated region
    $region77: #{tpu_custom_call.1} parent=5 // pred_check
      _
    $region78: #{tpu_custom_call.1} parent=5 // pred_check_branch
      %441 = sbr.rel (%p438) target = $region80
    $region79: #{tpu_custom_call.1} parent=5 // pred_region
      %s442 = ssub.s32 %s21, 1
      %p443 = scmp.lt.s32.totalorder %s26, 1
      %s444 = scalar_select %p443, %s26, 1
      %s445 = smul.addr %s444, 32
      %s446 = smul.addr %s445, 8
      %s447 = scalar_lea.vmem %s0, %s446
      %p448 = pneg %p47
      %p449 = pneg %p44
      %p450 = pneg %p68
      %p451 = pneg %p65
      %p452 = pneg %p89
      %p453 = pneg %p86
      %p454 = pneg %p110
      %p455 = pneg %p107
      %p456 = pneg %p131
      %p457 = pneg %p128
      %p458 = pneg %p152
      %p459 = pneg %p149
      %p460 = pneg %p173
      %p461 = pneg %p170
      %p462 = pneg %p194
      %p463 = pneg %p191
      %p464 = pneg %p215
      %p465 = pneg %p212
      %p466 = pneg %p236
      %p467 = pneg %p233
      %p468 = pneg %p257
      %p469 = pneg %p254
      %p470 = pneg %p278
      %p471 = pneg %p275
      %p472 = pneg %p299
      %p473 = pneg %p296
      %p474 = pneg %p320
      %p475 = pneg %p317
      %p476 = pneg %p341
      %p477 = pneg %p338
      %p478 = pneg %p367
      %p479 = pneg %p364
      %p480 = scmp.lt.s32.totalorder %s26, 1
      %s481 = scalar_select %p480, %s26, 1
      %s482 = smul.addr %s481, 32
      %s483 = smul.addr %s482, 8
      %s484 = scalar_lea.vmem %s15, %s483
      %p485 = scmp.lt.s32.totalorder %s26, 1
      %s486 = scalar_select %p485, %s26, 1
      %s487 = smul.addr %s486, 32
      %s488 = smul.addr %s487, 8
      %s489 = scalar_lea.vmem %s0, %s488
      %p490 = scmp.lt.s32.totalorder %s26, 1
      %s491 = scalar_select %p490, %s26, 1
      %s492 = smul.addr %s491, 32
      %s493 = smul.addr %s492, 8
      %s494 = scalar_lea.vmem %s15, %s493
      %v496 = vld [vmem:[%s489] sm:$0xff]
      %v497 = vld [vmem:[%s489 + $0x8] sm:$0xff]
      %v498 = vld [vmem:[%s489 + $0x10] sm:$0xff]
      %v499 = vld [vmem:[%s489 + $0x18] sm:$0xff]
      %v500 = vld [vmem:[%s489 + $0x20] sm:$0xff]
      %v501 = vld [vmem:[%s489 + $0x28] sm:$0xff]
      %v502 = vld [vmem:[%s489 + $0x30] sm:$0xff]
      %v503 = vld [vmem:[%s489 + $0x38] sm:$0xff]
      %v504 = vld [vmem:[%s489 + $0x40] sm:$0xff]
      %v505 = vld [vmem:[%s489 + $0x48] sm:$0xff]
      %v506 = vld [vmem:[%s489 + $0x50] sm:$0xff]
      %v507 = vld [vmem:[%s489 + $0x58] sm:$0xff]
      %v508 = vld [vmem:[%s489 + $0x60] sm:$0xff]
      %v509 = vld [vmem:[%s489 + $0x68] sm:$0xff]
      %v510 = vld [vmem:[%s489 + $0x70] sm:$0xff]
      %v511 = vld [vmem:[%s489 + $0x78] sm:$0xff]
      %v512 = vld [vmem:[%s489 + $0x80] sm:$0xff]
      %v513 = vld [vmem:[%s489 + $0x88] sm:$0xff]
      %v514 = vld [vmem:[%s489 + $0x90] sm:$0xff]
      %v515 = vld [vmem:[%s489 + $0x98] sm:$0xff]
      %v516 = vld [vmem:[%s489 + $0xa0] sm:$0xff]
      %v517 = vld [vmem:[%s489 + $0xa8] sm:$0xff]
      %v518 = vld [vmem:[%s489 + $0xb0] sm:$0xff]
      %v519 = vld [vmem:[%s489 + $0xb8] sm:$0xff]
      %v520 = vld [vmem:[%s489 + $0xc0] sm:$0xff]
      %v521 = vld [vmem:[%s489 + $0xc8] sm:$0xff]
      %v522 = vld [vmem:[%s489 + $0xd0] sm:$0xff]
      %v523 = vld [vmem:[%s489 + $0xd8] sm:$0xff]
      %v524 = vld [vmem:[%s489 + $0xe0] sm:$0xff]
      %v525 = vld [vmem:[%s489 + $0xe8] sm:$0xff]
      %v526 = vld [vmem:[%s489 + $0xf0] sm:$0xff]
      %v527 = vld [vmem:[%s489 + $0xf8] sm:$0xff]
      %v528 = vld [vmem:[%s1] sm:$0x1]
      %v529 = vld [vmem:[%s2] sm:$0x1]
      %vm530 = vcmask 31744
      %v531 = vsel %vm530, %v496, 0.0
      %532 = vadd.xlane.f32.xlu0 %v531
      %v533 = vpop.xlane.xlu0 %532
      %v534 = vsel %vm530, %v497, 0.0
      %535 = vadd.xlane.f32.xlu0 %v534
      %v536 = vpop.xlane.xlu0 %535
      %v537 = vsel %vm530, %v498, 0.0
      %538 = vadd.xlane.f32.xlu0 %v537
      %v539 = vpop.xlane.xlu0 %538
      %v540 = vsel %vm530, %v499, 0.0
      %541 = vadd.xlane.f32.xlu0 %v540
      %v542 = vpop.xlane.xlu0 %541
      %v543 = vsel %vm530, %v500, 0.0
      %544 = vadd.xlane.f32.xlu0 %v543
      %v545 = vpop.xlane.xlu0 %544
      %v546 = vsel %vm530, %v501, 0.0
      %547 = vadd.xlane.f32.xlu0 %v546
      %v548 = vpop.xlane.xlu0 %547
      %v549 = vsel %vm530, %v502, 0.0
      %550 = vadd.xlane.f32.xlu0 %v549
      %v551 = vpop.xlane.xlu0 %550
      %v552 = vsel %vm530, %v503, 0.0
      %553 = vadd.xlane.f32.xlu0 %v552
      %v554 = vpop.xlane.xlu0 %553
      %v555 = vsel %vm530, %v504, 0.0
      %556 = vadd.xlane.f32.xlu0 %v555
      %v557 = vpop.xlane.xlu0 %556
      %v558 = vsel %vm530, %v505, 0.0
      %559 = vadd.xlane.f32.xlu0 %v558
      %v560 = vpop.xlane.xlu0 %559
      %v561 = vsel %vm530, %v506, 0.0
      %562 = vadd.xlane.f32.xlu0 %v561
      %v563 = vpop.xlane.xlu0 %562
      %v564 = vsel %vm530, %v507, 0.0
      %565 = vadd.xlane.f32.xlu0 %v564
      %v566 = vpop.xlane.xlu0 %565
      %v567 = vsel %vm530, %v508, 0.0
      %568 = vadd.xlane.f32.xlu0 %v567
      %v569 = vpop.xlane.xlu0 %568
      %v570 = vsel %vm530, %v509, 0.0
      %571 = vadd.xlane.f32.xlu0 %v570
      %v572 = vpop.xlane.xlu0 %571
      %v573 = vsel %vm530, %v510, 0.0
      %574 = vadd.xlane.f32.xlu0 %v573
      %v575 = vpop.xlane.xlu0 %574
      %v576 = vsel %vm530, %v511, 0.0
      %577 = vadd.xlane.f32.xlu0 %v576
      %v578 = vpop.xlane.xlu0 %577
      %v579 = vsel %vm530, %v512, 0.0
      %580 = vadd.xlane.f32.xlu0 %v579
      %v581 = vpop.xlane.xlu0 %580
      %v582 = vsel %vm530, %v513, 0.0
      %583 = vadd.xlane.f32.xlu0 %v582
      %v584 = vpop.xlane.xlu0 %583
      %v585 = vsel %vm530, %v514, 0.0
      %586 = vadd.xlane.f32.xlu0 %v585
      %v587 = vpop.xlane.xlu0 %586
      %v588 = vsel %vm530, %v515, 0.0
      %589 = vadd.xlane.f32.xlu0 %v588
      %v590 = vpop.xlane.xlu0 %589
      %v591 = vsel %vm530, %v516, 0.0
      %592 = vadd.xlane.f32.xlu0 %v591
      %v593 = vpop.xlane.xlu0 %592
      %v594 = vsel %vm530, %v517, 0.0
      %595 = vadd.xlane.f32.xlu0 %v594
      %v596 = vpop.xlane.xlu0 %595
      %v597 = vsel %vm530, %v518, 0.0
      %598 = vadd.xlane.f32.xlu0 %v597
      %v599 = vpop.xlane.xlu0 %598
      %v600 = vsel %vm530, %v519, 0.0
      %601 = vadd.xlane.f32.xlu0 %v600
      %v602 = vpop.xlane.xlu0 %601
      %v603 = vsel %vm530, %v520, 0.0
      %604 = vadd.xlane.f32.xlu0 %v603
      %v605 = vpop.xlane.xlu0 %604
      %v606 = vsel %vm530, %v521, 0.0
      %607 = vadd.xlane.f32.xlu0 %v606
      %v608 = vpop.xlane.xlu0 %607
      %v609 = vsel %vm530, %v522, 0.0
      %610 = vadd.xlane.f32.xlu0 %v609
      %v611 = vpop.xlane.xlu0 %610
      %v612 = vsel %vm530, %v523, 0.0
      %613 = vadd.xlane.f32.xlu0 %v612
      %v614 = vpop.xlane.xlu0 %613
      %v615 = vsel %vm530, %v524, 0.0
      %616 = vadd.xlane.f32.xlu0 %v615
      %v617 = vpop.xlane.xlu0 %616
      %v618 = vsel %vm530, %v525, 0.0
      %619 = vadd.xlane.f32.xlu0 %v618
      %v620 = vpop.xlane.xlu0 %619
      %v621 = vsel %vm530, %v526, 0.0
      %622 = vadd.xlane.f32.xlu0 %v621
      %v623 = vpop.xlane.xlu0 %622
      %v624 = vsel %vm530, %v527, 0.0
      %625 = vadd.xlane.f32.xlu0 %v624
      %v626 = vpop.xlane.xlu0 %625
      %v627 = vrcp.pop 4.0
      %v628 = vmul.f32 %v533, %v627
      %v629 = vmul.f32 %v536, %v627
      %v630 = vmul.f32 %v539, %v627
      %v631 = vmul.f32 %v542, %v627
      %v632 = vmul.f32 %v545, %v627
      %v633 = vmul.f32 %v548, %v627
      %v634 = vmul.f32 %v551, %v627
      %v635 = vmul.f32 %v554, %v627
      %v636 = vmul.f32 %v557, %v627
      %v637 = vmul.f32 %v560, %v627
      %v638 = vmul.f32 %v563, %v627
      %v639 = vmul.f32 %v566, %v627
      %v640 = vmul.f32 %v569, %v627
      %v641 = vmul.f32 %v572, %v627
      %v642 = vmul.f32 %v575, %v627
      %v643 = vmul.f32 %v578, %v627
      %v644 = vmul.f32 %v581, %v627
      %v645 = vmul.f32 %v584, %v627
      %v646 = vmul.f32 %v587, %v627
      %v647 = vmul.f32 %v590, %v627
      %v648 = vmul.f32 %v593, %v627
      %v649 = vmul.f32 %v596, %v627
      %v650 = vmul.f32 %v599, %v627
      %v651 = vmul.f32 %v602, %v627
      %v652 = vmul.f32 %v605, %v627
      %v653 = vmul.f32 %v608, %v627
      %v654 = vmul.f32 %v611, %v627
      %v655 = vmul.f32 %v614, %v627
      %v656 = vmul.f32 %v617, %v627
      %v657 = vmul.f32 %v620, %v627
      %v658 = vmul.f32 %v623, %v627
      %v659 = vmul.f32 %v626, %v627
      %v660 = vsub.f32 %v496, %v628
      %v661 = vsub.f32 %v497, %v629
      %v662 = vsub.f32 %v498, %v630
      %v663 = vsub.f32 %v499, %v631
      %v664 = vsub.f32 %v500, %v632
      %v665 = vsub.f32 %v501, %v633
      %v666 = vsub.f32 %v502, %v634
      %v667 = vsub.f32 %v503, %v635
      %v668 = vsub.f32 %v504, %v636
      %v669 = vsub.f32 %v505, %v637
      %v670 = vsub.f32 %v506, %v638
      %v671 = vsub.f32 %v507, %v639
      %v672 = vsub.f32 %v508, %v640
      %v673 = vsub.f32 %v509, %v641
      %v674 = vsub.f32 %v510, %v642
      %v675 = vsub.f32 %v511, %v643
      %v676 = vsub.f32 %v512, %v644
      %v677 = vsub.f32 %v513, %v645
      %v678 = vsub.f32 %v514, %v646
      %v679 = vsub.f32 %v515, %v647
      %v680 = vsub.f32 %v516, %v648
      %v681 = vsub.f32 %v517, %v649
      %v682 = vsub.f32 %v518, %v650
      %v683 = vsub.f32 %v519, %v651
      %v684 = vsub.f32 %v520, %v652
      %v685 = vsub.f32 %v521, %v653
      %v686 = vsub.f32 %v522, %v654
      %v687 = vsub.f32 %v523, %v655
      %v688 = vsub.f32 %v524, %v656
      %v689 = vsub.f32 %v525, %v657
      %v690 = vsub.f32 %v526, %v658
      %v691 = vsub.f32 %v527, %v659
      %v692 = vmul.f32 %v660, %v660
      %v693 = vmul.f32 %v661, %v661
      %v694 = vmul.f32 %v662, %v662
      %v695 = vmul.f32 %v663, %v663
      %v696 = vmul.f32 %v664, %v664
      %v697 = vmul.f32 %v665, %v665
      %v698 = vmul.f32 %v666, %v666
      %v699 = vmul.f32 %v667, %v667
      %v700 = vmul.f32 %v668, %v668
      %v701 = vmul.f32 %v669, %v669
      %v702 = vmul.f32 %v670, %v670
      %v703 = vmul.f32 %v671, %v671
      %v704 = vmul.f32 %v672, %v672
      %v705 = vmul.f32 %v673, %v673
      %v706 = vmul.f32 %v674, %v674
      %v707 = vmul.f32 %v675, %v675
      %v708 = vmul.f32 %v676, %v676
      %v709 = vmul.f32 %v677, %v677
      %v710 = vmul.f32 %v678, %v678
      %v711 = vmul.f32 %v679, %v679
      %v712 = vmul.f32 %v680, %v680
      %v713 = vmul.f32 %v681, %v681
      %v714 = vmul.f32 %v682, %v682
      %v715 = vmul.f32 %v683, %v683
      %v716 = vmul.f32 %v684, %v684
      %v717 = vmul.f32 %v685, %v685
      %v718 = vmul.f32 %v686, %v686
      %v719 = vmul.f32 %v687, %v687
      %v720 = vmul.f32 %v688, %v688
      %v721 = vmul.f32 %v689, %v689
      %v722 = vmul.f32 %v690, %v690
      %v723 = vmul.f32 %v691, %v691
      %v724 = vsel %vm530, %v692, 0.0
      %725 = vadd.xlane.f32.xlu0 %v724
      %v726 = vpop.xlane.xlu0 %725
      %v727 = vsel %vm530, %v693, 0.0
      %728 = vadd.xlane.f32.xlu0 %v727
      %v729 = vpop.xlane.xlu0 %728
      %v730 = vsel %vm530, %v694, 0.0
      %731 = vadd.xlane.f32.xlu0 %v730
      %v732 = vpop.xlane.xlu0 %731
      %v733 = vsel %vm530, %v695, 0.0
      %734 = vadd.xlane.f32.xlu0 %v733
      %v735 = vpop.xlane.xlu0 %734
      %v736 = vsel %vm530, %v696, 0.0
      %737 = vadd.xlane.f32.xlu0 %v736
      %v738 = vpop.xlane.xlu0 %737
      %v739 = vsel %vm530, %v697, 0.0
      %740 = vadd.xlane.f32.xlu0 %v739
      %v741 = vpop.xlane.xlu0 %740
      %v742 = vsel %vm530, %v698, 0.0
      %743 = vadd.xlane.f32.xlu0 %v742
      %v744 = vpop.xlane.xlu0 %743
      %v745 = vsel %vm530, %v699, 0.0
      %746 = vadd.xlane.f32.xlu0 %v745
      %v747 = vpop.xlane.xlu0 %746
      %v748 = vsel %vm530, %v700, 0.0
      %749 = vadd.xlane.f32.xlu0 %v748
      %v750 = vpop.xlane.xlu0 %749
      %v751 = vsel %vm530, %v701, 0.0
      %752 = vadd.xlane.f32.xlu0 %v751
      %v753 = vpop.xlane.xlu0 %752
      %v754 = vsel %vm530, %v702, 0.0
      %755 = vadd.xlane.f32.xlu0 %v754
      %v756 = vpop.xlane.xlu0 %755
      %v757 = vsel %vm530, %v703, 0.0
      %758 = vadd.xlane.f32.xlu0 %v757
      %v759 = vpop.xlane.xlu0 %758
      %v760 = vsel %vm530, %v704, 0.0
      %761 = vadd.xlane.f32.xlu0 %v760
      %v762 = vpop.xlane.xlu0 %761
      %v763 = vsel %vm530, %v705, 0.0
      %764 = vadd.xlane.f32.xlu0 %v763
      %v765 = vpop.xlane.xlu0 %764
      %v766 = vsel %vm530, %v706, 0.0
      %767 = vadd.xlane.f32.xlu0 %v766
      %v768 = vpop.xlane.xlu0 %767
      %v769 = vsel %vm530, %v707, 0.0
      %770 = vadd.xlane.f32.xlu0 %v769
      %v771 = vpop.xlane.xlu0 %770
      %v772 = vsel %vm530, %v708, 0.0
      %773 = vadd.xlane.f32.xlu0 %v772
      %v774 = vpop.xlane.xlu0 %773
      %v775 = vsel %vm530, %v709, 0.0
      %776 = vadd.xlane.f32.xlu0 %v775
      %v777 = vpop.xlane.xlu0 %776
      %v778 = vsel %vm530, %v710, 0.0
      %779 = vadd.xlane.f32.xlu0 %v778
      %v780 = vpop.xlane.xlu0 %779
      %v781 = vsel %vm530, %v711, 0.0
      %782 = vadd.xlane.f32.xlu0 %v781
      %v783 = vpop.xlane.xlu0 %782
      %v784 = vsel %vm530, %v712, 0.0
      %785 = vadd.xlane.f32.xlu0 %v784
      %v786 = vpop.xlane.xlu0 %785
      %v787 = vsel %vm530, %v713, 0.0
      %788 = vadd.xlane.f32.xlu0 %v787
      %v789 = vpop.xlane.xlu0 %788
      %v790 = vsel %vm530, %v714, 0.0
      %791 = vadd.xlane.f32.xlu0 %v790
      %v792 = vpop.xlane.xlu0 %791
      %v793 = vsel %vm530, %v715, 0.0
      %794 = vadd.xlane.f32.xlu0 %v793
      %v795 = vpop.xlane.xlu0 %794
      %v796 = vsel %vm530, %v716, 0.0
      %797 = vadd.xlane.f32.xlu0 %v796
      %v798 = vpop.xlane.xlu0 %797
      %v799 = vsel %vm530, %v717, 0.0
      %800 = vadd.xlane.f32.xlu0 %v799
      %v801 = vpop.xlane.xlu0 %800
      %v802 = vsel %vm530, %v718, 0.0
      %803 = vadd.xlane.f32.xlu0 %v802
      %v804 = vpop.xlane.xlu0 %803
      %v805 = vsel %vm530, %v719, 0.0
      %806 = vadd.xlane.f32.xlu0 %v805
      %v807 = vpop.xlane.xlu0 %806
      %v808 = vsel %vm530, %v720, 0.0
      %809 = vadd.xlane.f32.xlu0 %v808
      %v810 = vpop.xlane.xlu0 %809
      %v811 = vsel %vm530, %v721, 0.0
      %812 = vadd.xlane.f32.xlu0 %v811
      %v813 = vpop.xlane.xlu0 %812
      %v814 = vsel %vm530, %v722, 0.0
      %815 = vadd.xlane.f32.xlu0 %v814
      %v816 = vpop.xlane.xlu0 %815
      %v817 = vsel %vm530, %v723, 0.0
      %818 = vadd.xlane.f32.xlu0 %v817
      %v819 = vpop.xlane.xlu0 %818
      %v820 = vmul.f32 %v726, %v627
      %v821 = vmul.f32 %v729, %v627
      %v822 = vmul.f32 %v732, %v627
      %v823 = vmul.f32 %v735, %v627
      %v824 = vmul.f32 %v738, %v627
      %v825 = vmul.f32 %v741, %v627
      %v826 = vmul.f32 %v744, %v627
      %v827 = vmul.f32 %v747, %v627
      %v828 = vmul.f32 %v750, %v627
      %v829 = vmul.f32 %v753, %v627
      %v830 = vmul.f32 %v756, %v627
      %v831 = vmul.f32 %v759, %v627
      %v832 = vmul.f32 %v762, %v627
      %v833 = vmul.f32 %v765, %v627
      %v834 = vmul.f32 %v768, %v627
      %v835 = vmul.f32 %v771, %v627
      %v836 = vmul.f32 %v774, %v627
      %v837 = vmul.f32 %v777, %v627
      %v838 = vmul.f32 %v780, %v627
      %v839 = vmul.f32 %v783, %v627
      %v840 = vmul.f32 %v786, %v627
      %v841 = vmul.f32 %v789, %v627
      %v842 = vmul.f32 %v792, %v627
      %v843 = vmul.f32 %v795, %v627
      %v844 = vmul.f32 %v798, %v627
      %v845 = vmul.f32 %v801, %v627
      %v846 = vmul.f32 %v804, %v627
      %v847 = vmul.f32 %v807, %v627
      %v848 = vmul.f32 %v810, %v627
      %v849 = vmul.f32 %v813, %v627
      %v850 = vmul.f32 %v816, %v627
      %v851 = vmul.f32 %v819, %v627
      %v852 = vadd.f32 %v820, 1e-05
      %v853 = vadd.f32 %v821, 1e-05
      %v854 = vadd.f32 %v822, 1e-05
      %v855 = vadd.f32 %v823, 1e-05
      %v856 = vadd.f32 %v824, 1e-05
      %v857 = vadd.f32 %v825, 1e-05
      %v858 = vadd.f32 %v826, 1e-05
      %v859 = vadd.f32 %v827, 1e-05
      %v860 = vadd.f32 %v828, 1e-05
      %v861 = vadd.f32 %v829, 1e-05
      %v862 = vadd.f32 %v830, 1e-05
      %v863 = vadd.f32 %v831, 1e-05
      %v864 = vadd.f32 %v832, 1e-05
      %v865 = vadd.f32 %v833, 1e-05
      %v866 = vadd.f32 %v834, 1e-05
      %v867 = vadd.f32 %v835, 1e-05
      %v868 = vadd.f32 %v836, 1e-05
      %v869 = vadd.f32 %v837, 1e-05
      %v870 = vadd.f32 %v838, 1e-05
      %v871 = vadd.f32 %v839, 1e-05
      %v872 = vadd.f32 %v840, 1e-05
      %v873 = vadd.f32 %v841, 1e-05
      %v874 = vadd.f32 %v842, 1e-05
      %v875 = vadd.f32 %v843, 1e-05
      %v876 = vadd.f32 %v844, 1e-05
      %v877 = vadd.f32 %v845, 1e-05
      %v878 = vadd.f32 %v846, 1e-05
      %v879 = vadd.f32 %v847, 1e-05
      %v880 = vadd.f32 %v848, 1e-05
      %v881 = vadd.f32 %v849, 1e-05
      %v882 = vadd.f32 %v850, 1e-05
      %v883 = vadd.f32 %v851, 1e-05
      %v884 = vrsqrt.pop %v852
      %v885 = vrsqrt.pop %v853
      %v886 = vrsqrt.pop %v854
      %v887 = vrsqrt.pop %v855
      %v888 = vrsqrt.pop %v856
      %v889 = vrsqrt.pop %v857
      %v890 = vrsqrt.pop %v858
      %v891 = vrsqrt.pop %v859
      %v892 = vrsqrt.pop %v860
      %v893 = vrsqrt.pop %v861
      %v894 = vrsqrt.pop %v862
      %v895 = vrsqrt.pop %v863
      %v896 = vrsqrt.pop %v864
      %v897 = vrsqrt.pop %v865
      %v898 = vrsqrt.pop %v866
      %v899 = vrsqrt.pop %v867
      %v900 = vrsqrt.pop %v868
      %v901 = vrsqrt.pop %v869
      %v902 = vrsqrt.pop %v870
      %v903 = vrsqrt.pop %v871
      %v904 = vrsqrt.pop %v872
      %v905 = vrsqrt.pop %v873
      %v906 = vrsqrt.pop %v874
      %v907 = vrsqrt.pop %v875
      %v908 = vrsqrt.pop %v876
      %v909 = vrsqrt.pop %v877
      %v910 = vrsqrt.pop %v878
      %v911 = vrsqrt.pop %v879
      %v912 = vrsqrt.pop %v880
      %v913 = vrsqrt.pop %v881
      %v914 = vrsqrt.pop %v882
      %v915 = vrsqrt.pop %v883
      %v916 = vmul.f32 %v660, %v884
      %v917 = vmul.f32 %v661, %v885
      %v918 = vmul.f32 %v662, %v886
      %v919 = vmul.f32 %v663, %v887
      %v920 = vmul.f32 %v664, %v888
      %v921 = vmul.f32 %v665, %v889
      %v922 = vmul.f32 %v666, %v890
      %v923 = vmul.f32 %v667, %v891
      %v924 = vmul.f32 %v668, %v892
      %v925 = vmul.f32 %v669, %v893
      %v926 = vmul.f32 %v670, %v894
      %v927 = vmul.f32 %v671, %v895
      %v928 = vmul.f32 %v672, %v896
      %v929 = vmul.f32 %v673, %v897
      %v930 = vmul.f32 %v674, %v898
      %v931 = vmul.f32 %v675, %v899
      %v932 = vmul.f32 %v676, %v900
      %v933 = vmul.f32 %v677, %v901
      %v934 = vmul.f32 %v678, %v902
      %v935 = vmul.f32 %v679, %v903
      %v936 = vmul.f32 %v680, %v904
      %v937 = vmul.f32 %v681, %v905
      %v938 = vmul.f32 %v682, %v906
      %v939 = vmul.f32 %v683, %v907
      %v940 = vmul.f32 %v684, %v908
      %v941 = vmul.f32 %v685, %v909
      %v942 = vmul.f32 %v686, %v910
      %v943 = vmul.f32 %v687, %v911
      %v944 = vmul.f32 %v688, %v912
      %v945 = vmul.f32 %v689, %v913
      %v946 = vmul.f32 %v690, %v914
      %v947 = vmul.f32 %v691, %v915
      %v949 = vlaneseq
      %v950 = vshrl.u32 %v949, 7
      %v951 = vsub.s32 0, %v950
      %v952 = vrot.slane %v528, %v951
      %v954 = vmul.f32 %v916, %v952
      %v955 = vmul.f32 %v917, %v952
      %v956 = vmul.f32 %v918, %v952
      %v957 = vmul.f32 %v919, %v952
      %v958 = vmul.f32 %v920, %v952
      %v959 = vmul.f32 %v921, %v952
      %v960 = vmul.f32 %v922, %v952
      %v961 = vmul.f32 %v923, %v952
      %v962 = vmul.f32 %v924, %v952
      %v963 = vmul.f32 %v925, %v952
      %v964 = vmul.f32 %v926, %v952
      %v965 = vmul.f32 %v927, %v952
      %v966 = vmul.f32 %v928, %v952
      %v967 = vmul.f32 %v929, %v952
      %v968 = vmul.f32 %v930, %v952
      %v969 = vmul.f32 %v931, %v952
      %v970 = vmul.f32 %v932, %v952
      %v971 = vmul.f32 %v933, %v952
      %v972 = vmul.f32 %v934, %v952
      %v973 = vmul.f32 %v935, %v952
      %v974 = vmul.f32 %v936, %v952
      %v975 = vmul.f32 %v937, %v952
      %v976 = vmul.f32 %v938, %v952
      %v977 = vmul.f32 %v939, %v952
      %v978 = vmul.f32 %v940, %v952
      %v979 = vmul.f32 %v941, %v952
      %v980 = vmul.f32 %v942, %v952
      %v981 = vmul.f32 %v943, %v952
      %v982 = vmul.f32 %v944, %v952
      %v983 = vmul.f32 %v945, %v952
      %v984 = vmul.f32 %v946, %v952
      %v985 = vmul.f32 %v947, %v952
      %v987 = vlaneseq
      %v988 = vshrl.u32 %v987, 7
      %v989 = vsub.s32 0, %v988
      %v990 = vrot.slane %v529, %v989
      %v992 = vadd.f32 %v954, %v990
      %v993 = vadd.f32 %v955, %v990
      %v994 = vadd.f32 %v956, %v990
      %v995 = vadd.f32 %v957, %v990
      %v996 = vadd.f32 %v958, %v990
      %v997 = vadd.f32 %v959, %v990
      %v998 = vadd.f32 %v960, %v990
      %v999 = vadd.f32 %v961, %v990
      %v1000 = vadd.f32 %v962, %v990
      %v1001 = vadd.f32 %v963, %v990
      %v1002 = vadd.f32 %v964, %v990
      %v1003 = vadd.f32 %v965, %v990
      %v1004 = vadd.f32 %v966, %v990
      %v1005 = vadd.f32 %v967, %v990
      %v1006 = vadd.f32 %v968, %v990
      %v1007 = vadd.f32 %v969, %v990
      %v1008 = vadd.f32 %v970, %v990
      %v1009 = vadd.f32 %v971, %v990
      %v1010 = vadd.f32 %v972, %v990
      %v1011 = vadd.f32 %v973, %v990
      %v1012 = vadd.f32 %v974, %v990
      %v1013 = vadd.f32 %v975, %v990
      %v1014 = vadd.f32 %v976, %v990
      %v1015 = vadd.f32 %v977, %v990
      %v1016 = vadd.f32 %v978, %v990
      %v1017 = vadd.f32 %v979, %v990
      %v1018 = vadd.f32 %v980, %v990
      %v1019 = vadd.f32 %v981, %v990
      %v1020 = vadd.f32 %v982, %v990
      %v1021 = vadd.f32 %v983, %v990
      %v1022 = vadd.f32 %v984, %v990
      %v1023 = vadd.f32 %v985, %v990
      %v1024 = vpack.c.bf16 %v993, %v992
      %v1025 = vpack.c.bf16 %v995, %v994
      %v1026 = vpack.c.bf16 %v997, %v996
      %v1027 = vpack.c.bf16 %v999, %v998
      %v1028 = vpack.c.bf16 %v1001, %v1000
      %v1029 = vpack.c.bf16 %v1003, %v1002
      %v1030 = vpack.c.bf16 %v1005, %v1004
      %v1031 = vpack.c.bf16 %v1007, %v1006
      %v1032 = vpack.c.bf16 %v1009, %v1008
      %v1033 = vpack.c.bf16 %v1011, %v1010
      %v1034 = vpack.c.bf16 %v1013, %v1012
      %v1035 = vpack.c.bf16 %v1015, %v1014
      %v1036 = vpack.c.bf16 %v1017, %v1016
      %v1037 = vpack.c.bf16 %v1019, %v1018
      %v1038 = vpack.c.bf16 %v1021, %v1020
      %v1039 = vpack.c.bf16 %v1023, %v1022
      %v1040 = vld [vmem:[%s3] sm:$0xff]
      %v1041 = vld [vmem:[%s3 + $0x8] sm:$0xff]
      %v1042 = vld [vmem:[%s3 + $0x10] sm:$0xff]
      %v1043 = vld [vmem:[%s3 + $0x18] sm:$0xff]
      %v1044 = vld [vmem:[%s3 + $0x20] sm:$0xff]
      %v1045 = vld [vmem:[%s3 + $0x28] sm:$0xff]
      %v1046 = vld [vmem:[%s3 + $0x30] sm:$0xff]
      %v1047 = vld [vmem:[%s3 + $0x38] sm:$0xff]
      %v1048 = vld [vmem:[%s3 + $0x40] sm:$0xff]
      %v1049 = vld [vmem:[%s3 + $0x48] sm:$0xff]
      %v1050 = vld [vmem:[%s3 + $0x50] sm:$0xff]
      %v1051 = vld [vmem:[%s3 + $0x58] sm:$0xff]
      %v1052 = vld [vmem:[%s3 + $0x60] sm:$0xff]
      %v1053 = vld [vmem:[%s3 + $0x68] sm:$0xff]
      %v1054 = vld [vmem:[%s3 + $0x70] sm:$0xff]
      %v1055 = vld [vmem:[%s3 + $0x78] sm:$0xff]
      %v1056 = vld [vmem:[%s3 + $0x80] sm:$0xff]
      %v1057 = vld [vmem:[%s3 + $0x88] sm:$0xff]
      %v1076 = vunpack.c.l.b16 %v1040
      %v1077 = vunpack.c.h.b16 %v1040
      %v1078 = vunpack.c.l.b16 %v1041
      %v1079 = vunpack.c.h.b16 %v1041
      %v1080 = vunpack.c.l.b16 %v1042
      %v1081 = vunpack.c.h.b16 %v1042
      %v1082 = vunpack.c.l.b16 %v1043
      %v1083 = vunpack.c.h.b16 %v1043
      %v1084 = vunpack.c.l.b16 %v1044
      %v1085 = vunpack.c.h.b16 %v1044
      %v1086 = vunpack.c.l.b16 %v1045
      %v1087 = vunpack.c.h.b16 %v1045
      %v1088 = vunpack.c.l.b16 %v1046
      %v1089 = vunpack.c.h.b16 %v1046
      %v1090 = vunpack.c.l.b16 %v1047
      %v1091 = vunpack.c.h.b16 %v1047
      %v1092 = vunpack.c.l.b16 %v1048
      %v1093 = vunpack.c.h.b16 %v1048
      %v1094 = vunpack.c.l.b16 %v1049
      %v1095 = vunpack.c.h.b16 %v1049
      %v1096 = vunpack.c.l.b16 %v1050
      %v1097 = vunpack.c.h.b16 %v1050
      %v1098 = vunpack.c.l.b16 %v1051
      %v1099 = vunpack.c.h.b16 %v1051
      %v1100 = vunpack.c.l.b16 %v1052
      %v1101 = vunpack.c.h.b16 %v1052
      %v1102 = vunpack.c.l.b16 %v1053
      %v1103 = vunpack.c.h.b16 %v1053
      %v1104 = vunpack.c.l.b16 %v1054
      %v1105 = vunpack.c.h.b16 %v1054
      %v1106 = vunpack.c.l.b16 %v1055
      %v1107 = vunpack.c.h.b16 %v1055
      %v1108 = vunpack.c.l.b16 %v1056
      %v1109 = vunpack.c.h.b16 %v1056
      %v1110 = vunpack.c.l.b16 %v1057
      %v1111 = vunpack.c.h.b16 %v1057
      %v1112 = vpack.c.b16 %v1078, %v1076
      %v1113 = vpack.c.b16 %v1079, %v1077
      %v1114 = vpack.c.b16 %v1082, %v1080
      %v1115 = vpack.c.b16 %v1083, %v1081
      %v1116 = vpack.c.b16 %v1086, %v1084
      %v1117 = vpack.c.b16 %v1087, %v1085
      %v1118 = vpack.c.b16 %v1090, %v1088
      %v1119 = vpack.c.b16 %v1091, %v1089
      %v1120 = vpack.c.b16 %v1094, %v1092
      %v1121 = vpack.c.b16 %v1095, %v1093
      %v1122 = vpack.c.b16 %v1098, %v1096
      %v1123 = vpack.c.b16 %v1099, %v1097
      %v1124 = vpack.c.b16 %v1102, %v1100
      %v1125 = vpack.c.b16 %v1103, %v1101
      %v1126 = vpack.c.b16 %v1106, %v1104
      %v1127 = vpack.c.b16 %v1107, %v1105
      %v1128 = vpack.c.b16 %v1110, %v1108
      %v1129 = vpack.c.b16 %v1111, %v1109
      %1148 = vmatprep.subr.bf16.mxu0 0
      %1149 = vmatpush1.bf16.msra.mxu0 %v1031
      %1150 = vmatprep.subr.bf16.mxu0 0
      %1151 = vmatpush1.bf16.msra.mxu0 %v1030
      %1152 = vmatprep.subr.bf16.mxu0 0
      %1153 = vmatpush1.bf16.msra.mxu0 %v1029
      %1154 = vmatprep.subr.bf16.mxu0 0
      %1155 = vmatpush1.bf16.msra.mxu0 %v1028
      %1156 = vmatprep.subr.bf16.mxu0 0
      %1157 = vmatpush1.bf16.msra.mxu0 %v1027
      %1158 = vmatprep.subr.bf16.mxu0 0
      %1159 = vmatpush1.bf16.msra.mxu0 %v1026
      %1160 = vmatprep.subr.bf16.mxu0 0
      %1161 = vmatpush1.bf16.msra.mxu0 %v1025
      %1162 = vmatprep.subr.bf16.mxu0 0
      %1163 = vmatpush1.bf16.msra.mxu0 %v1024
      %1164 = vmatprep.subr.bf16.mxu0 0
      %1165 = vmatpush2.bf16.msra.mxu0 %v1039
      %1166 = vmatprep.subr.bf16.mxu0 0
      %1167 = vmatpush2.bf16.msra.mxu0 %v1038
      %1168 = vmatprep.subr.bf16.mxu0 0
      %1169 = vmatpush2.bf16.msra.mxu0 %v1037
      %1170 = vmatprep.subr.bf16.mxu0 0
      %1171 = vmatpush2.bf16.msra.mxu0 %v1036
      %1172 = vmatprep.subr.bf16.mxu0 0
      %1173 = vmatpush2.bf16.msra.mxu0 %v1035
      %1174 = vmatprep.subr.bf16.mxu0 0
      %1175 = vmatpush2.bf16.msra.mxu0 %v1034
      %1176 = vmatprep.subr.bf16.mxu0 0
      %1177 = vmatpush2.bf16.msra.mxu0 %v1033
      %1178 = vmatprep.subr.bf16.mxu0 0
      %1179 = vmatpush2.bf16.msra.mxu0 %v1032
      %1180 = vmatprep.mubr.bf16.mxu0 %v1113
      %1181 = vmatmul.mubr.bf16.gmra.mxu0 %v1112
      %v1182 = vpop.f32.mrf.mxu0
      %v1183 = vadd.f32 0.0, %v1182
      %v1184 = vpop.f32.mrf.mxu0
      %v1185 = vpop.f32.mrf.mxu0
      %v1186 = vadd.f32 0.0, %v1185
      %v1187 = vpop.f32.mrf.mxu0
      %1188 = vmatprep.mubr.bf16.mxu0 %v1115
      %1189 = vmatmul.mubr.bf16.gmra.mxu0 %v1114
      %v1190 = vpop.f32.mrf.mxu0
      %v1191 = vadd.f32 0.0, %v1190
      %v1192 = vpop.f32.mrf.mxu0
      %v1193 = vpop.f32.mrf.mxu0
      %v1194 = vadd.f32 0.0, %v1193
      %v1195 = vpop.f32.mrf.mxu0
      %1196 = vmatprep.mubr.bf16.mxu0 %v1117
      %1197 = vmatmul.mubr.bf16.gmra.mxu0 %v1116
      %v1198 = vpop.f32.mrf.mxu0
      %v1199 = vadd.f32 0.0, %v1198
      %v1200 = vpop.f32.mrf.mxu0
      %v1201 = vpop.f32.mrf.mxu0
      %v1202 = vadd.f32 0.0, %v1201
      %v1203 = vpop.f32.mrf.mxu0
      %1204 = vmatprep.mubr.bf16.mxu0 %v1119
      %1205 = vmatmul.mubr.bf16.gmra.mxu0 %v1118
      %v1206 = vpop.f32.mrf.mxu0
      %v1207 = vadd.f32 0.0, %v1206
      %v1208 = vpop.f32.mrf.mxu0
      %v1209 = vpop.f32.mrf.mxu0
      %v1210 = vadd.f32 0.0, %v1209
      %v1211 = vpop.f32.mrf.mxu0
      %1212 = vmatprep.mubr.bf16.mxu0 %v1121
      %1213 = vmatmul.mubr.bf16.gmra.mxu0 %v1120
      %v1214 = vpop.f32.mrf.mxu0
      %v1215 = vadd.f32 0.0, %v1214
      %v1216 = vpop.f32.mrf.mxu0
      %v1217 = vpop.f32.mrf.mxu0
      %v1218 = vadd.f32 0.0, %v1217
      %v1219 = vpop.f32.mrf.mxu0
      %1220 = vmatprep.mubr.bf16.mxu0 %v1123
      %1221 = vmatmul.mubr.bf16.gmra.mxu0 %v1122
      %v1222 = vpop.f32.mrf.mxu0
      %v1223 = vadd.f32 0.0, %v1222
      %v1224 = vpop.f32.mrf.mxu0
      %v1225 = vpop.f32.mrf.mxu0
      %v1226 = vadd.f32 0.0, %v1225
      %v1227 = vpop.f32.mrf.mxu0
      %1228 = vmatprep.mubr.bf16.mxu0 %v1125
      %1229 = vmatmul.mubr.bf16.gmra.mxu0 %v1124
      %v1230 = vpop.f32.mrf.mxu0
      %v1231 = vadd.f32 0.0, %v1230
      %v1232 = vpop.f32.mrf.mxu0
      %v1233 = vpop.f32.mrf.mxu0
      %v1234 = vadd.f32 0.0, %v1233
      %v1235 = vpop.f32.mrf.mxu0
      %1236 = vmatprep.mubr.bf16.mxu0 %v1127
      %1237 = vmatmul.mubr.bf16.gmra.mxu0 %v1126
      %v1238 = vpop.f32.mrf.mxu0
      %v1239 = vadd.f32 0.0, %v1238
      %v1240 = vpop.f32.mrf.mxu0
      %v1241 = vpop.f32.mrf.mxu0
      %v1242 = vadd.f32 0.0, %v1241
      %v1243 = vpop.f32.mrf.mxu0
      %1244 = vmatprep.mubr.bf16.mxu0 %v1129
      %1245 = vmatmul.mubr.bf16.gmra.mxu0 %v1128
      %v1246 = vpop.f32.mrf.mxu0
      %v1247 = vadd.f32 0.0, %v1246
      %v1248 = vpop.f32.mrf.mxu0
      %v1249 = vpop.f32.mrf.mxu0
      %v1250 = vadd.f32 0.0, %v1249
      %v1251 = vpop.f32.mrf.mxu0
      %1252 = vdwg.mxu0
      %v1253 = vld [vmem:[%s4] sm:$0xff]
      %v1254 = vld [vmem:[%s4 + $0x8] sm:$0xff]
      %v1255 = vld [vmem:[%s4 + $0x10] sm:$0xff]
      %v1256 = vld [vmem:[%s4 + $0x18] sm:$0xff]
      %v1257 = vld [vmem:[%s4 + $0x20] sm:$0xff]
      %v1258 = vld [vmem:[%s4 + $0x28] sm:$0xff]
      %v1259 = vld [vmem:[%s4 + $0x30] sm:$0xff]
      %v1260 = vld [vmem:[%s4 + $0x38] sm:$0xff]
      %v1261 = vld [vmem:[%s4 + $0x40] sm:$0xff]
      %v1262 = vld [vmem:[%s4 + $0x48] sm:$0xff]
      %v1263 = vld [vmem:[%s4 + $0x50] sm:$0xff]
      %v1264 = vld [vmem:[%s4 + $0x58] sm:$0xff]
      %v1265 = vld [vmem:[%s4 + $0x60] sm:$0xff]
      %v1266 = vld [vmem:[%s4 + $0x68] sm:$0xff]
      %v1267 = vld [vmem:[%s4 + $0x70] sm:$0xff]
      %v1268 = vld [vmem:[%s4 + $0x78] sm:$0xff]
      %v1269 = vld [vmem:[%s4 + $0x80] sm:$0xff]
      %v1270 = vld [vmem:[%s4 + $0x88] sm:$0xff]
      %v1289 = vunpack.c.l.b16 %v1253
      %v1290 = vunpack.c.h.b16 %v1253
      %v1291 = vunpack.c.l.b16 %v1254
      %v1292 = vunpack.c.h.b16 %v1254
      %v1293 = vunpack.c.l.b16 %v1255
      %v1294 = vunpack.c.h.b16 %v1255
      %v1295 = vunpack.c.l.b16 %v1256
      %v1296 = vunpack.c.h.b16 %v1256
      %v1297 = vunpack.c.l.b16 %v1257
      %v1298 = vunpack.c.h.b16 %v1257
      %v1299 = vunpack.c.l.b16 %v1258
      %v1300 = vunpack.c.h.b16 %v1258
      %v1301 = vunpack.c.l.b16 %v1259
      %v1302 = vunpack.c.h.b16 %v1259
      %v1303 = vunpack.c.l.b16 %v1260
      %v1304 = vunpack.c.h.b16 %v1260
      %v1305 = vunpack.c.l.b16 %v1261
      %v1306 = vunpack.c.h.b16 %v1261
      %v1307 = vunpack.c.l.b16 %v1262
      %v1308 = vunpack.c.h.b16 %v1262
      %v1309 = vunpack.c.l.b16 %v1263
      %v1310 = vunpack.c.h.b16 %v1263
      %v1311 = vunpack.c.l.b16 %v1264
      %v1312 = vunpack.c.h.b16 %v1264
      %v1313 = vunpack.c.l.b16 %v1265
      %v1314 = vunpack.c.h.b16 %v1265
      %v1315 = vunpack.c.l.b16 %v1266
      %v1316 = vunpack.c.h.b16 %v1266
      %v1317 = vunpack.c.l.b16 %v1267
      %v1318 = vunpack.c.h.b16 %v1267
      %v1319 = vunpack.c.l.b16 %v1268
      %v1320 = vunpack.c.h.b16 %v1268
      %v1321 = vunpack.c.l.b16 %v1269
      %v1322 = vunpack.c.h.b16 %v1269
      %v1323 = vunpack.c.l.b16 %v1270
      %v1324 = vunpack.c.h.b16 %v1270
      %v1325 = vpack.c.b16 %v1291, %v1289
      %v1326 = vpack.c.b16 %v1292, %v1290
      %v1327 = vpack.c.b16 %v1295, %v1293
      %v1328 = vpack.c.b16 %v1296, %v1294
      %v1329 = vpack.c.b16 %v1299, %v1297
      %v1330 = vpack.c.b16 %v1300, %v1298
      %v1331 = vpack.c.b16 %v1303, %v1301
      %v1332 = vpack.c.b16 %v1304, %v1302
      %v1333 = vpack.c.b16 %v1307, %v1305
      %v1334 = vpack.c.b16 %v1308, %v1306
      %v1335 = vpack.c.b16 %v1311, %v1309
      %v1336 = vpack.c.b16 %v1312, %v1310
      %v1337 = vpack.c.b16 %v1315, %v1313
      %v1338 = vpack.c.b16 %v1316, %v1314
      %v1339 = vpack.c.b16 %v1319, %v1317
      %v1340 = vpack.c.b16 %v1320, %v1318
      %v1341 = vpack.c.b16 %v1323, %v1321
      %v1342 = vpack.c.b16 %v1324, %v1322
      %1361 = vmatprep.subr.bf16.mxu0 0
      %1362 = vmatpush1.bf16.msra.mxu0 %v1031
      %1363 = vmatprep.subr.bf16.mxu0 0
      %1364 = vmatpush1.bf16.msra.mxu0 %v1030
      %1365 = vmatprep.subr.bf16.mxu0 0
      %1366 = vmatpush1.bf16.msra.mxu0 %v1029
      %1367 = vmatprep.subr.bf16.mxu0 0
      %1368 = vmatpush1.bf16.msra.mxu0 %v1028
      %1369 = vmatprep.subr.bf16.mxu0 0
      %1370 = vmatpush1.bf16.msra.mxu0 %v1027
      %1371 = vmatprep.subr.bf16.mxu0 0
      %1372 = vmatpush1.bf16.msra.mxu0 %v1026
      %1373 = vmatprep.subr.bf16.mxu0 0
      %1374 = vmatpush1.bf16.msra.mxu0 %v1025
      %1375 = vmatprep.subr.bf16.mxu0 0
      %1376 = vmatpush1.bf16.msra.mxu0 %v1024
      %1377 = vmatprep.subr.bf16.mxu0 0
      %1378 = vmatpush2.bf16.msra.mxu0 %v1039
      %1379 = vmatprep.subr.bf16.mxu0 0
      %1380 = vmatpush2.bf16.msra.mxu0 %v1038
      %1381 = vmatprep.subr.bf16.mxu0 0
      %1382 = vmatpush2.bf16.msra.mxu0 %v1037
      %1383 = vmatprep.subr.bf16.mxu0 0
      %1384 = vmatpush2.bf16.msra.mxu0 %v1036
      %1385 = vmatprep.subr.bf16.mxu0 0
      %1386 = vmatpush2.bf16.msra.mxu0 %v1035
      %1387 = vmatprep.subr.bf16.mxu0 0
      %1388 = vmatpush2.bf16.msra.mxu0 %v1034
      %1389 = vmatprep.subr.bf16.mxu0 0
      %1390 = vmatpush2.bf16.msra.mxu0 %v1033
      %1391 = vmatprep.subr.bf16.mxu0 0
      %1392 = vmatpush2.bf16.msra.mxu0 %v1032
      %1393 = vmatprep.mubr.bf16.mxu0 %v1326
      %1394 = vmatmul.mubr.bf16.gmra.mxu0 %v1325
      %v1395 = vpop.f32.mrf.mxu0
      %v1396 = vadd.f32 0.0, %v1395
      %v1397 = vpop.f32.mrf.mxu0
      %v1398 = vpop.f32.mrf.mxu0
      %v1399 = vadd.f32 0.0, %v1398
      %v1400 = vpop.f32.mrf.mxu0
      %1401 = vmatprep.mubr.bf16.mxu0 %v1328
      %1402 = vmatmul.mubr.bf16.gmra.mxu0 %v1327
      %v1403 = vpop.f32.mrf.mxu0
      %v1404 = vadd.f32 0.0, %v1403
      %v1405 = vpop.f32.mrf.mxu0
      %v1406 = vpop.f32.mrf.mxu0
      %v1407 = vadd.f32 0.0, %v1406
      %v1408 = vpop.f32.mrf.mxu0
      %1409 = vmatprep.mubr.bf16.mxu0 %v1330
      %1410 = vmatmul.mubr.bf16.gmra.mxu0 %v1329
      %v1411 = vpop.f32.mrf.mxu0
      %v1412 = vadd.f32 0.0, %v1411
      %v1413 = vpop.f32.mrf.mxu0
      %v1414 = vpop.f32.mrf.mxu0
      %v1415 = vadd.f32 0.0, %v1414
      %v1416 = vpop.f32.mrf.mxu0
      %1417 = vmatprep.mubr.bf16.mxu0 %v1332
      %1418 = vmatmul.mubr.bf16.gmra.mxu0 %v1331
      %v1419 = vpop.f32.mrf.mxu0
      %v1420 = vadd.f32 0.0, %v1419
      %v1421 = vpop.f32.mrf.mxu0
      %v1422 = vpop.f32.mrf.mxu0
      %v1423 = vadd.f32 0.0, %v1422
      %v1424 = vpop.f32.mrf.mxu0
      %1425 = vmatprep.mubr.bf16.mxu0 %v1334
      %1426 = vmatmul.mubr.bf16.gmra.mxu0 %v1333
      %v1427 = vpop.f32.mrf.mxu0
      %v1428 = vadd.f32 0.0, %v1427
      %v1429 = vpop.f32.mrf.mxu0
      %v1430 = vpop.f32.mrf.mxu0
      %v1431 = vadd.f32 0.0, %v1430
      %v1432 = vpop.f32.mrf.mxu0
      %1433 = vmatprep.mubr.bf16.mxu0 %v1336
      %1434 = vmatmul.mubr.bf16.gmra.mxu0 %v1335
      %v1435 = vpop.f32.mrf.mxu0
      %v1436 = vadd.f32 0.0, %v1435
      %v1437 = vpop.f32.mrf.mxu0
      %v1438 = vpop.f32.mrf.mxu0
      %v1439 = vadd.f32 0.0, %v1438
      %v1440 = vpop.f32.mrf.mxu0
      %1441 = vmatprep.mubr.bf16.mxu0 %v1338
      %1442 = vmatmul.mubr.bf16.gmra.mxu0 %v1337
      %v1443 = vpop.f32.mrf.mxu0
      %v1444 = vadd.f32 0.0, %v1443
      %v1445 = vpop.f32.mrf.mxu0
      %v1446 = vpop.f32.mrf.mxu0
      %v1447 = vadd.f32 0.0, %v1446
      %v1448 = vpop.f32.mrf.mxu0
      %1449 = vmatprep.mubr.bf16.mxu0 %v1340
      %1450 = vmatmul.mubr.bf16.gmra.mxu0 %v1339
      %v1451 = vpop.f32.mrf.mxu0
      %v1452 = vadd.f32 0.0, %v1451
      %v1453 = vpop.f32.mrf.mxu0
      %v1454 = vpop.f32.mrf.mxu0
      %v1455 = vadd.f32 0.0, %v1454
      %v1456 = vpop.f32.mrf.mxu0
      %1457 = vmatprep.mubr.bf16.mxu0 %v1342
      %1458 = vmatmul.mubr.bf16.gmra.mxu0 %v1341
      %v1459 = vpop.f32.mrf.mxu0
      %v1460 = vadd.f32 0.0, %v1459
      %v1461 = vpop.f32.mrf.mxu0
      %v1462 = vpop.f32.mrf.mxu0
      %v1463 = vadd.f32 0.0, %v1462
      %v1464 = vpop.f32.mrf.mxu0
      %1465 = vdwg.mxu0
      %v1466 = vld [vmem:[%s7] sm:$0xf]
      %v1467 = vld [vmem:[%s7 + $0x4] sm:$0xf]
      %v1468 = vld [vmem:[%s7 + $0x8] sm:$0xf]
      %v1469 = vld [vmem:[%s7 + $0xc] sm:$0xf]
      %v1470 = vld [vmem:[%s7 + $0x10] sm:$0xf]
      %v1471 = vld [vmem:[%s7 + $0x14] sm:$0xf]
      %v1472 = vld [vmem:[%s7 + $0x18] sm:$0xf]
      %v1473 = vld [vmem:[%s7 + $0x1c] sm:$0xf]
      %v1474 = vld [vmem:[%s7 + $0x20] sm:$0xf]
      %v1475 = vld [vmem:[%s7 + $0x24] sm:$0xf]
      %v1476 = vld [vmem:[%s7 + $0x28] sm:$0xf]
      %v1477 = vld [vmem:[%s7 + $0x2c] sm:$0xf]
      %v1478 = vld [vmem:[%s7 + $0x30] sm:$0xf]
      %v1479 = vld [vmem:[%s7 + $0x34] sm:$0xf]
      %v1480 = vld [vmem:[%s7 + $0x38] sm:$0xf]
      %v1481 = vld [vmem:[%s7 + $0x3c] sm:$0xf]
      %v1482 = vld [vmem:[%s7 + $0x40] sm:$0xf]
      %v1483 = vld [vmem:[%s7 + $0x44] sm:$0xf]
      %v1484 = vunpack.c.l.bf16 %v1466
      %v1485 = vunpack.c.l.bf16 %v1467
      %v1486 = vunpack.c.l.bf16 %v1468
      %v1487 = vunpack.c.l.bf16 %v1469
      %v1488 = vunpack.c.l.bf16 %v1470
      %v1489 = vunpack.c.l.bf16 %v1471
      %v1490 = vunpack.c.l.bf16 %v1472
      %v1491 = vunpack.c.l.bf16 %v1473
      %v1492 = vunpack.c.l.bf16 %v1474
      %v1493 = vunpack.c.l.bf16 %v1475
      %v1494 = vunpack.c.l.bf16 %v1476
      %v1495 = vunpack.c.l.bf16 %v1477
      %v1496 = vunpack.c.l.bf16 %v1478
      %v1497 = vunpack.c.l.bf16 %v1479
      %v1498 = vunpack.c.l.bf16 %v1480
      %v1499 = vunpack.c.l.bf16 %v1481
      %v1500 = vunpack.c.l.bf16 %v1482
      %v1501 = vunpack.c.l.bf16 %v1483
      %v1502 = vld [vmem:[%s8] sm:$0xf]
      %v1503 = vld [vmem:[%s8 + $0x4] sm:$0xf]
      %v1504 = vld [vmem:[%s8 + $0x8] sm:$0xf]
      %v1505 = vld [vmem:[%s8 + $0xc] sm:$0xf]
      %v1506 = vld [vmem:[%s8 + $0x10] sm:$0xf]
      %v1507 = vld [vmem:[%s8 + $0x14] sm:$0xf]
      %v1508 = vld [vmem:[%s8 + $0x18] sm:$0xf]
      %v1509 = vld [vmem:[%s8 + $0x1c] sm:$0xf]
      %v1510 = vld [vmem:[%s8 + $0x20] sm:$0xf]
      %v1511 = vld [vmem:[%s8 + $0x24] sm:$0xf]
      %v1512 = vld [vmem:[%s8 + $0x28] sm:$0xf]
      %v1513 = vld [vmem:[%s8 + $0x2c] sm:$0xf]
      %v1514 = vld [vmem:[%s8 + $0x30] sm:$0xf]
      %v1515 = vld [vmem:[%s8 + $0x34] sm:$0xf]
      %v1516 = vld [vmem:[%s8 + $0x38] sm:$0xf]
      %v1517 = vld [vmem:[%s8 + $0x3c] sm:$0xf]
      %v1518 = vld [vmem:[%s8 + $0x40] sm:$0xf]
      %v1519 = vld [vmem:[%s8 + $0x44] sm:$0xf]
      %v1520 = vunpack.c.l.bf16 %v1502
      %v1521 = vunpack.c.l.bf16 %v1503
      %v1522 = vunpack.c.l.bf16 %v1504
      %v1523 = vunpack.c.l.bf16 %v1505
      %v1524 = vunpack.c.l.bf16 %v1506
      %v1525 = vunpack.c.l.bf16 %v1507
      %v1526 = vunpack.c.l.bf16 %v1508
      %v1527 = vunpack.c.l.bf16 %v1509
      %v1528 = vunpack.c.l.bf16 %v1510
      %v1529 = vunpack.c.l.bf16 %v1511
      %v1530 = vunpack.c.l.bf16 %v1512
      %v1531 = vunpack.c.l.bf16 %v1513
      %v1532 = vunpack.c.l.bf16 %v1514
      %v1533 = vunpack.c.l.bf16 %v1515
      %v1534 = vunpack.c.l.bf16 %v1516
      %v1535 = vunpack.c.l.bf16 %v1517
      %v1536 = vunpack.c.l.bf16 %v1518
      %v1537 = vunpack.c.l.bf16 %v1519
      %v1538 = vmul.f32 %v1183, %v1484
      %v1539 = vmul.f32 %v1186, %v1485
      %v1540 = vmul.f32 %v1191, %v1486
      %v1541 = vmul.f32 %v1194, %v1487
      %v1542 = vmul.f32 %v1199, %v1488
      %v1543 = vmul.f32 %v1202, %v1489
      %v1544 = vmul.f32 %v1207, %v1490
      %v1545 = vmul.f32 %v1210, %v1491
      %v1546 = vmul.f32 %v1215, %v1492
      %v1547 = vmul.f32 %v1218, %v1493
      %v1548 = vmul.f32 %v1223, %v1494
      %v1549 = vmul.f32 %v1226, %v1495
      %v1550 = vmul.f32 %v1231, %v1496
      %v1551 = vmul.f32 %v1234, %v1497
      %v1552 = vmul.f32 %v1239, %v1498
      %v1553 = vmul.f32 %v1242, %v1499
      %v1554 = vmul.f32 %v1247, %v1500
      %v1555 = vmul.f32 %v1250, %v1501
      %v1556 = vmul.f32 %v1396, %v1520
      %v1557 = vmul.f32 %v1399, %v1521
      %v1558 = vmul.f32 %v1404, %v1522
      %v1559 = vmul.f32 %v1407, %v1523
      %v1560 = vmul.f32 %v1412, %v1524
      %v1561 = vmul.f32 %v1415, %v1525
      %v1562 = vmul.f32 %v1420, %v1526
      %v1563 = vmul.f32 %v1423, %v1527
      %v1564 = vmul.f32 %v1428, %v1528
      %v1565 = vmul.f32 %v1431, %v1529
      %v1566 = vmul.f32 %v1436, %v1530
      %v1567 = vmul.f32 %v1439, %v1531
      %v1568 = vmul.f32 %v1444, %v1532
      %v1569 = vmul.f32 %v1447, %v1533
      %v1570 = vmul.f32 %v1452, %v1534
      %v1571 = vmul.f32 %v1455, %v1535
      %v1572 = vmul.f32 %v1460, %v1536
      %v1573 = vmul.f32 %v1463, %v1537
      %v1574 = vsub.f32 %v1538, %v1556
      %v1575 = vsub.f32 %v1539, %v1557
      %v1576 = vsub.f32 %v1540, %v1558
      %v1577 = vsub.f32 %v1541, %v1559
      %v1578 = vsub.f32 %v1542, %v1560
      %v1579 = vsub.f32 %v1543, %v1561
      %v1580 = vsub.f32 %v1544, %v1562
      %v1581 = vsub.f32 %v1545, %v1563
      %v1582 = vsub.f32 %v1546, %v1564
      %v1583 = vsub.f32 %v1547, %v1565
      %v1584 = vsub.f32 %v1548, %v1566
      %v1585 = vsub.f32 %v1549, %v1567
      %v1586 = vsub.f32 %v1550, %v1568
      %v1587 = vsub.f32 %v1551, %v1569
      %v1588 = vsub.f32 %v1552, %v1570
      %v1589 = vsub.f32 %v1553, %v1571
      %v1590 = vsub.f32 %v1554, %v1572
      %v1591 = vsub.f32 %v1555, %v1573
      %v1592 = vpack.c.bf16 %v1575, %v1574
      %v1593 = vpack.c.bf16 %v1577, %v1576
      %v1594 = vpack.c.bf16 %v1579, %v1578
      %v1595 = vpack.c.bf16 %v1581, %v1580
      %v1596 = vpack.c.bf16 %v1583, %v1582
      %v1597 = vpack.c.bf16 %v1585, %v1584
      %v1598 = vpack.c.bf16 %v1587, %v1586
      %v1599 = vpack.c.bf16 %v1589, %v1588
      %v1600 = vpack.c.bf16 %v1591, %v1590
      %v1601 = vmul.f32 %v1183, %v1520
      %v1602 = vmul.f32 %v1186, %v1521
      %v1603 = vmul.f32 %v1191, %v1522
      %v1604 = vmul.f32 %v1194, %v1523
      %v1605 = vmul.f32 %v1199, %v1524
      %v1606 = vmul.f32 %v1202, %v1525
      %v1607 = vmul.f32 %v1207, %v1526
      %v1608 = vmul.f32 %v1210, %v1527
      %v1609 = vmul.f32 %v1215, %v1528
      %v1610 = vmul.f32 %v1218, %v1529
      %v1611 = vmul.f32 %v1223, %v1530
      %v1612 = vmul.f32 %v1226, %v1531
      %v1613 = vmul.f32 %v1231, %v1532
      %v1614 = vmul.f32 %v1234, %v1533
      %v1615 = vmul.f32 %v1239, %v1534
      %v1616 = vmul.f32 %v1242, %v1535
      %v1617 = vmul.f32 %v1247, %v1536
      %v1618 = vmul.f32 %v1250, %v1537
      %v1619 = vmul.f32 %v1396, %v1484
      %v1620 = vmul.f32 %v1399, %v1485
      %v1621 = vmul.f32 %v1404, %v1486
      %v1622 = vmul.f32 %v1407, %v1487
      %v1623 = vmul.f32 %v1412, %v1488
      %v1624 = vmul.f32 %v1415, %v1489
      %v1625 = vmul.f32 %v1420, %v1490
      %v1626 = vmul.f32 %v1423, %v1491
      %v1627 = vmul.f32 %v1428, %v1492
      %v1628 = vmul.f32 %v1431, %v1493
      %v1629 = vmul.f32 %v1436, %v1494
      %v1630 = vmul.f32 %v1439, %v1495
      %v1631 = vmul.f32 %v1444, %v1496
      %v1632 = vmul.f32 %v1447, %v1497
      %v1633 = vmul.f32 %v1452, %v1498
      %v1634 = vmul.f32 %v1455, %v1499
      %v1635 = vmul.f32 %v1460, %v1500
      %v1636 = vmul.f32 %v1463, %v1501
      %v1637 = vadd.f32 %v1601, %v1619
      %v1638 = vadd.f32 %v1602, %v1620
      %v1639 = vadd.f32 %v1603, %v1621
      %v1640 = vadd.f32 %v1604, %v1622
      %v1641 = vadd.f32 %v1605, %v1623
      %v1642 = vadd.f32 %v1606, %v1624
      %v1643 = vadd.f32 %v1607, %v1625
      %v1644 = vadd.f32 %v1608, %v1626
      %v1645 = vadd.f32 %v1609, %v1627
      %v1646 = vadd.f32 %v1610, %v1628
      %v1647 = vadd.f32 %v1611, %v1629
      %v1648 = vadd.f32 %v1612, %v1630
      %v1649 = vadd.f32 %v1613, %v1631
      %v1650 = vadd.f32 %v1614, %v1632
      %v1651 = vadd.f32 %v1615, %v1633
      %v1652 = vadd.f32 %v1616, %v1634
      %v1653 = vadd.f32 %v1617, %v1635
      %v1654 = vadd.f32 %v1618, %v1636
      %v1655 = vpack.c.bf16 %v1638, %v1637
      %v1656 = vpack.c.bf16 %v1640, %v1639
      %v1657 = vpack.c.bf16 %v1642, %v1641
      %v1658 = vpack.c.bf16 %v1644, %v1643
      %v1659 = vpack.c.bf16 %v1646, %v1645
      %v1660 = vpack.c.bf16 %v1648, %v1647
      %v1661 = vpack.c.bf16 %v1650, %v1649
      %v1662 = vpack.c.bf16 %v1652, %v1651
      %v1663 = vpack.c.bf16 %v1654, %v1653
      %v1664 = vld [vmem:[%s5] sm:$0xff]
      %v1665 = vld [vmem:[%s5 + $0x8] sm:$0xff]
      %v1666 = vld [vmem:[%s5 + $0x10] sm:$0xff]
      %v1667 = vld [vmem:[%s5 + $0x18] sm:$0xff]
      %v1668 = vld [vmem:[%s5 + $0x20] sm:$0xff]
      %v1669 = vld [vmem:[%s5 + $0x28] sm:$0xff]
      %v1670 = vld [vmem:[%s5 + $0x30] sm:$0xff]
      %v1671 = vld [vmem:[%s5 + $0x38] sm:$0xff]
      %v1672 = vld [vmem:[%s5 + $0x40] sm:$0xff]
      %v1673 = vld [vmem:[%s5 + $0x48] sm:$0xff]
      %v1674 = vld [vmem:[%s5 + $0x50] sm:$0xff]
      %v1675 = vld [vmem:[%s5 + $0x58] sm:$0xff]
      %v1676 = vld [vmem:[%s5 + $0x60] sm:$0xff]
      %v1677 = vld [vmem:[%s5 + $0x68] sm:$0xff]
      %v1678 = vld [vmem:[%s5 + $0x70] sm:$0xff]
      %v1679 = vld [vmem:[%s5 + $0x78] sm:$0xff]
      %v1680 = vld [vmem:[%s5 + $0x80] sm:$0xff]
      %v1681 = vld [vmem:[%s5 + $0x88] sm:$0xff]
      %v1682 = vld [vmem:[%s5 + $0x90] sm:$0xff]
      %v1683 = vld [vmem:[%s5 + $0x98] sm:$0xff]
      %v1684 = vld [vmem:[%s5 + $0xa0] sm:$0xff]
      %v1685 = vld [vmem:[%s5 + $0xa8] sm:$0xff]
      %v1686 = vld [vmem:[%s5 + $0xb0] sm:$0xff]
      %v1687 = vld [vmem:[%s5 + $0xb8] sm:$0xff]
      %v1688 = vld [vmem:[%s5 + $0xc0] sm:$0xff]
      %v1689 = vld [vmem:[%s5 + $0xc8] sm:$0xff]
      %v1690 = vld [vmem:[%s5 + $0xd0] sm:$0xff]
      %v1691 = vld [vmem:[%s5 + $0xd8] sm:$0xff]
      %v1692 = vld [vmem:[%s5 + $0xe0] sm:$0xff]
      %v1693 = vld [vmem:[%s5 + $0xe8] sm:$0xff]
      %v1694 = vld [vmem:[%s5 + $0xf0] sm:$0xff]
      %v1695 = vld [vmem:[%s5 + $0xf8] sm:$0xff]
      %v1696 = vld [vmem:[%s6] sm:$0xff]
      %v1697 = vld [vmem:[%s6 + $0x8] sm:$0xff]
      %v1698 = vld [vmem:[%s6 + $0x10] sm:$0xff]
      %v1699 = vld [vmem:[%s6 + $0x18] sm:$0xff]
      %v1700 = vld [vmem:[%s6 + $0x20] sm:$0xff]
      %v1701 = vld [vmem:[%s6 + $0x28] sm:$0xff]
      %v1702 = vld [vmem:[%s6 + $0x30] sm:$0xff]
      %v1703 = vld [vmem:[%s6 + $0x38] sm:$0xff]
      %v1704 = vld [vmem:[%s6 + $0x40] sm:$0xff]
      %v1705 = vld [vmem:[%s6 + $0x48] sm:$0xff]
      %v1706 = vld [vmem:[%s6 + $0x50] sm:$0xff]
      %v1707 = vld [vmem:[%s6 + $0x58] sm:$0xff]
      %v1708 = vld [vmem:[%s6 + $0x60] sm:$0xff]
      %v1709 = vld [vmem:[%s6 + $0x68] sm:$0xff]
      %v1710 = vld [vmem:[%s6 + $0x70] sm:$0xff]
      %v1711 = vld [vmem:[%s6 + $0x78] sm:$0xff]
      %v1712 = vld [vmem:[%s6 + $0x80] sm:$0xff]
      %v1713 = vld [vmem:[%s6 + $0x88] sm:$0xff]
      %v1714 = vld [vmem:[%s6 + $0x90] sm:$0xff]
      %v1715 = vld [vmem:[%s6 + $0x98] sm:$0xff]
      %v1716 = vld [vmem:[%s6 + $0xa0] sm:$0xff]
      %v1717 = vld [vmem:[%s6 + $0xa8] sm:$0xff]
      %v1718 = vld [vmem:[%s6 + $0xb0] sm:$0xff]
      %v1719 = vld [vmem:[%s6 + $0xb8] sm:$0xff]
      %v1720 = vld [vmem:[%s6 + $0xc0] sm:$0xff]
      %v1721 = vld [vmem:[%s6 + $0xc8] sm:$0xff]
      %v1722 = vld [vmem:[%s6 + $0xd0] sm:$0xff]
      %v1723 = vld [vmem:[%s6 + $0xd8] sm:$0xff]
      %v1724 = vld [vmem:[%s6 + $0xe0] sm:$0xff]
      %v1725 = vld [vmem:[%s6 + $0xe8] sm:$0xff]
      %v1726 = vld [vmem:[%s6 + $0xf0] sm:$0xff]
      %v1727 = vld [vmem:[%s6 + $0xf8] sm:$0xff]
      %v1760 = vunpack.c.l.b16 %v1696
      %v1761 = vunpack.c.h.b16 %v1696
      %v1762 = vunpack.c.l.b16 %v1697
      %v1763 = vunpack.c.h.b16 %v1697
      %v1764 = vunpack.c.l.b16 %v1698
      %v1765 = vunpack.c.h.b16 %v1698
      %v1766 = vunpack.c.l.b16 %v1699
      %v1767 = vunpack.c.h.b16 %v1699
      %v1768 = vunpack.c.l.b16 %v1700
      %v1769 = vunpack.c.h.b16 %v1700
      %v1770 = vunpack.c.l.b16 %v1701
      %v1771 = vunpack.c.h.b16 %v1701
      %v1772 = vunpack.c.l.b16 %v1702
      %v1773 = vunpack.c.h.b16 %v1702
      %v1774 = vunpack.c.l.b16 %v1703
      %v1775 = vunpack.c.h.b16 %v1703
      %v1776 = vunpack.c.l.b16 %v1704
      %v1777 = vunpack.c.h.b16 %v1704
      %v1778 = vunpack.c.l.b16 %v1705
      %v1779 = vunpack.c.h.b16 %v1705
      %v1780 = vunpack.c.l.b16 %v1706
      %v1781 = vunpack.c.h.b16 %v1706
      %v1782 = vunpack.c.l.b16 %v1707
      %v1783 = vunpack.c.h.b16 %v1707
      %v1784 = vunpack.c.l.b16 %v1708
      %v1785 = vunpack.c.h.b16 %v1708
      %v1786 = vunpack.c.l.b16 %v1709
      %v1787 = vunpack.c.h.b16 %v1709
      %v1788 = vunpack.c.l.b16 %v1710
      %v1789 = vunpack.c.h.b16 %v1710
      %v1790 = vunpack.c.l.b16 %v1711
      %v1791 = vunpack.c.h.b16 %v1711
      %v1792 = vunpack.c.l.b16 %v1712
      %v1793 = vunpack.c.h.b16 %v1712
      %v1794 = vunpack.c.l.b16 %v1713
      %v1795 = vunpack.c.h.b16 %v1713
      %v1796 = vunpack.c.l.b16 %v1714
      %v1797 = vunpack.c.h.b16 %v1714
      %v1798 = vunpack.c.l.b16 %v1715
      %v1799 = vunpack.c.h.b16 %v1715
      %v1800 = vunpack.c.l.b16 %v1716
      %v1801 = vunpack.c.h.b16 %v1716
      %v1802 = vunpack.c.l.b16 %v1717
      %v1803 = vunpack.c.h.b16 %v1717
      %v1804 = vunpack.c.l.b16 %v1718
      %v1805 = vunpack.c.h.b16 %v1718
      %v1806 = vunpack.c.l.b16 %v1719
      %v1807 = vunpack.c.h.b16 %v1719
      %v1808 = vunpack.c.l.b16 %v1720
      %v1809 = vunpack.c.h.b16 %v1720
      %v1810 = vunpack.c.l.b16 %v1721
      %v1811 = vunpack.c.h.b16 %v1721
      %v1812 = vunpack.c.l.b16 %v1722
      %v1813 = vunpack.c.h.b16 %v1722
      %v1814 = vunpack.c.l.b16 %v1723
      %v1815 = vunpack.c.h.b16 %v1723
      %v1816 = vunpack.c.l.b16 %v1724
      %v1817 = vunpack.c.h.b16 %v1724
      %v1818 = vunpack.c.l.b16 %v1725
      %v1819 = vunpack.c.h.b16 %v1725
      %v1820 = vunpack.c.l.b16 %v1726
      %v1821 = vunpack.c.h.b16 %v1726
      %v1822 = vunpack.c.l.b16 %v1727
      %v1823 = vunpack.c.h.b16 %v1727
      %v1824 = vpack.c.b16 %v1762, %v1760
      %v1825 = vpack.c.b16 %v1763, %v1761
      %v1826 = vpack.c.b16 %v1766, %v1764
      %v1827 = vpack.c.b16 %v1767, %v1765
      %v1828 = vpack.c.b16 %v1770, %v1768
      %v1829 = vpack.c.b16 %v1771, %v1769
      %v1830 = vpack.c.b16 %v1774, %v1772
      %v1831 = vpack.c.b16 %v1775, %v1773
      %v1832 = vpack.c.b16 %v1778, %v1776
      %v1833 = vpack.c.b16 %v1779, %v1777
      %v1834 = vpack.c.b16 %v1782, %v1780
      %v1835 = vpack.c.b16 %v1783, %v1781
      %v1836 = vpack.c.b16 %v1786, %v1784
      %v1837 = vpack.c.b16 %v1787, %v1785
      %v1838 = vpack.c.b16 %v1790, %v1788
      %v1839 = vpack.c.b16 %v1791, %v1789
      %v1840 = vpack.c.b16 %v1794, %v1792
      %v1841 = vpack.c.b16 %v1795, %v1793
      %v1842 = vpack.c.b16 %v1798, %v1796
      %v1843 = vpack.c.b16 %v1799, %v1797
      %v1844 = vpack.c.b16 %v1802, %v1800
      %v1845 = vpack.c.b16 %v1803, %v1801
      %v1846 = vpack.c.b16 %v1806, %v1804
      %v1847 = vpack.c.b16 %v1807, %v1805
      %v1848 = vpack.c.b16 %v1810, %v1808
      %v1849 = vpack.c.b16 %v1811, %v1809
      %v1850 = vpack.c.b16 %v1814, %v1812
      %v1851 = vpack.c.b16 %v1815, %v1813
      %v1852 = vpack.c.b16 %v1818, %v1816
      %v1853 = vpack.c.b16 %v1819, %v1817
      %v1854 = vpack.c.b16 %v1822, %v1820
      %v1855 = vpack.c.b16 %v1823, %v1821
      %vm1872 = vcmask 130048
      %v1874 = vsel %vm1872, %v1825, 0
      %v1877 = vsel %vm1872, %v1827, 0
      %v1880 = vsel %vm1872, %v1829, 0
      %v1883 = vsel %vm1872, %v1831, 0
      %v1886 = vsel %vm1872, %v1833, 0
      %v1889 = vsel %vm1872, %v1835, 0
      %v1892 = vsel %vm1872, %v1837, 0
      %v1895 = vsel %vm1872, %v1839, 0
      %v1898 = vsel %vm1872, %v1841, 0
      %v1901 = vsel %vm1872, %v1843, 0
      %v1904 = vsel %vm1872, %v1845, 0
      %v1907 = vsel %vm1872, %v1847, 0
      %v1910 = vsel %vm1872, %v1849, 0
      %v1913 = vsel %vm1872, %v1851, 0
      %v1916 = vsel %vm1872, %v1853, 0
      %v1919 = vsel %vm1872, %v1855, 0
      %1921 = vmatprep.subr.bf16.mxu0 0
      %1922 = vmatpush1.bf16.msra.mxu0 %v1662
      %1923 = vmatprep.subr.bf16.mxu0 0
      %1924 = vmatpush1.bf16.msra.mxu0 %v1661
      %1925 = vmatprep.subr.bf16.mxu0 0
      %1926 = vmatpush1.bf16.msra.mxu0 %v1660
      %1927 = vmatprep.subr.bf16.mxu0 0
      %1928 = vmatpush1.bf16.msra.mxu0 %v1659
      %1929 = vmatprep.subr.bf16.mxu0 0
      %1930 = vmatpush1.bf16.msra.mxu0 %v1658
      %1931 = vmatprep.subr.bf16.mxu0 0
      %1932 = vmatpush1.bf16.msra.mxu0 %v1657
      %1933 = vmatprep.subr.bf16.mxu0 0
      %1934 = vmatpush1.bf16.msra.mxu0 %v1656
      %1935 = vmatprep.subr.bf16.mxu0 0
      %1936 = vmatpush1.bf16.msra.mxu0 %v1655
      %1937 = vmatprep.subr.bf16.mxu0 0
      %1938 = vmatpush2.bf16.msra.mxu0 0
      %1939 = vmatprep.subr.bf16.mxu0 0
      %1940 = vmatpush2.bf16.msra.mxu0 0
      %1941 = vmatprep.subr.bf16.mxu0 0
      %1942 = vmatpush2.bf16.msra.mxu0 0
      %1943 = vmatprep.subr.bf16.mxu0 0
      %1944 = vmatpush2.bf16.msra.mxu0 0
      %1945 = vmatprep.subr.bf16.mxu0 0
      %1946 = vmatpush2.bf16.msra.mxu0 0
      %1947 = vmatprep.subr.bf16.mxu0 0
      %1948 = vmatpush2.bf16.msra.mxu0 0
      %1949 = vmatprep.subr.bf16.mxu0 0
      %1950 = vmatpush2.bf16.msra.mxu0 0
      %1951 = vmatprep.subr.bf16.mxu0 0
      %1952 = vmatpush2.bf16.msra.mxu0 %v1663
      %1953 = vmatprep.mubr.bf16.mxu0 %v1874
      %1954 = vmatmul.mubr.bf16.gmra.mxu0 %v1824
      %v1955 = vpop.f32.mrf.mxu0
      %v1956 = vadd.f32 0.0, %v1955
      %v1957 = vpop.f32.mrf.mxu0
      %v1958 = vpop.f32.mrf.mxu0
      %v1959 = vadd.f32 0.0, %v1958
      %v1960 = vpop.f32.mrf.mxu0
      %1961 = vmatprep.mubr.bf16.mxu0 %v1877
      %1962 = vmatmul.mubr.bf16.gmra.mxu0 %v1826
      %v1963 = vpop.f32.mrf.mxu0
      %v1964 = vadd.f32 0.0, %v1963
      %v1965 = vpop.f32.mrf.mxu0
      %v1966 = vpop.f32.mrf.mxu0
      %v1967 = vadd.f32 0.0, %v1966
      %v1968 = vpop.f32.mrf.mxu0
      %1969 = vmatprep.mubr.bf16.mxu0 %v1880
      %1970 = vmatmul.mubr.bf16.gmra.mxu0 %v1828
      %v1971 = vpop.f32.mrf.mxu0
      %v1972 = vadd.f32 0.0, %v1971
      %v1973 = vpop.f32.mrf.mxu0
      %v1974 = vpop.f32.mrf.mxu0
      %v1975 = vadd.f32 0.0, %v1974
      %v1976 = vpop.f32.mrf.mxu0
      %1977 = vmatprep.mubr.bf16.mxu0 %v1883
      %1978 = vmatmul.mubr.bf16.gmra.mxu0 %v1830
      %v1979 = vpop.f32.mrf.mxu0
      %v1980 = vadd.f32 0.0, %v1979
      %v1981 = vpop.f32.mrf.mxu0
      %v1982 = vpop.f32.mrf.mxu0
      %v1983 = vadd.f32 0.0, %v1982
      %v1984 = vpop.f32.mrf.mxu0
      %1985 = vmatprep.mubr.bf16.mxu0 %v1886
      %1986 = vmatmul.mubr.bf16.gmra.mxu0 %v1832
      %v1987 = vpop.f32.mrf.mxu0
      %v1988 = vadd.f32 0.0, %v1987
      %v1989 = vpop.f32.mrf.mxu0
      %v1990 = vpop.f32.mrf.mxu0
      %v1991 = vadd.f32 0.0, %v1990
      %v1992 = vpop.f32.mrf.mxu0
      %1993 = vmatprep.mubr.bf16.mxu0 %v1889
      %1994 = vmatmul.mubr.bf16.gmra.mxu0 %v1834
      %v1995 = vpop.f32.mrf.mxu0
      %v1996 = vadd.f32 0.0, %v1995
      %v1997 = vpop.f32.mrf.mxu0
      %v1998 = vpop.f32.mrf.mxu0
      %v1999 = vadd.f32 0.0, %v1998
      %v2000 = vpop.f32.mrf.mxu0
      %2001 = vmatprep.mubr.bf16.mxu0 %v1892
      %2002 = vmatmul.mubr.bf16.gmra.mxu0 %v1836
      %v2003 = vpop.f32.mrf.mxu0
      %v2004 = vadd.f32 0.0, %v2003
      %v2005 = vpop.f32.mrf.mxu0
      %v2006 = vpop.f32.mrf.mxu0
      %v2007 = vadd.f32 0.0, %v2006
      %v2008 = vpop.f32.mrf.mxu0
      %2009 = vmatprep.mubr.bf16.mxu0 %v1895
      %2010 = vmatmul.mubr.bf16.gmra.mxu0 %v1838
      %v2011 = vpop.f32.mrf.mxu0
      %v2012 = vadd.f32 0.0, %v2011
      %v2013 = vpop.f32.mrf.mxu0
      %v2014 = vpop.f32.mrf.mxu0
      %v2015 = vadd.f32 0.0, %v2014
      %v2016 = vpop.f32.mrf.mxu0
      %2017 = vmatprep.mubr.bf16.mxu0 %v1898
      %2018 = vmatmul.mubr.bf16.gmra.mxu0 %v1840
      %v2019 = vpop.f32.mrf.mxu0
      %v2020 = vadd.f32 0.0, %v2019
      %v2021 = vpop.f32.mrf.mxu0
      %v2022 = vpop.f32.mrf.mxu0
      %v2023 = vadd.f32 0.0, %v2022
      %v2024 = vpop.f32.mrf.mxu0
      %2025 = vmatprep.mubr.bf16.mxu0 %v1901
      %2026 = vmatmul.mubr.bf16.gmra.mxu0 %v1842
      %v2027 = vpop.f32.mrf.mxu0
      %v2028 = vadd.f32 0.0, %v2027
      %v2029 = vpop.f32.mrf.mxu0
      %v2030 = vpop.f32.mrf.mxu0
      %v2031 = vadd.f32 0.0, %v2030
      %v2032 = vpop.f32.mrf.mxu0
      %2033 = vmatprep.mubr.bf16.mxu0 %v1904
      %2034 = vmatmul.mubr.bf16.gmra.mxu0 %v1844
      %v2035 = vpop.f32.mrf.mxu0
      %v2036 = vadd.f32 0.0, %v2035
      %v2037 = vpop.f32.mrf.mxu0
      %v2038 = vpop.f32.mrf.mxu0
      %v2039 = vadd.f32 0.0, %v2038
      %v2040 = vpop.f32.mrf.mxu0
      %2041 = vmatprep.mubr.bf16.mxu0 %v1907
      %2042 = vmatmul.mubr.bf16.gmra.mxu0 %v1846
      %v2043 = vpop.f32.mrf.mxu0
      %v2044 = vadd.f32 0.0, %v2043
      %v2045 = vpop.f32.mrf.mxu0
      %v2046 = vpop.f32.mrf.mxu0
      %v2047 = vadd.f32 0.0, %v2046
      %v2048 = vpop.f32.mrf.mxu0
      %2049 = vmatprep.mubr.bf16.mxu0 %v1910
      %2050 = vmatmul.mubr.bf16.gmra.mxu0 %v1848
      %v2051 = vpop.f32.mrf.mxu0
      %v2052 = vadd.f32 0.0, %v2051
      %v2053 = vpop.f32.mrf.mxu0
      %v2054 = vpop.f32.mrf.mxu0
      %v2055 = vadd.f32 0.0, %v2054
      %v2056 = vpop.f32.mrf.mxu0
      %2057 = vmatprep.mubr.bf16.mxu0 %v1913
      %2058 = vmatmul.mubr.bf16.gmra.mxu0 %v1850
      %v2059 = vpop.f32.mrf.mxu0
      %v2060 = vadd.f32 0.0, %v2059
      %v2061 = vpop.f32.mrf.mxu0
      %v2062 = vpop.f32.mrf.mxu0
      %v2063 = vadd.f32 0.0, %v2062
      %v2064 = vpop.f32.mrf.mxu0
      %2065 = vmatprep.mubr.bf16.mxu0 %v1916
      %2066 = vmatmul.mubr.bf16.gmra.mxu0 %v1852
      %v2067 = vpop.f32.mrf.mxu0
      %v2068 = vadd.f32 0.0, %v2067
      %v2069 = vpop.f32.mrf.mxu0
      %v2070 = vpop.f32.mrf.mxu0
      %v2071 = vadd.f32 0.0, %v2070
      %v2072 = vpop.f32.mrf.mxu0
      %2073 = vmatprep.mubr.bf16.mxu0 %v1919
      %2074 = vmatmul.mubr.bf16.gmra.mxu0 %v1854
      %v2075 = vpop.f32.mrf.mxu0
      %v2076 = vadd.f32 0.0, %v2075
      %v2077 = vpop.f32.mrf.mxu0
      %v2078 = vpop.f32.mrf.mxu0
      %v2079 = vadd.f32 0.0, %v2078
      %v2080 = vpop.f32.mrf.mxu0
      %2081 = vdwg.mxu0
      %v2114 = vunpack.c.l.b16 %v1664
      %v2115 = vunpack.c.h.b16 %v1664
      %v2116 = vunpack.c.l.b16 %v1665
      %v2117 = vunpack.c.h.b16 %v1665
      %v2118 = vunpack.c.l.b16 %v1666
      %v2119 = vunpack.c.h.b16 %v1666
      %v2120 = vunpack.c.l.b16 %v1667
      %v2121 = vunpack.c.h.b16 %v1667
      %v2122 = vunpack.c.l.b16 %v1668
      %v2123 = vunpack.c.h.b16 %v1668
      %v2124 = vunpack.c.l.b16 %v1669
      %v2125 = vunpack.c.h.b16 %v1669
      %v2126 = vunpack.c.l.b16 %v1670
      %v2127 = vunpack.c.h.b16 %v1670
      %v2128 = vunpack.c.l.b16 %v1671
      %v2129 = vunpack.c.h.b16 %v1671
      %v2130 = vunpack.c.l.b16 %v1672
      %v2131 = vunpack.c.h.b16 %v1672
      %v2132 = vunpack.c.l.b16 %v1673
      %v2133 = vunpack.c.h.b16 %v1673
      %v2134 = vunpack.c.l.b16 %v1674
      %v2135 = vunpack.c.h.b16 %v1674
      %v2136 = vunpack.c.l.b16 %v1675
      %v2137 = vunpack.c.h.b16 %v1675
      %v2138 = vunpack.c.l.b16 %v1676
      %v2139 = vunpack.c.h.b16 %v1676
      %v2140 = vunpack.c.l.b16 %v1677
      %v2141 = vunpack.c.h.b16 %v1677
      %v2142 = vunpack.c.l.b16 %v1678
      %v2143 = vunpack.c.h.b16 %v1678
      %v2144 = vunpack.c.l.b16 %v1679
      %v2145 = vunpack.c.h.b16 %v1679
      %v2146 = vunpack.c.l.b16 %v1680
      %v2147 = vunpack.c.h.b16 %v1680
      %v2148 = vunpack.c.l.b16 %v1681
      %v2149 = vunpack.c.h.b16 %v1681
      %v2150 = vunpack.c.l.b16 %v1682
      %v2151 = vunpack.c.h.b16 %v1682
      %v2152 = vunpack.c.l.b16 %v1683
      %v2153 = vunpack.c.h.b16 %v1683
      %v2154 = vunpack.c.l.b16 %v1684
      %v2155 = vunpack.c.h.b16 %v1684
      %v2156 = vunpack.c.l.b16 %v1685
      %v2157 = vunpack.c.h.b16 %v1685
      %v2158 = vunpack.c.l.b16 %v1686
      %v2159 = vunpack.c.h.b16 %v1686
      %v2160 = vunpack.c.l.b16 %v1687
      %v2161 = vunpack.c.h.b16 %v1687
      %v2162 = vunpack.c.l.b16 %v1688
      %v2163 = vunpack.c.h.b16 %v1688
      %v2164 = vunpack.c.l.b16 %v1689
      %v2165 = vunpack.c.h.b16 %v1689
      %v2166 = vunpack.c.l.b16 %v1690
      %v2167 = vunpack.c.h.b16 %v1690
      %v2168 = vunpack.c.l.b16 %v1691
      %v2169 = vunpack.c.h.b16 %v1691
      %v2170 = vunpack.c.l.b16 %v1692
      %v2171 = vunpack.c.h.b16 %v1692
      %v2172 = vunpack.c.l.b16 %v1693
      %v2173 = vunpack.c.h.b16 %v1693
      %v2174 = vunpack.c.l.b16 %v1694
      %v2175 = vunpack.c.h.b16 %v1694
      %v2176 = vunpack.c.l.b16 %v1695
      %v2177 = vunpack.c.h.b16 %v1695
      %v2178 = vpack.c.b16 %v2116, %v2114
      %v2179 = vpack.c.b16 %v2117, %v2115
      %v2180 = vpack.c.b16 %v2120, %v2118
      %v2181 = vpack.c.b16 %v2121, %v2119
      %v2182 = vpack.c.b16 %v2124, %v2122
      %v2183 = vpack.c.b16 %v2125, %v2123
      %v2184 = vpack.c.b16 %v2128, %v2126
      %v2185 = vpack.c.b16 %v2129, %v2127
      %v2186 = vpack.c.b16 %v2132, %v2130
      %v2187 = vpack.c.b16 %v2133, %v2131
      %v2188 = vpack.c.b16 %v2136, %v2134
      %v2189 = vpack.c.b16 %v2137, %v2135
      %v2190 = vpack.c.b16 %v2140, %v2138
      %v2191 = vpack.c.b16 %v2141, %v2139
      %v2192 = vpack.c.b16 %v2144, %v2142
      %v2193 = vpack.c.b16 %v2145, %v2143
      %v2194 = vpack.c.b16 %v2148, %v2146
      %v2195 = vpack.c.b16 %v2149, %v2147
      %v2196 = vpack.c.b16 %v2152, %v2150
      %v2197 = vpack.c.b16 %v2153, %v2151
      %v2198 = vpack.c.b16 %v2156, %v2154
      %v2199 = vpack.c.b16 %v2157, %v2155
      %v2200 = vpack.c.b16 %v2160, %v2158
      %v2201 = vpack.c.b16 %v2161, %v2159
      %v2202 = vpack.c.b16 %v2164, %v2162
      %v2203 = vpack.c.b16 %v2165, %v2163
      %v2204 = vpack.c.b16 %v2168, %v2166
      %v2205 = vpack.c.b16 %v2169, %v2167
      %v2206 = vpack.c.b16 %v2172, %v2170
      %v2207 = vpack.c.b16 %v2173, %v2171
      %v2208 = vpack.c.b16 %v2176, %v2174
      %v2209 = vpack.c.b16 %v2177, %v2175
      %v2227 = vsel %vm1872, %v2179, 0
      %v2230 = vsel %vm1872, %v2181, 0
      %v2233 = vsel %vm1872, %v2183, 0
      %v2236 = vsel %vm1872, %v2185, 0
      %v2239 = vsel %vm1872, %v2187, 0
      %v2242 = vsel %vm1872, %v2189, 0
      %v2245 = vsel %vm1872, %v2191, 0
      %v2248 = vsel %vm1872, %v2193, 0
      %v2251 = vsel %vm1872, %v2195, 0
      %v2254 = vsel %vm1872, %v2197, 0
      %v2257 = vsel %vm1872, %v2199, 0
      %v2260 = vsel %vm1872, %v2201, 0
      %v2263 = vsel %vm1872, %v2203, 0
      %v2266 = vsel %vm1872, %v2205, 0
      %v2269 = vsel %vm1872, %v2207, 0
      %v2272 = vsel %vm1872, %v2209, 0
      %2274 = vmatprep.subr.bf16.mxu0 0
      %2275 = vmatpush1.bf16.msra.mxu0 %v1599
      %2276 = vmatprep.subr.bf16.mxu0 0
      %2277 = vmatpush1.bf16.msra.mxu0 %v1598
      %2278 = vmatprep.subr.bf16.mxu0 0
      %2279 = vmatpush1.bf16.msra.mxu0 %v1597
      %2280 = vmatprep.subr.bf16.mxu0 0
      %2281 = vmatpush1.bf16.msra.mxu0 %v1596
      %2282 = vmatprep.subr.bf16.mxu0 0
      %2283 = vmatpush1.bf16.msra.mxu0 %v1595
      %2284 = vmatprep.subr.bf16.mxu0 0
      %2285 = vmatpush1.bf16.msra.mxu0 %v1594
      %2286 = vmatprep.subr.bf16.mxu0 0
      %2287 = vmatpush1.bf16.msra.mxu0 %v1593
      %2288 = vmatprep.subr.bf16.mxu0 0
      %2289 = vmatpush1.bf16.msra.mxu0 %v1592
      %2290 = vmatprep.subr.bf16.mxu0 0
      %2291 = vmatpush2.bf16.msra.mxu0 0
      %2292 = vmatprep.subr.bf16.mxu0 0
      %2293 = vmatpush2.bf16.msra.mxu0 0
      %2294 = vmatprep.subr.bf16.mxu0 0
      %2295 = vmatpush2.bf16.msra.mxu0 0
      %2296 = vmatprep.subr.bf16.mxu0 0
      %2297 = vmatpush2.bf16.msra.mxu0 0
      %2298 = vmatprep.subr.bf16.mxu0 0
      %2299 = vmatpush2.bf16.msra.mxu0 0
      %2300 = vmatprep.subr.bf16.mxu0 0
      %2301 = vmatpush2.bf16.msra.mxu0 0
      %2302 = vmatprep.subr.bf16.mxu0 0
      %2303 = vmatpush2.bf16.msra.mxu0 0
      %2304 = vmatprep.subr.bf16.mxu0 0
      %2305 = vmatpush2.bf16.msra.mxu0 %v1600
      %2306 = vmatprep.mubr.bf16.mxu0 %v2227
      %2307 = vmatmul.mubr.bf16.gmra.mxu0 %v2178
      %v2308 = vpop.f32.mrf.mxu0
      %v2309 = vadd.f32 %v1956, %v2308
      %v2310 = vpop.f32.mrf.mxu0
      %v2311 = vpop.f32.mrf.mxu0
      %v2312 = vadd.f32 %v1959, %v2311
      %v2313 = vpop.f32.mrf.mxu0
      %2314 = vmatprep.mubr.bf16.mxu0 %v2230
      %2315 = vmatmul.mubr.bf16.gmra.mxu0 %v2180
      %v2316 = vpop.f32.mrf.mxu0
      %v2317 = vadd.f32 %v1964, %v2316
      %v2318 = vpop.f32.mrf.mxu0
      %v2319 = vpop.f32.mrf.mxu0
      %v2320 = vadd.f32 %v1967, %v2319
      %v2321 = vpop.f32.mrf.mxu0
      %2322 = vmatprep.mubr.bf16.mxu0 %v2233
      %2323 = vmatmul.mubr.bf16.gmra.mxu0 %v2182
      %v2324 = vpop.f32.mrf.mxu0
      %v2325 = vadd.f32 %v1972, %v2324
      %v2326 = vpop.f32.mrf.mxu0
      %v2327 = vpop.f32.mrf.mxu0
      %v2328 = vadd.f32 %v1975, %v2327
      %v2329 = vpop.f32.mrf.mxu0
      %2330 = vmatprep.mubr.bf16.mxu0 %v2236
      %2331 = vmatmul.mubr.bf16.gmra.mxu0 %v2184
      %v2332 = vpop.f32.mrf.mxu0
      %v2333 = vadd.f32 %v1980, %v2332
      %v2334 = vpop.f32.mrf.mxu0
      %v2335 = vpop.f32.mrf.mxu0
      %v2336 = vadd.f32 %v1983, %v2335
      %v2337 = vpop.f32.mrf.mxu0
      %2338 = vmatprep.mubr.bf16.mxu0 %v2239
      %2339 = vmatmul.mubr.bf16.gmra.mxu0 %v2186
      %v2340 = vpop.f32.mrf.mxu0
      %v2341 = vadd.f32 %v1988, %v2340
      %v2342 = vpop.f32.mrf.mxu0
      %v2343 = vpop.f32.mrf.mxu0
      %v2344 = vadd.f32 %v1991, %v2343
      %v2345 = vpop.f32.mrf.mxu0
      %2346 = vmatprep.mubr.bf16.mxu0 %v2242
      %2347 = vmatmul.mubr.bf16.gmra.mxu0 %v2188
      %v2348 = vpop.f32.mrf.mxu0
      %v2349 = vadd.f32 %v1996, %v2348
      %v2350 = vpop.f32.mrf.mxu0
      %v2351 = vpop.f32.mrf.mxu0
      %v2352 = vadd.f32 %v1999, %v2351
      %v2353 = vpop.f32.mrf.mxu0
      %2354 = vmatprep.mubr.bf16.mxu0 %v2245
      %2355 = vmatmul.mubr.bf16.gmra.mxu0 %v2190
      %v2356 = vpop.f32.mrf.mxu0
      %v2357 = vadd.f32 %v2004, %v2356
      %v2358 = vpop.f32.mrf.mxu0
      %v2359 = vpop.f32.mrf.mxu0
      %v2360 = vadd.f32 %v2007, %v2359
      %v2361 = vpop.f32.mrf.mxu0
      %2362 = vmatprep.mubr.bf16.mxu0 %v2248
      %2363 = vmatmul.mubr.bf16.gmra.mxu0 %v2192
      %v2364 = vpop.f32.mrf.mxu0
      %v2365 = vadd.f32 %v2012, %v2364
      %v2366 = vpop.f32.mrf.mxu0
      %v2367 = vpop.f32.mrf.mxu0
      %v2368 = vadd.f32 %v2015, %v2367
      %v2369 = vpop.f32.mrf.mxu0
      %2370 = vmatprep.mubr.bf16.mxu0 %v2251
      %2371 = vmatmul.mubr.bf16.gmra.mxu0 %v2194
      %v2372 = vpop.f32.mrf.mxu0
      %v2373 = vadd.f32 %v2020, %v2372
      %v2374 = vpop.f32.mrf.mxu0
      %v2375 = vpop.f32.mrf.mxu0
      %v2376 = vadd.f32 %v2023, %v2375
      %v2377 = vpop.f32.mrf.mxu0
      %2378 = vmatprep.mubr.bf16.mxu0 %v2254
      %2379 = vmatmul.mubr.bf16.gmra.mxu0 %v2196
      %v2380 = vpop.f32.mrf.mxu0
      %v2381 = vadd.f32 %v2028, %v2380
      %v2382 = vpop.f32.mrf.mxu0
      %v2383 = vpop.f32.mrf.mxu0
      %v2384 = vadd.f32 %v2031, %v2383
      %v2385 = vpop.f32.mrf.mxu0
      %2386 = vmatprep.mubr.bf16.mxu0 %v2257
      %2387 = vmatmul.mubr.bf16.gmra.mxu0 %v2198
      %v2388 = vpop.f32.mrf.mxu0
      %v2389 = vadd.f32 %v2036, %v2388
      %v2390 = vpop.f32.mrf.mxu0
      %v2391 = vpop.f32.mrf.mxu0
      %v2392 = vadd.f32 %v2039, %v2391
      %v2393 = vpop.f32.mrf.mxu0
      %2394 = vmatprep.mubr.bf16.mxu0 %v2260
      %2395 = vmatmul.mubr.bf16.gmra.mxu0 %v2200
      %v2396 = vpop.f32.mrf.mxu0
      %v2397 = vadd.f32 %v2044, %v2396
      %v2398 = vpop.f32.mrf.mxu0
      %v2399 = vpop.f32.mrf.mxu0
      %v2400 = vadd.f32 %v2047, %v2399
      %v2401 = vpop.f32.mrf.mxu0
      %2402 = vmatprep.mubr.bf16.mxu0 %v2263
      %2403 = vmatmul.mubr.bf16.gmra.mxu0 %v2202
      %v2404 = vpop.f32.mrf.mxu0
      %v2405 = vadd.f32 %v2052, %v2404
      %v2406 = vpop.f32.mrf.mxu0
      %v2407 = vpop.f32.mrf.mxu0
      %v2408 = vadd.f32 %v2055, %v2407
      %v2409 = vpop.f32.mrf.mxu0
      %2410 = vmatprep.mubr.bf16.mxu0 %v2266
      %2411 = vmatmul.mubr.bf16.gmra.mxu0 %v2204
      %v2412 = vpop.f32.mrf.mxu0
      %v2413 = vadd.f32 %v2060, %v2412
      %v2414 = vpop.f32.mrf.mxu0
      %v2415 = vpop.f32.mrf.mxu0
      %v2416 = vadd.f32 %v2063, %v2415
      %v2417 = vpop.f32.mrf.mxu0
      %2418 = vmatprep.mubr.bf16.mxu0 %v2269
      %2419 = vmatmul.mubr.bf16.gmra.mxu0 %v2206
      %v2420 = vpop.f32.mrf.mxu0
      %v2421 = vadd.f32 %v2068, %v2420
      %v2422 = vpop.f32.mrf.mxu0
      %v2423 = vpop.f32.mrf.mxu0
      %v2424 = vadd.f32 %v2071, %v2423
      %v2425 = vpop.f32.mrf.mxu0
      %2426 = vmatprep.mubr.bf16.mxu0 %v2272
      %2427 = vmatmul.mubr.bf16.gmra.mxu0 %v2208
      %v2428 = vpop.f32.mrf.mxu0
      %v2429 = vadd.f32 %v2076, %v2428
      %v2430 = vpop.f32.mrf.mxu0
      %v2431 = vpop.f32.mrf.mxu0
      %v2432 = vadd.f32 %v2079, %v2431
      %v2433 = vpop.f32.mrf.mxu0
      %2434 = vdwg.mxu0
      %v2435 = vadd.f32 %v496, %v2309
      %v2436 = vadd.f32 %v497, %v2312
      %v2437 = vadd.f32 %v498, %v2317
      %v2438 = vadd.f32 %v499, %v2320
      %v2439 = vadd.f32 %v500, %v2325
      %v2440 = vadd.f32 %v501, %v2328
      %v2441 = vadd.f32 %v502, %v2333
      %v2442 = vadd.f32 %v503, %v2336
      %v2443 = vadd.f32 %v504, %v2341
      %v2444 = vadd.f32 %v505, %v2344
      %v2445 = vadd.f32 %v506, %v2349
      %v2446 = vadd.f32 %v507, %v2352
      %v2447 = vadd.f32 %v508, %v2357
      %v2448 = vadd.f32 %v509, %v2360
      %v2449 = vadd.f32 %v510, %v2365
      %v2450 = vadd.f32 %v511, %v2368
      %v2451 = vadd.f32 %v512, %v2373
      %v2452 = vadd.f32 %v513, %v2376
      %v2453 = vadd.f32 %v514, %v2381
      %v2454 = vadd.f32 %v515, %v2384
      %v2455 = vadd.f32 %v516, %v2389
      %v2456 = vadd.f32 %v517, %v2392
      %v2457 = vadd.f32 %v518, %v2397
      %v2458 = vadd.f32 %v519, %v2400
      %v2459 = vadd.f32 %v520, %v2405
      %v2460 = vadd.f32 %v521, %v2408
      %v2461 = vadd.f32 %v522, %v2413
      %v2462 = vadd.f32 %v523, %v2416
      %v2463 = vadd.f32 %v524, %v2421
      %v2464 = vadd.f32 %v525, %v2424
      %v2465 = vadd.f32 %v526, %v2429
      %v2466 = vadd.f32 %v527, %v2432
      %v2467 = vld [vmem:[%s9] sm:$0x1]
      %v2468 = vld [vmem:[%s10] sm:$0x1]
      %v2469 = vsel %vm530, %v2435, 0.0
      %2470 = vadd.xlane.f32.xlu0 %v2469
      %v2471 = vpop.xlane.xlu0 %2470
      %v2472 = vsel %vm530, %v2436, 0.0
      %2473 = vadd.xlane.f32.xlu0 %v2472
      %v2474 = vpop.xlane.xlu0 %2473
      %v2475 = vsel %vm530, %v2437, 0.0
      %2476 = vadd.xlane.f32.xlu0 %v2475
      %v2477 = vpop.xlane.xlu0 %2476
      %v2478 = vsel %vm530, %v2438, 0.0
      %2479 = vadd.xlane.f32.xlu0 %v2478
      %v2480 = vpop.xlane.xlu0 %2479
      %v2481 = vsel %vm530, %v2439, 0.0
      %2482 = vadd.xlane.f32.xlu0 %v2481
      %v2483 = vpop.xlane.xlu0 %2482
      %v2484 = vsel %vm530, %v2440, 0.0
      %2485 = vadd.xlane.f32.xlu0 %v2484
      %v2486 = vpop.xlane.xlu0 %2485
      %v2487 = vsel %vm530, %v2441, 0.0
      %2488 = vadd.xlane.f32.xlu0 %v2487
      %v2489 = vpop.xlane.xlu0 %2488
      %v2490 = vsel %vm530, %v2442, 0.0
      %2491 = vadd.xlane.f32.xlu0 %v2490
      %v2492 = vpop.xlane.xlu0 %2491
      %v2493 = vsel %vm530, %v2443, 0.0
      %2494 = vadd.xlane.f32.xlu0 %v2493
      %v2495 = vpop.xlane.xlu0 %2494
      %v2496 = vsel %vm530, %v2444, 0.0
      %2497 = vadd.xlane.f32.xlu0 %v2496
      %v2498 = vpop.xlane.xlu0 %2497
      %v2499 = vsel %vm530, %v2445, 0.0
      %2500 = vadd.xlane.f32.xlu0 %v2499
      %v2501 = vpop.xlane.xlu0 %2500
      %v2502 = vsel %vm530, %v2446, 0.0
      %2503 = vadd.xlane.f32.xlu0 %v2502
      %v2504 = vpop.xlane.xlu0 %2503
      %v2505 = vsel %vm530, %v2447, 0.0
      %2506 = vadd.xlane.f32.xlu0 %v2505
      %v2507 = vpop.xlane.xlu0 %2506
      %v2508 = vsel %vm530, %v2448, 0.0
      %2509 = vadd.xlane.f32.xlu0 %v2508
      %v2510 = vpop.xlane.xlu0 %2509
      %v2511 = vsel %vm530, %v2449, 0.0
      %2512 = vadd.xlane.f32.xlu0 %v2511
      %v2513 = vpop.xlane.xlu0 %2512
      %v2514 = vsel %vm530, %v2450, 0.0
      %2515 = vadd.xlane.f32.xlu0 %v2514
      %v2516 = vpop.xlane.xlu0 %2515
      %v2517 = vsel %vm530, %v2451, 0.0
      %2518 = vadd.xlane.f32.xlu0 %v2517
      %v2519 = vpop.xlane.xlu0 %2518
      %v2520 = vsel %vm530, %v2452, 0.0
      %2521 = vadd.xlane.f32.xlu0 %v2520
      %v2522 = vpop.xlane.xlu0 %2521
      %v2523 = vsel %vm530, %v2453, 0.0
      %2524 = vadd.xlane.f32.xlu0 %v2523
      %v2525 = vpop.xlane.xlu0 %2524
      %v2526 = vsel %vm530, %v2454, 0.0
      %2527 = vadd.xlane.f32.xlu0 %v2526
      %v2528 = vpop.xlane.xlu0 %2527
      %v2529 = vsel %vm530, %v2455, 0.0
      %2530 = vadd.xlane.f32.xlu0 %v2529
      %v2531 = vpop.xlane.xlu0 %2530
      %v2532 = vsel %vm530, %v2456, 0.0
      %2533 = vadd.xlane.f32.xlu0 %v2532
      %v2534 = vpop.xlane.xlu0 %2533
      %v2535 = vsel %vm530, %v2457, 0.0
      %2536 = vadd.xlane.f32.xlu0 %v2535
      %v2537 = vpop.xlane.xlu0 %2536
      %v2538 = vsel %vm530, %v2458, 0.0
      %2539 = vadd.xlane.f32.xlu0 %v2538
      %v2540 = vpop.xlane.xlu0 %2539
      %v2541 = vsel %vm530, %v2459, 0.0
      %2542 = vadd.xlane.f32.xlu0 %v2541
      %v2543 = vpop.xlane.xlu0 %2542
      %v2544 = vsel %vm530, %v2460, 0.0
      %2545 = vadd.xlane.f32.xlu0 %v2544
      %v2546 = vpop.xlane.xlu0 %2545
      %v2547 = vsel %vm530, %v2461, 0.0
      %2548 = vadd.xlane.f32.xlu0 %v2547
      %v2549 = vpop.xlane.xlu0 %2548
      %v2550 = vsel %vm530, %v2462, 0.0
      %2551 = vadd.xlane.f32.xlu0 %v2550
      %v2552 = vpop.xlane.xlu0 %2551
      %v2553 = vsel %vm530, %v2463, 0.0
      %2554 = vadd.xlane.f32.xlu0 %v2553
      %v2555 = vpop.xlane.xlu0 %2554
      %v2556 = vsel %vm530, %v2464, 0.0
      %2557 = vadd.xlane.f32.xlu0 %v2556
      %v2558 = vpop.xlane.xlu0 %2557
      %v2559 = vsel %vm530, %v2465, 0.0
      %2560 = vadd.xlane.f32.xlu0 %v2559
      %v2561 = vpop.xlane.xlu0 %2560
      %v2562 = vsel %vm530, %v2466, 0.0
      %2563 = vadd.xlane.f32.xlu0 %v2562
      %v2564 = vpop.xlane.xlu0 %2563
      %v2565 = vmul.f32 %v2471, %v627
      %v2566 = vmul.f32 %v2474, %v627
      %v2567 = vmul.f32 %v2477, %v627
      %v2568 = vmul.f32 %v2480, %v627
      %v2569 = vmul.f32 %v2483, %v627
      %v2570 = vmul.f32 %v2486, %v627
      %v2571 = vmul.f32 %v2489, %v627
      %v2572 = vmul.f32 %v2492, %v627
      %v2573 = vmul.f32 %v2495, %v627
      %v2574 = vmul.f32 %v2498, %v627
      %v2575 = vmul.f32 %v2501, %v627
      %v2576 = vmul.f32 %v2504, %v627
      %v2577 = vmul.f32 %v2507, %v627
      %v2578 = vmul.f32 %v2510, %v627
      %v2579 = vmul.f32 %v2513, %v627
      %v2580 = vmul.f32 %v2516, %v627
      %v2581 = vmul.f32 %v2519, %v627
      %v2582 = vmul.f32 %v2522, %v627
      %v2583 = vmul.f32 %v2525, %v627
      %v2584 = vmul.f32 %v2528, %v627
      %v2585 = vmul.f32 %v2531, %v627
      %v2586 = vmul.f32 %v2534, %v627
      %v2587 = vmul.f32 %v2537, %v627
      %v2588 = vmul.f32 %v2540, %v627
      %v2589 = vmul.f32 %v2543, %v627
      %v2590 = vmul.f32 %v2546, %v627
      %v2591 = vmul.f32 %v2549, %v627
      %v2592 = vmul.f32 %v2552, %v627
      %v2593 = vmul.f32 %v2555, %v627
      %v2594 = vmul.f32 %v2558, %v627
      %v2595 = vmul.f32 %v2561, %v627
      %v2596 = vmul.f32 %v2564, %v627
      %v2597 = vsub.f32 %v2435, %v2565
      %v2598 = vsub.f32 %v2436, %v2566
      %v2599 = vsub.f32 %v2437, %v2567
      %v2600 = vsub.f32 %v2438, %v2568
      %v2601 = vsub.f32 %v2439, %v2569
      %v2602 = vsub.f32 %v2440, %v2570
      %v2603 = vsub.f32 %v2441, %v2571
      %v2604 = vsub.f32 %v2442, %v2572
      %v2605 = vsub.f32 %v2443, %v2573
      %v2606 = vsub.f32 %v2444, %v2574
      %v2607 = vsub.f32 %v2445, %v2575
      %v2608 = vsub.f32 %v2446, %v2576
      %v2609 = vsub.f32 %v2447, %v2577
      %v2610 = vsub.f32 %v2448, %v2578
      %v2611 = vsub.f32 %v2449, %v2579
      %v2612 = vsub.f32 %v2450, %v2580
      %v2613 = vsub.f32 %v2451, %v2581
      %v2614 = vsub.f32 %v2452, %v2582
      %v2615 = vsub.f32 %v2453, %v2583
      %v2616 = vsub.f32 %v2454, %v2584
      %v2617 = vsub.f32 %v2455, %v2585
      %v2618 = vsub.f32 %v2456, %v2586
      %v2619 = vsub.f32 %v2457, %v2587
      %v2620 = vsub.f32 %v2458, %v2588
      %v2621 = vsub.f32 %v2459, %v2589
      %v2622 = vsub.f32 %v2460, %v2590
      %v2623 = vsub.f32 %v2461, %v2591
      %v2624 = vsub.f32 %v2462, %v2592
      %v2625 = vsub.f32 %v2463, %v2593
      %v2626 = vsub.f32 %v2464, %v2594
      %v2627 = vsub.f32 %v2465, %v2595
      %v2628 = vsub.f32 %v2466, %v2596
      %v2629 = vmul.f32 %v2597, %v2597
      %v2630 = vmul.f32 %v2598, %v2598
      %v2631 = vmul.f32 %v2599, %v2599
      %v2632 = vmul.f32 %v2600, %v2600
      %v2633 = vmul.f32 %v2601, %v2601
      %v2634 = vmul.f32 %v2602, %v2602
      %v2635 = vmul.f32 %v2603, %v2603
      %v2636 = vmul.f32 %v2604, %v2604
      %v2637 = vmul.f32 %v2605, %v2605
      %v2638 = vmul.f32 %v2606, %v2606
      %v2639 = vmul.f32 %v2607, %v2607
      %v2640 = vmul.f32 %v2608, %v2608
      %v2641 = vmul.f32 %v2609, %v2609
      %v2642 = vmul.f32 %v2610, %v2610
      %v2643 = vmul.f32 %v2611, %v2611
      %v2644 = vmul.f32 %v2612, %v2612
      %v2645 = vmul.f32 %v2613, %v2613
      %v2646 = vmul.f32 %v2614, %v2614
      %v2647 = vmul.f32 %v2615, %v2615
      %v2648 = vmul.f32 %v2616, %v2616
      %v2649 = vmul.f32 %v2617, %v2617
      %v2650 = vmul.f32 %v2618, %v2618
      %v2651 = vmul.f32 %v2619, %v2619
      %v2652 = vmul.f32 %v2620, %v2620
      %v2653 = vmul.f32 %v2621, %v2621
      %v2654 = vmul.f32 %v2622, %v2622
      %v2655 = vmul.f32 %v2623, %v2623
      %v2656 = vmul.f32 %v2624, %v2624
      %v2657 = vmul.f32 %v2625, %v2625
      %v2658 = vmul.f32 %v2626, %v2626
      %v2659 = vmul.f32 %v2627, %v2627
      %v2660 = vmul.f32 %v2628, %v2628
      %v2661 = vsel %vm530, %v2629, 0.0
      %2662 = vadd.xlane.f32.xlu0 %v2661
      %v2663 = vpop.xlane.xlu0 %2662
      %v2664 = vsel %vm530, %v2630, 0.0
      %2665 = vadd.xlane.f32.xlu0 %v2664
      %v2666 = vpop.xlane.xlu0 %2665
      %v2667 = vsel %vm530, %v2631, 0.0
      %2668 = vadd.xlane.f32.xlu0 %v2667
      %v2669 = vpop.xlane.xlu0 %2668
      %v2670 = vsel %vm530, %v2632, 0.0
      %2671 = vadd.xlane.f32.xlu0 %v2670
      %v2672 = vpop.xlane.xlu0 %2671
      %v2673 = vsel %vm530, %v2633, 0.0
      %2674 = vadd.xlane.f32.xlu0 %v2673
      %v2675 = vpop.xlane.xlu0 %2674
      %v2676 = vsel %vm530, %v2634, 0.0
      %2677 = vadd.xlane.f32.xlu0 %v2676
      %v2678 = vpop.xlane.xlu0 %2677
      %v2679 = vsel %vm530, %v2635, 0.0
      %2680 = vadd.xlane.f32.xlu0 %v2679
      %v2681 = vpop.xlane.xlu0 %2680
      %v2682 = vsel %vm530, %v2636, 0.0
      %2683 = vadd.xlane.f32.xlu0 %v2682
      %v2684 = vpop.xlane.xlu0 %2683
      %v2685 = vsel %vm530, %v2637, 0.0
      %2686 = vadd.xlane.f32.xlu0 %v2685
      %v2687 = vpop.xlane.xlu0 %2686
      %v2688 = vsel %vm530, %v2638, 0.0
      %2689 = vadd.xlane.f32.xlu0 %v2688
      %v2690 = vpop.xlane.xlu0 %2689
      %v2691 = vsel %vm530, %v2639, 0.0
      %2692 = vadd.xlane.f32.xlu0 %v2691
      %v2693 = vpop.xlane.xlu0 %2692
      %v2694 = vsel %vm530, %v2640, 0.0
      %2695 = vadd.xlane.f32.xlu0 %v2694
      %v2696 = vpop.xlane.xlu0 %2695
      %v2697 = vsel %vm530, %v2641, 0.0
      %2698 = vadd.xlane.f32.xlu0 %v2697
      %v2699 = vpop.xlane.xlu0 %2698
      %v2700 = vsel %vm530, %v2642, 0.0
      %2701 = vadd.xlane.f32.xlu0 %v2700
      %v2702 = vpop.xlane.xlu0 %2701
      %v2703 = vsel %vm530, %v2643, 0.0
      %2704 = vadd.xlane.f32.xlu0 %v2703
      %v2705 = vpop.xlane.xlu0 %2704
      %v2706 = vsel %vm530, %v2644, 0.0
      %2707 = vadd.xlane.f32.xlu0 %v2706
      %v2708 = vpop.xlane.xlu0 %2707
      %v2709 = vsel %vm530, %v2645, 0.0
      %2710 = vadd.xlane.f32.xlu0 %v2709
      %v2711 = vpop.xlane.xlu0 %2710
      %v2712 = vsel %vm530, %v2646, 0.0
      %2713 = vadd.xlane.f32.xlu0 %v2712
      %v2714 = vpop.xlane.xlu0 %2713
      %v2715 = vsel %vm530, %v2647, 0.0
      %2716 = vadd.xlane.f32.xlu0 %v2715
      %v2717 = vpop.xlane.xlu0 %2716
      %v2718 = vsel %vm530, %v2648, 0.0
      %2719 = vadd.xlane.f32.xlu0 %v2718
      %v2720 = vpop.xlane.xlu0 %2719
      %v2721 = vsel %vm530, %v2649, 0.0
      %2722 = vadd.xlane.f32.xlu0 %v2721
      %v2723 = vpop.xlane.xlu0 %2722
      %v2724 = vsel %vm530, %v2650, 0.0
      %2725 = vadd.xlane.f32.xlu0 %v2724
      %v2726 = vpop.xlane.xlu0 %2725
      %v2727 = vsel %vm530, %v2651, 0.0
      %2728 = vadd.xlane.f32.xlu0 %v2727
      %v2729 = vpop.xlane.xlu0 %2728
      %v2730 = vsel %vm530, %v2652, 0.0
      %2731 = vadd.xlane.f32.xlu0 %v2730
      %v2732 = vpop.xlane.xlu0 %2731
      %v2733 = vsel %vm530, %v2653, 0.0
      %2734 = vadd.xlane.f32.xlu0 %v2733
      %v2735 = vpop.xlane.xlu0 %2734
      %v2736 = vsel %vm530, %v2654, 0.0
      %2737 = vadd.xlane.f32.xlu0 %v2736
      %v2738 = vpop.xlane.xlu0 %2737
      %v2739 = vsel %vm530, %v2655, 0.0
      %2740 = vadd.xlane.f32.xlu0 %v2739
      %v2741 = vpop.xlane.xlu0 %2740
      %v2742 = vsel %vm530, %v2656, 0.0
      %2743 = vadd.xlane.f32.xlu0 %v2742
      %v2744 = vpop.xlane.xlu0 %2743
      %v2745 = vsel %vm530, %v2657, 0.0
      %2746 = vadd.xlane.f32.xlu0 %v2745
      %v2747 = vpop.xlane.xlu0 %2746
      %v2748 = vsel %vm530, %v2658, 0.0
      %2749 = vadd.xlane.f32.xlu0 %v2748
      %v2750 = vpop.xlane.xlu0 %2749
      %v2751 = vsel %vm530, %v2659, 0.0
      %2752 = vadd.xlane.f32.xlu0 %v2751
      %v2753 = vpop.xlane.xlu0 %2752
      %v2754 = vsel %vm530, %v2660, 0.0
      %2755 = vadd.xlane.f32.xlu0 %v2754
      %v2756 = vpop.xlane.xlu0 %2755
      %v2757 = vmul.f32 %v2663, %v627
      %v2758 = vmul.f32 %v2666, %v627
      %v2759 = vmul.f32 %v2669, %v627
      %v2760 = vmul.f32 %v2672, %v627
      %v2761 = vmul.f32 %v2675, %v627
      %v2762 = vmul.f32 %v2678, %v627
      %v2763 = vmul.f32 %v2681, %v627
      %v2764 = vmul.f32 %v2684, %v627
      %v2765 = vmul.f32 %v2687, %v627
      %v2766 = vmul.f32 %v2690, %v627
      %v2767 = vmul.f32 %v2693, %v627
      %v2768 = vmul.f32 %v2696, %v627
      %v2769 = vmul.f32 %v2699, %v627
      %v2770 = vmul.f32 %v2702, %v627
      %v2771 = vmul.f32 %v2705, %v627
      %v2772 = vmul.f32 %v2708, %v627
      %v2773 = vmul.f32 %v2711, %v627
      %v2774 = vmul.f32 %v2714, %v627
      %v2775 = vmul.f32 %v2717, %v627
      %v2776 = vmul.f32 %v2720, %v627
      %v2777 = vmul.f32 %v2723, %v627
      %v2778 = vmul.f32 %v2726, %v627
      %v2779 = vmul.f32 %v2729, %v627
      %v2780 = vmul.f32 %v2732, %v627
      %v2781 = vmul.f32 %v2735, %v627
      %v2782 = vmul.f32 %v2738, %v627
      %v2783 = vmul.f32 %v2741, %v627
      %v2784 = vmul.f32 %v2744, %v627
      %v2785 = vmul.f32 %v2747, %v627
      %v2786 = vmul.f32 %v2750, %v627
      %v2787 = vmul.f32 %v2753, %v627
      %v2788 = vmul.f32 %v2756, %v627
      %v2789 = vadd.f32 %v2757, 1e-05
      %v2790 = vadd.f32 %v2758, 1e-05
      %v2791 = vadd.f32 %v2759, 1e-05
      %v2792 = vadd.f32 %v2760, 1e-05
      %v2793 = vadd.f32 %v2761, 1e-05
      %v2794 = vadd.f32 %v2762, 1e-05
      %v2795 = vadd.f32 %v2763, 1e-05
      %v2796 = vadd.f32 %v2764, 1e-05
      %v2797 = vadd.f32 %v2765, 1e-05
      %v2798 = vadd.f32 %v2766, 1e-05
      %v2799 = vadd.f32 %v2767, 1e-05
      %v2800 = vadd.f32 %v2768, 1e-05
      %v2801 = vadd.f32 %v2769, 1e-05
      %v2802 = vadd.f32 %v2770, 1e-05
      %v2803 = vadd.f32 %v2771, 1e-05
      %v2804 = vadd.f32 %v2772, 1e-05
      %v2805 = vadd.f32 %v2773, 1e-05
      %v2806 = vadd.f32 %v2774, 1e-05
      %v2807 = vadd.f32 %v2775, 1e-05
      %v2808 = vadd.f32 %v2776, 1e-05
      %v2809 = vadd.f32 %v2777, 1e-05
      %v2810 = vadd.f32 %v2778, 1e-05
      %v2811 = vadd.f32 %v2779, 1e-05
      %v2812 = vadd.f32 %v2780, 1e-05
      %v2813 = vadd.f32 %v2781, 1e-05
      %v2814 = vadd.f32 %v2782, 1e-05
      %v2815 = vadd.f32 %v2783, 1e-05
      %v2816 = vadd.f32 %v2784, 1e-05
      %v2817 = vadd.f32 %v2785, 1e-05
      %v2818 = vadd.f32 %v2786, 1e-05
      %v2819 = vadd.f32 %v2787, 1e-05
      %v2820 = vadd.f32 %v2788, 1e-05
      %v2821 = vrsqrt.pop %v2789
      %v2822 = vrsqrt.pop %v2790
      %v2823 = vrsqrt.pop %v2791
      %v2824 = vrsqrt.pop %v2792
      %v2825 = vrsqrt.pop %v2793
      %v2826 = vrsqrt.pop %v2794
      %v2827 = vrsqrt.pop %v2795
      %v2828 = vrsqrt.pop %v2796
      %v2829 = vrsqrt.pop %v2797
      %v2830 = vrsqrt.pop %v2798
      %v2831 = vrsqrt.pop %v2799
      %v2832 = vrsqrt.pop %v2800
      %v2833 = vrsqrt.pop %v2801
      %v2834 = vrsqrt.pop %v2802
      %v2835 = vrsqrt.pop %v2803
      %v2836 = vrsqrt.pop %v2804
      %v2837 = vrsqrt.pop %v2805
      %v2838 = vrsqrt.pop %v2806
      %v2839 = vrsqrt.pop %v2807
      %v2840 = vrsqrt.pop %v2808
      %v2841 = vrsqrt.pop %v2809
      %v2842 = vrsqrt.pop %v2810
      %v2843 = vrsqrt.pop %v2811
      %v2844 = vrsqrt.pop %v2812
      %v2845 = vrsqrt.pop %v2813
      %v2846 = vrsqrt.pop %v2814
      %v2847 = vrsqrt.pop %v2815
      %v2848 = vrsqrt.pop %v2816
      %v2849 = vrsqrt.pop %v2817
      %v2850 = vrsqrt.pop %v2818
      %v2851 = vrsqrt.pop %v2819
      %v2852 = vrsqrt.pop %v2820
      %v2853 = vmul.f32 %v2597, %v2821
      %v2854 = vmul.f32 %v2598, %v2822
      %v2855 = vmul.f32 %v2599, %v2823
      %v2856 = vmul.f32 %v2600, %v2824
      %v2857 = vmul.f32 %v2601, %v2825
      %v2858 = vmul.f32 %v2602, %v2826
      %v2859 = vmul.f32 %v2603, %v2827
      %v2860 = vmul.f32 %v2604, %v2828
      %v2861 = vmul.f32 %v2605, %v2829
      %v2862 = vmul.f32 %v2606, %v2830
      %v2863 = vmul.f32 %v2607, %v2831
      %v2864 = vmul.f32 %v2608, %v2832
      %v2865 = vmul.f32 %v2609, %v2833
      %v2866 = vmul.f32 %v2610, %v2834
      %v2867 = vmul.f32 %v2611, %v2835
      %v2868 = vmul.f32 %v2612, %v2836
      %v2869 = vmul.f32 %v2613, %v2837
      %v2870 = vmul.f32 %v2614, %v2838
      %v2871 = vmul.f32 %v2615, %v2839
      %v2872 = vmul.f32 %v2616, %v2840
      %v2873 = vmul.f32 %v2617, %v2841
      %v2874 = vmul.f32 %v2618, %v2842
      %v2875 = vmul.f32 %v2619, %v2843
      %v2876 = vmul.f32 %v2620, %v2844
      %v2877 = vmul.f32 %v2621, %v2845
      %v2878 = vmul.f32 %v2622, %v2846
      %v2879 = vmul.f32 %v2623, %v2847
      %v2880 = vmul.f32 %v2624, %v2848
      %v2881 = vmul.f32 %v2625, %v2849
      %v2882 = vmul.f32 %v2626, %v2850
      %v2883 = vmul.f32 %v2627, %v2851
      %v2884 = vmul.f32 %v2628, %v2852
      %v2886 = vlaneseq
      %v2887 = vshrl.u32 %v2886, 7
      %v2888 = vsub.s32 0, %v2887
      %v2889 = vrot.slane %v2467, %v2888
      %v2891 = vmul.f32 %v2853, %v2889
      %v2892 = vmul.f32 %v2854, %v2889
      %v2893 = vmul.f32 %v2855, %v2889
      %v2894 = vmul.f32 %v2856, %v2889
      %v2895 = vmul.f32 %v2857, %v2889
      %v2896 = vmul.f32 %v2858, %v2889
      %v2897 = vmul.f32 %v2859, %v2889
      %v2898 = vmul.f32 %v2860, %v2889
      %v2899 = vmul.f32 %v2861, %v2889
      %v2900 = vmul.f32 %v2862, %v2889
      %v2901 = vmul.f32 %v2863, %v2889
      %v2902 = vmul.f32 %v2864, %v2889
      %v2903 = vmul.f32 %v2865, %v2889
      %v2904 = vmul.f32 %v2866, %v2889
      %v2905 = vmul.f32 %v2867, %v2889
      %v2906 = vmul.f32 %v2868, %v2889
      %v2907 = vmul.f32 %v2869, %v2889
      %v2908 = vmul.f32 %v2870, %v2889
      %v2909 = vmul.f32 %v2871, %v2889
      %v2910 = vmul.f32 %v2872, %v2889
      %v2911 = vmul.f32 %v2873, %v2889
      %v2912 = vmul.f32 %v2874, %v2889
      %v2913 = vmul.f32 %v2875, %v2889
      %v2914 = vmul.f32 %v2876, %v2889
      %v2915 = vmul.f32 %v2877, %v2889
      %v2916 = vmul.f32 %v2878, %v2889
      %v2917 = vmul.f32 %v2879, %v2889
      %v2918 = vmul.f32 %v2880, %v2889
      %v2919 = vmul.f32 %v2881, %v2889
      %v2920 = vmul.f32 %v2882, %v2889
      %v2921 = vmul.f32 %v2883, %v2889
      %v2922 = vmul.f32 %v2884, %v2889
      %v2924 = vlaneseq
      %v2925 = vshrl.u32 %v2924, 7
      %v2926 = vsub.s32 0, %v2925
      %v2927 = vrot.slane %v2468, %v2926
      %v2929 = vadd.f32 %v2891, %v2927
      %v2930 = vadd.f32 %v2892, %v2927
      %v2931 = vadd.f32 %v2893, %v2927
      %v2932 = vadd.f32 %v2894, %v2927
      %v2933 = vadd.f32 %v2895, %v2927
      %v2934 = vadd.f32 %v2896, %v2927
      %v2935 = vadd.f32 %v2897, %v2927
      %v2936 = vadd.f32 %v2898, %v2927
      %v2937 = vadd.f32 %v2899, %v2927
      %v2938 = vadd.f32 %v2900, %v2927
      %v2939 = vadd.f32 %v2901, %v2927
      %v2940 = vadd.f32 %v2902, %v2927
      %v2941 = vadd.f32 %v2903, %v2927
      %v2942 = vadd.f32 %v2904, %v2927
      %v2943 = vadd.f32 %v2905, %v2927
      %v2944 = vadd.f32 %v2906, %v2927
      %v2945 = vadd.f32 %v2907, %v2927
      %v2946 = vadd.f32 %v2908, %v2927
      %v2947 = vadd.f32 %v2909, %v2927
      %v2948 = vadd.f32 %v2910, %v2927
      %v2949 = vadd.f32 %v2911, %v2927
      %v2950 = vadd.f32 %v2912, %v2927
      %v2951 = vadd.f32 %v2913, %v2927
      %v2952 = vadd.f32 %v2914, %v2927
      %v2953 = vadd.f32 %v2915, %v2927
      %v2954 = vadd.f32 %v2916, %v2927
      %v2955 = vadd.f32 %v2917, %v2927
      %v2956 = vadd.f32 %v2918, %v2927
      %v2957 = vadd.f32 %v2919, %v2927
      %v2958 = vadd.f32 %v2920, %v2927
      %v2959 = vadd.f32 %v2921, %v2927
      %v2960 = vadd.f32 %v2922, %v2927
      %v2961 = vpack.c.bf16 %v2930, %v2929
      %v2962 = vpack.c.bf16 %v2932, %v2931
      %v2963 = vpack.c.bf16 %v2934, %v2933
      %v2964 = vpack.c.bf16 %v2936, %v2935
      %v2965 = vpack.c.bf16 %v2938, %v2937
      %v2966 = vpack.c.bf16 %v2940, %v2939
      %v2967 = vpack.c.bf16 %v2942, %v2941
      %v2968 = vpack.c.bf16 %v2944, %v2943
      %v2969 = vpack.c.bf16 %v2946, %v2945
      %v2970 = vpack.c.bf16 %v2948, %v2947
      %v2971 = vpack.c.bf16 %v2950, %v2949
      %v2972 = vpack.c.bf16 %v2952, %v2951
      %v2973 = vpack.c.bf16 %v2954, %v2953
      %v2974 = vpack.c.bf16 %v2956, %v2955
      %v2975 = vpack.c.bf16 %v2958, %v2957
      %v2976 = vpack.c.bf16 %v2960, %v2959
      %v2977 = vld [vmem:[%s11] sm:$0x3]
      %v2978 = vld [vmem:[%s12] sm:$0x1]
      %v2980 = vlaneseq
      %v2981 = vshrl.u32 %v2980, 7
      %v2982 = vsub.s32 0, %v2981
      %v2983 = vrot.slane %v2978, %v2982
      %v2986 = vsel %vm530, %v2961, 0
      %v2989 = vsel %vm530, %v2962, 0
      %v2992 = vsel %vm530, %v2963, 0
      %v2995 = vsel %vm530, %v2964, 0
      %v2998 = vsel %vm530, %v2965, 0
      %v3001 = vsel %vm530, %v2966, 0
      %v3004 = vsel %vm530, %v2967, 0
      %v3007 = vsel %vm530, %v2968, 0
      %v3010 = vsel %vm530, %v2969, 0
      %v3013 = vsel %vm530, %v2970, 0
      %v3016 = vsel %vm530, %v2971, 0
      %v3019 = vsel %vm530, %v2972, 0
      %v3022 = vsel %vm530, %v2973, 0
      %v3025 = vsel %vm530, %v2974, 0
      %v3028 = vsel %vm530, %v2975, 0
      %v3031 = vsel %vm530, %v2976, 0
      %vm3033 = vcmask 1041408
      %v3035 = vsel %vm3033, %v2977, 0
      %3037 = vmatprep.subr.bf16.mxu0 0
      %3038 = vmatpush1.bf16.msra.mxu0 0
      %3039 = vmatprep.subr.bf16.mxu0 0
      %3040 = vmatpush1.bf16.msra.mxu0 0
      %3041 = vmatprep.subr.bf16.mxu0 0
      %3042 = vmatpush1.bf16.msra.mxu0 0
      %3043 = vmatprep.subr.bf16.mxu0 0
      %3044 = vmatpush1.bf16.msra.mxu0 0
      %3045 = vmatprep.subr.bf16.mxu0 0
      %3046 = vmatpush1.bf16.msra.mxu0 0
      %3047 = vmatprep.subr.bf16.mxu0 0
      %3048 = vmatpush1.bf16.msra.mxu0 0
      %3049 = vmatprep.subr.bf16.mxu0 0
      %3050 = vmatpush1.bf16.msra.mxu0 0
      %3051 = vmatprep.subr.bf16.mxu0 0
      %3052 = vmatpush1.bf16.msra.mxu0 %v3035
      %3053 = vmatprep.subr.bf16.mxu0 0
      %3054 = vmatpush2.bf16.msra.mxu0 0
      %3055 = vmatprep.subr.bf16.mxu0 0
      %3056 = vmatpush2.bf16.msra.mxu0 0
      %3057 = vmatprep.subr.bf16.mxu0 0
      %3058 = vmatpush2.bf16.msra.mxu0 0
      %3059 = vmatprep.subr.bf16.mxu0 0
      %3060 = vmatpush2.bf16.msra.mxu0 0
      %3061 = vmatprep.subr.bf16.mxu0 0
      %3062 = vmatpush2.bf16.msra.mxu0 0
      %3063 = vmatprep.subr.bf16.mxu0 0
      %3064 = vmatpush2.bf16.msra.mxu0 0
      %3065 = vmatprep.subr.bf16.mxu0 0
      %3066 = vmatpush2.bf16.msra.mxu0 0
      %3067 = vmatprep.subr.bf16.mxu0 0
      %3068 = vmatpush2.bf16.msra.mxu0 0
      %3069 = vmatprep.mubr.bf16.mxu0 0
      %3070 = vmatmul.mubr.bf16.gmra.mxu0 %v2986
      %v3071 = vpop.f32.mrf.mxu0
      %v3072 = vadd.f32 %v2983, %v3071
      %v3073 = vpop.f32.mrf.mxu0
      %v3074 = vpop.f32.mrf.mxu0
      %v3075 = vadd.f32 %v2983, %v3074
      %v3076 = vpop.f32.mrf.mxu0
      %3077 = vmatprep.mubr.bf16.mxu0 0
      %3078 = vmatmul.mubr.bf16.gmra.mxu0 %v2989
      %v3079 = vpop.f32.mrf.mxu0
      %v3080 = vadd.f32 %v2983, %v3079
      %v3081 = vpop.f32.mrf.mxu0
      %v3082 = vpop.f32.mrf.mxu0
      %v3083 = vadd.f32 %v2983, %v3082
      %v3084 = vpop.f32.mrf.mxu0
      %3085 = vmatprep.mubr.bf16.mxu0 0
      %3086 = vmatmul.mubr.bf16.gmra.mxu0 %v2992
      %v3087 = vpop.f32.mrf.mxu0
      %v3088 = vadd.f32 %v2983, %v3087
      %v3089 = vpop.f32.mrf.mxu0
      %v3090 = vpop.f32.mrf.mxu0
      %v3091 = vadd.f32 %v2983, %v3090
      %v3092 = vpop.f32.mrf.mxu0
      %3093 = vmatprep.mubr.bf16.mxu0 0
      %3094 = vmatmul.mubr.bf16.gmra.mxu0 %v2995
      %v3095 = vpop.f32.mrf.mxu0
      %v3096 = vadd.f32 %v2983, %v3095
      %v3097 = vpop.f32.mrf.mxu0
      %v3098 = vpop.f32.mrf.mxu0
      %v3099 = vadd.f32 %v2983, %v3098
      %v3100 = vpop.f32.mrf.mxu0
      %3101 = vmatprep.mubr.bf16.mxu0 0
      %3102 = vmatmul.mubr.bf16.gmra.mxu0 %v2998
      %v3103 = vpop.f32.mrf.mxu0
      %v3104 = vadd.f32 %v2983, %v3103
      %v3105 = vpop.f32.mrf.mxu0
      %v3106 = vpop.f32.mrf.mxu0
      %v3107 = vadd.f32 %v2983, %v3106
      %v3108 = vpop.f32.mrf.mxu0
      %3109 = vmatprep.mubr.bf16.mxu0 0
      %3110 = vmatmul.mubr.bf16.gmra.mxu0 %v3001
      %v3111 = vpop.f32.mrf.mxu0
      %v3112 = vadd.f32 %v2983, %v3111
      %v3113 = vpop.f32.mrf.mxu0
      %v3114 = vpop.f32.mrf.mxu0
      %v3115 = vadd.f32 %v2983, %v3114
      %v3116 = vpop.f32.mrf.mxu0
      %3117 = vmatprep.mubr.bf16.mxu0 0
      %3118 = vmatmul.mubr.bf16.gmra.mxu0 %v3004
      %v3119 = vpop.f32.mrf.mxu0
      %v3120 = vadd.f32 %v2983, %v3119
      %v3121 = vpop.f32.mrf.mxu0
      %v3122 = vpop.f32.mrf.mxu0
      %v3123 = vadd.f32 %v2983, %v3122
      %v3124 = vpop.f32.mrf.mxu0
      %3125 = vmatprep.mubr.bf16.mxu0 0
      %3126 = vmatmul.mubr.bf16.gmra.mxu0 %v3007
      %v3127 = vpop.f32.mrf.mxu0
      %v3128 = vadd.f32 %v2983, %v3127
      %v3129 = vpop.f32.mrf.mxu0
      %v3130 = vpop.f32.mrf.mxu0
      %v3131 = vadd.f32 %v2983, %v3130
      %v3132 = vpop.f32.mrf.mxu0
      %3133 = vmatprep.mubr.bf16.mxu0 0
      %3134 = vmatmul.mubr.bf16.gmra.mxu0 %v3010
      %v3135 = vpop.f32.mrf.mxu0
      %v3136 = vadd.f32 %v2983, %v3135
      %v3137 = vpop.f32.mrf.mxu0
      %v3138 = vpop.f32.mrf.mxu0
      %v3139 = vadd.f32 %v2983, %v3138
      %v3140 = vpop.f32.mrf.mxu0
      %3141 = vmatprep.mubr.bf16.mxu0 0
      %3142 = vmatmul.mubr.bf16.gmra.mxu0 %v3013
      %v3143 = vpop.f32.mrf.mxu0
      %v3144 = vadd.f32 %v2983, %v3143
      %v3145 = vpop.f32.mrf.mxu0
      %v3146 = vpop.f32.mrf.mxu0
      %v3147 = vadd.f32 %v2983, %v3146
      %v3148 = vpop.f32.mrf.mxu0
      %3149 = vmatprep.mubr.bf16.mxu0 0
      %3150 = vmatmul.mubr.bf16.gmra.mxu0 %v3016
      %v3151 = vpop.f32.mrf.mxu0
      %v3152 = vadd.f32 %v2983, %v3151
      %v3153 = vpop.f32.mrf.mxu0
      %v3154 = vpop.f32.mrf.mxu0
      %v3155 = vadd.f32 %v2983, %v3154
      %v3156 = vpop.f32.mrf.mxu0
      %3157 = vmatprep.mubr.bf16.mxu0 0
      %3158 = vmatmul.mubr.bf16.gmra.mxu0 %v3019
      %v3159 = vpop.f32.mrf.mxu0
      %v3160 = vadd.f32 %v2983, %v3159
      %v3161 = vpop.f32.mrf.mxu0
      %v3162 = vpop.f32.mrf.mxu0
      %v3163 = vadd.f32 %v2983, %v3162
      %v3164 = vpop.f32.mrf.mxu0
      %3165 = vmatprep.mubr.bf16.mxu0 0
      %3166 = vmatmul.mubr.bf16.gmra.mxu0 %v3022
      %v3167 = vpop.f32.mrf.mxu0
      %v3168 = vadd.f32 %v2983, %v3167
      %v3169 = vpop.f32.mrf.mxu0
      %v3170 = vpop.f32.mrf.mxu0
      %v3171 = vadd.f32 %v2983, %v3170
      %v3172 = vpop.f32.mrf.mxu0
      %3173 = vmatprep.mubr.bf16.mxu0 0
      %3174 = vmatmul.mubr.bf16.gmra.mxu0 %v3025
      %v3175 = vpop.f32.mrf.mxu0
      %v3176 = vadd.f32 %v2983, %v3175
      %v3177 = vpop.f32.mrf.mxu0
      %v3178 = vpop.f32.mrf.mxu0
      %v3179 = vadd.f32 %v2983, %v3178
      %v3180 = vpop.f32.mrf.mxu0
      %3181 = vmatprep.mubr.bf16.mxu0 0
      %3182 = vmatmul.mubr.bf16.gmra.mxu0 %v3028
      %v3183 = vpop.f32.mrf.mxu0
      %v3184 = vadd.f32 %v2983, %v3183
      %v3185 = vpop.f32.mrf.mxu0
      %v3186 = vpop.f32.mrf.mxu0
      %v3187 = vadd.f32 %v2983, %v3186
      %v3188 = vpop.f32.mrf.mxu0
      %3189 = vmatprep.mubr.bf16.mxu0 0
      %3190 = vmatmul.mubr.bf16.gmra.mxu0 %v3031
      %v3191 = vpop.f32.mrf.mxu0
      %v3192 = vadd.f32 %v2983, %v3191
      %v3193 = vpop.f32.mrf.mxu0
      %v3194 = vpop.f32.mrf.mxu0
      %v3195 = vadd.f32 %v2983, %v3194
      %v3196 = vpop.f32.mrf.mxu0
      %3197 = vdwg.mxu0
      %v3198 = vmul.f32 %v3072, 0.5
      %v3199 = vmul.f32 %v3075, 0.5
      %v3200 = vmul.f32 %v3080, 0.5
      %v3201 = vmul.f32 %v3083, 0.5
      %v3202 = vmul.f32 %v3088, 0.5
      %v3203 = vmul.f32 %v3091, 0.5
      %v3204 = vmul.f32 %v3096, 0.5
      %v3205 = vmul.f32 %v3099, 0.5
      %v3206 = vmul.f32 %v3104, 0.5
      %v3207 = vmul.f32 %v3107, 0.5
      %v3208 = vmul.f32 %v3112, 0.5
      %v3209 = vmul.f32 %v3115, 0.5
      %v3210 = vmul.f32 %v3120, 0.5
      %v3211 = vmul.f32 %v3123, 0.5
      %v3212 = vmul.f32 %v3128, 0.5
      %v3213 = vmul.f32 %v3131, 0.5
      %v3214 = vmul.f32 %v3136, 0.5
      %v3215 = vmul.f32 %v3139, 0.5
      %v3216 = vmul.f32 %v3144, 0.5
      %v3217 = vmul.f32 %v3147, 0.5
      %v3218 = vmul.f32 %v3152, 0.5
      %v3219 = vmul.f32 %v3155, 0.5
      %v3220 = vmul.f32 %v3160, 0.5
      %v3221 = vmul.f32 %v3163, 0.5
      %v3222 = vmul.f32 %v3168, 0.5
      %v3223 = vmul.f32 %v3171, 0.5
      %v3224 = vmul.f32 %v3176, 0.5
      %v3225 = vmul.f32 %v3179, 0.5
      %v3226 = vmul.f32 %v3184, 0.5
      %v3227 = vmul.f32 %v3187, 0.5
      %v3228 = vmul.f32 %v3192, 0.5
      %v3229 = vmul.f32 %v3195, 0.5
      %v3230 = vmul.f32 %v3072, 0.044715
      %v3231 = vmul.f32 %v3075, 0.044715
      %v3232 = vmul.f32 %v3080, 0.044715
      %v3233 = vmul.f32 %v3083, 0.044715
      %v3234 = vmul.f32 %v3088, 0.044715
      %v3235 = vmul.f32 %v3091, 0.044715
      %v3236 = vmul.f32 %v3096, 0.044715
      %v3237 = vmul.f32 %v3099, 0.044715
      %v3238 = vmul.f32 %v3104, 0.044715
      %v3239 = vmul.f32 %v3107, 0.044715
      %v3240 = vmul.f32 %v3112, 0.044715
      %v3241 = vmul.f32 %v3115, 0.044715
      %v3242 = vmul.f32 %v3120, 0.044715
      %v3243 = vmul.f32 %v3123, 0.044715
      %v3244 = vmul.f32 %v3128, 0.044715
      %v3245 = vmul.f32 %v3131, 0.044715
      %v3246 = vmul.f32 %v3136, 0.044715
      %v3247 = vmul.f32 %v3139, 0.044715
      %v3248 = vmul.f32 %v3144, 0.044715
      %v3249 = vmul.f32 %v3147, 0.044715
      %v3250 = vmul.f32 %v3152, 0.044715
      %v3251 = vmul.f32 %v3155, 0.044715
      %v3252 = vmul.f32 %v3160, 0.044715
      %v3253 = vmul.f32 %v3163, 0.044715
      %v3254 = vmul.f32 %v3168, 0.044715
      %v3255 = vmul.f32 %v3171, 0.044715
      %v3256 = vmul.f32 %v3176, 0.044715
      %v3257 = vmul.f32 %v3179, 0.044715
      %v3258 = vmul.f32 %v3184, 0.044715
      %v3259 = vmul.f32 %v3187, 0.044715
      %v3260 = vmul.f32 %v3192, 0.044715
      %v3261 = vmul.f32 %v3195, 0.044715
      %v3262 = vmul.f32 %v3230, %v3072
      %v3263 = vmul.f32 %v3231, %v3075
      %v3264 = vmul.f32 %v3232, %v3080
      %v3265 = vmul.f32 %v3233, %v3083
      %v3266 = vmul.f32 %v3234, %v3088
      %v3267 = vmul.f32 %v3235, %v3091
      %v3268 = vmul.f32 %v3236, %v3096
      %v3269 = vmul.f32 %v3237, %v3099
      %v3270 = vmul.f32 %v3238, %v3104
      %v3271 = vmul.f32 %v3239, %v3107
      %v3272 = vmul.f32 %v3240, %v3112
      %v3273 = vmul.f32 %v3241, %v3115
      %v3274 = vmul.f32 %v3242, %v3120
      %v3275 = vmul.f32 %v3243, %v3123
      %v3276 = vmul.f32 %v3244, %v3128
      %v3277 = vmul.f32 %v3245, %v3131
      %v3278 = vmul.f32 %v3246, %v3136
      %v3279 = vmul.f32 %v3247, %v3139
      %v3280 = vmul.f32 %v3248, %v3144
      %v3281 = vmul.f32 %v3249, %v3147
      %v3282 = vmul.f32 %v3250, %v3152
      %v3283 = vmul.f32 %v3251, %v3155
      %v3284 = vmul.f32 %v3252, %v3160
      %v3285 = vmul.f32 %v3253, %v3163
      %v3286 = vmul.f32 %v3254, %v3168
      %v3287 = vmul.f32 %v3255, %v3171
      %v3288 = vmul.f32 %v3256, %v3176
      %v3289 = vmul.f32 %v3257, %v3179
      %v3290 = vmul.f32 %v3258, %v3184
      %v3291 = vmul.f32 %v3259, %v3187
      %v3292 = vmul.f32 %v3260, %v3192
      %v3293 = vmul.f32 %v3261, %v3195
      %v3294 = vmul.f32 %v3262, %v3072
      %v3295 = vmul.f32 %v3263, %v3075
      %v3296 = vmul.f32 %v3264, %v3080
      %v3297 = vmul.f32 %v3265, %v3083
      %v3298 = vmul.f32 %v3266, %v3088
      %v3299 = vmul.f32 %v3267, %v3091
      %v3300 = vmul.f32 %v3268, %v3096
      %v3301 = vmul.f32 %v3269, %v3099
      %v3302 = vmul.f32 %v3270, %v3104
      %v3303 = vmul.f32 %v3271, %v3107
      %v3304 = vmul.f32 %v3272, %v3112
      %v3305 = vmul.f32 %v3273, %v3115
      %v3306 = vmul.f32 %v3274, %v3120
      %v3307 = vmul.f32 %v3275, %v3123
      %v3308 = vmul.f32 %v3276, %v3128
      %v3309 = vmul.f32 %v3277, %v3131
      %v3310 = vmul.f32 %v3278, %v3136
      %v3311 = vmul.f32 %v3279, %v3139
      %v3312 = vmul.f32 %v3280, %v3144
      %v3313 = vmul.f32 %v3281, %v3147
      %v3314 = vmul.f32 %v3282, %v3152
      %v3315 = vmul.f32 %v3283, %v3155
      %v3316 = vmul.f32 %v3284, %v3160
      %v3317 = vmul.f32 %v3285, %v3163
      %v3318 = vmul.f32 %v3286, %v3168
      %v3319 = vmul.f32 %v3287, %v3171
      %v3320 = vmul.f32 %v3288, %v3176
      %v3321 = vmul.f32 %v3289, %v3179
      %v3322 = vmul.f32 %v3290, %v3184
      %v3323 = vmul.f32 %v3291, %v3187
      %v3324 = vmul.f32 %v3292, %v3192
      %v3325 = vmul.f32 %v3293, %v3195
      %v3326 = vadd.f32 %v3072, %v3294
      %v3327 = vadd.f32 %v3075, %v3295
      %v3328 = vadd.f32 %v3080, %v3296
      %v3329 = vadd.f32 %v3083, %v3297
      %v3330 = vadd.f32 %v3088, %v3298
      %v3331 = vadd.f32 %v3091, %v3299
      %v3332 = vadd.f32 %v3096, %v3300
      %v3333 = vadd.f32 %v3099, %v3301
      %v3334 = vadd.f32 %v3104, %v3302
      %v3335 = vadd.f32 %v3107, %v3303
      %v3336 = vadd.f32 %v3112, %v3304
      %v3337 = vadd.f32 %v3115, %v3305
      %v3338 = vadd.f32 %v3120, %v3306
      %v3339 = vadd.f32 %v3123, %v3307
      %v3340 = vadd.f32 %v3128, %v3308
      %v3341 = vadd.f32 %v3131, %v3309
      %v3342 = vadd.f32 %v3136, %v3310
      %v3343 = vadd.f32 %v3139, %v3311
      %v3344 = vadd.f32 %v3144, %v3312
      %v3345 = vadd.f32 %v3147, %v3313
      %v3346 = vadd.f32 %v3152, %v3314
      %v3347 = vadd.f32 %v3155, %v3315
      %v3348 = vadd.f32 %v3160, %v3316
      %v3349 = vadd.f32 %v3163, %v3317
      %v3350 = vadd.f32 %v3168, %v3318
      %v3351 = vadd.f32 %v3171, %v3319
      %v3352 = vadd.f32 %v3176, %v3320
      %v3353 = vadd.f32 %v3179, %v3321
      %v3354 = vadd.f32 %v3184, %v3322
      %v3355 = vadd.f32 %v3187, %v3323
      %v3356 = vadd.f32 %v3192, %v3324
      %v3357 = vadd.f32 %v3195, %v3325
      %v3358 = vmul.f32 %v3326, 0.7978846
      %v3359 = vmul.f32 %v3327, 0.7978846
      %v3360 = vmul.f32 %v3328, 0.7978846
      %v3361 = vmul.f32 %v3329, 0.7978846
      %v3362 = vmul.f32 %v3330, 0.7978846
      %v3363 = vmul.f32 %v3331, 0.7978846
      %v3364 = vmul.f32 %v3332, 0.7978846
      %v3365 = vmul.f32 %v3333, 0.7978846
      %v3366 = vmul.f32 %v3334, 0.7978846
      %v3367 = vmul.f32 %v3335, 0.7978846
      %v3368 = vmul.f32 %v3336, 0.7978846
      %v3369 = vmul.f32 %v3337, 0.7978846
      %v3370 = vmul.f32 %v3338, 0.7978846
      %v3371 = vmul.f32 %v3339, 0.7978846
      %v3372 = vmul.f32 %v3340, 0.7978846
      %v3373 = vmul.f32 %v3341, 0.7978846
      %v3374 = vmul.f32 %v3342, 0.7978846
      %v3375 = vmul.f32 %v3343, 0.7978846
      %v3376 = vmul.f32 %v3344, 0.7978846
      %v3377 = vmul.f32 %v3345, 0.7978846
      %v3378 = vmul.f32 %v3346, 0.7978846
      %v3379 = vmul.f32 %v3347, 0.7978846
      %v3380 = vmul.f32 %v3348, 0.7978846
      %v3381 = vmul.f32 %v3349, 0.7978846
      %v3382 = vmul.f32 %v3350, 0.7978846
      %v3383 = vmul.f32 %v3351, 0.7978846
      %v3384 = vmul.f32 %v3352, 0.7978846
      %v3385 = vmul.f32 %v3353, 0.7978846
      %v3386 = vmul.f32 %v3354, 0.7978846
      %v3387 = vmul.f32 %v3355, 0.7978846
      %v3388 = vmul.f32 %v3356, 0.7978846
      %v3389 = vmul.f32 %v3357, 0.7978846
      %v3390 = vtanh.pop %v3358
      %v3391 = vtanh.pop %v3359
      %v3392 = vtanh.pop %v3360
      %v3393 = vtanh.pop %v3361
      %v3394 = vtanh.pop %v3362
      %v3395 = vtanh.pop %v3363
      %v3396 = vtanh.pop %v3364
      %v3397 = vtanh.pop %v3365
      %v3398 = vtanh.pop %v3366
      %v3399 = vtanh.pop %v3367
      %v3400 = vtanh.pop %v3368
      %v3401 = vtanh.pop %v3369
      %v3402 = vtanh.pop %v3370
      %v3403 = vtanh.pop %v3371
      %v3404 = vtanh.pop %v3372
      %v3405 = vtanh.pop %v3373
      %v3406 = vtanh.pop %v3374
      %v3407 = vtanh.pop %v3375
      %v3408 = vtanh.pop %v3376
      %v3409 = vtanh.pop %v3377
      %v3410 = vtanh.pop %v3378
      %v3411 = vtanh.pop %v3379
      %v3412 = vtanh.pop %v3380
      %v3413 = vtanh.pop %v3381
      %v3414 = vtanh.pop %v3382
      %v3415 = vtanh.pop %v3383
      %v3416 = vtanh.pop %v3384
      %v3417 = vtanh.pop %v3385
      %v3418 = vtanh.pop %v3386
      %v3419 = vtanh.pop %v3387
      %v3420 = vtanh.pop %v3388
      %v3421 = vtanh.pop %v3389
      %v3422 = vadd.f32 %v3390, 1.0
      %v3423 = vadd.f32 %v3391, 1.0
      %v3424 = vadd.f32 %v3392, 1.0
      %v3425 = vadd.f32 %v3393, 1.0
      %v3426 = vadd.f32 %v3394, 1.0
      %v3427 = vadd.f32 %v3395, 1.0
      %v3428 = vadd.f32 %v3396, 1.0
      %v3429 = vadd.f32 %v3397, 1.0
      %v3430 = vadd.f32 %v3398, 1.0
      %v3431 = vadd.f32 %v3399, 1.0
      %v3432 = vadd.f32 %v3400, 1.0
      %v3433 = vadd.f32 %v3401, 1.0
      %v3434 = vadd.f32 %v3402, 1.0
      %v3435 = vadd.f32 %v3403, 1.0
      %v3436 = vadd.f32 %v3404, 1.0
      %v3437 = vadd.f32 %v3405, 1.0
      %v3438 = vadd.f32 %v3406, 1.0
      %v3439 = vadd.f32 %v3407, 1.0
      %v3440 = vadd.f32 %v3408, 1.0
      %v3441 = vadd.f32 %v3409, 1.0
      %v3442 = vadd.f32 %v3410, 1.0
      %v3443 = vadd.f32 %v3411, 1.0
      %v3444 = vadd.f32 %v3412, 1.0
      %v3445 = vadd.f32 %v3413, 1.0
      %v3446 = vadd.f32 %v3414, 1.0
      %v3447 = vadd.f32 %v3415, 1.0
      %v3448 = vadd.f32 %v3416, 1.0
      %v3449 = vadd.f32 %v3417, 1.0
      %v3450 = vadd.f32 %v3418, 1.0
      %v3451 = vadd.f32 %v3419, 1.0
      %v3452 = vadd.f32 %v3420, 1.0
      %v3453 = vadd.f32 %v3421, 1.0
      %v3454 = vmul.f32 %v3198, %v3422
      %v3455 = vmul.f32 %v3199, %v3423
      %v3456 = vmul.f32 %v3200, %v3424
      %v3457 = vmul.f32 %v3201, %v3425
      %v3458 = vmul.f32 %v3202, %v3426
      %v3459 = vmul.f32 %v3203, %v3427
      %v3460 = vmul.f32 %v3204, %v3428
      %v3461 = vmul.f32 %v3205, %v3429
      %v3462 = vmul.f32 %v3206, %v3430
      %v3463 = vmul.f32 %v3207, %v3431
      %v3464 = vmul.f32 %v3208, %v3432
      %v3465 = vmul.f32 %v3209, %v3433
      %v3466 = vmul.f32 %v3210, %v3434
      %v3467 = vmul.f32 %v3211, %v3435
      %v3468 = vmul.f32 %v3212, %v3436
      %v3469 = vmul.f32 %v3213, %v3437
      %v3470 = vmul.f32 %v3214, %v3438
      %v3471 = vmul.f32 %v3215, %v3439
      %v3472 = vmul.f32 %v3216, %v3440
      %v3473 = vmul.f32 %v3217, %v3441
      %v3474 = vmul.f32 %v3218, %v3442
      %v3475 = vmul.f32 %v3219, %v3443
      %v3476 = vmul.f32 %v3220, %v3444
      %v3477 = vmul.f32 %v3221, %v3445
      %v3478 = vmul.f32 %v3222, %v3446
      %v3479 = vmul.f32 %v3223, %v3447
      %v3480 = vmul.f32 %v3224, %v3448
      %v3481 = vmul.f32 %v3225, %v3449
      %v3482 = vmul.f32 %v3226, %v3450
      %v3483 = vmul.f32 %v3227, %v3451
      %v3484 = vmul.f32 %v3228, %v3452
      %v3485 = vmul.f32 %v3229, %v3453
      %v3486 = vpack.c.bf16 %v3455, %v3454
      %v3487 = vpack.c.bf16 %v3457, %v3456
      %v3488 = vpack.c.bf16 %v3459, %v3458
      %v3489 = vpack.c.bf16 %v3461, %v3460
      %v3490 = vpack.c.bf16 %v3463, %v3462
      %v3491 = vpack.c.bf16 %v3465, %v3464
      %v3492 = vpack.c.bf16 %v3467, %v3466
      %v3493 = vpack.c.bf16 %v3469, %v3468
      %v3494 = vpack.c.bf16 %v3471, %v3470
      %v3495 = vpack.c.bf16 %v3473, %v3472
      %v3496 = vpack.c.bf16 %v3475, %v3474
      %v3497 = vpack.c.bf16 %v3477, %v3476
      %v3498 = vpack.c.bf16 %v3479, %v3478
      %v3499 = vpack.c.bf16 %v3481, %v3480
      %v3500 = vpack.c.bf16 %v3483, %v3482
      %v3501 = vpack.c.bf16 %v3485, %v3484
      %v3502 = vld [vmem:[%s13] sm:$0xf]
      %v3503 = vld [vmem:[%s13 + $0x4] sm:$0xf]
      %v3504 = vld [vmem:[%s14] sm:$0x1]
      %v3506 = vlaneseq
      %v3507 = vshrl.u32 %v3506, 7
      %v3508 = vsub.s32 0, %v3507
      %v3509 = vrot.slane %v3504, %v3508
      %v3513 = vunpack.c.l.b16 %v3502
      %v3514 = vunpack.c.l.b16 %v3503
      %v3515 = vpack.c.b16 %v3514, %v3513
      %v3518 = vsel %vm1872, %v3486, 0
      %v3521 = vsel %vm1872, %v3487, 0
      %v3524 = vsel %vm1872, %v3488, 0
      %v3527 = vsel %vm1872, %v3489, 0
      %v3530 = vsel %vm1872, %v3490, 0
      %v3533 = vsel %vm1872, %v3491, 0
      %v3536 = vsel %vm1872, %v3492, 0
      %v3539 = vsel %vm1872, %v3493, 0
      %v3542 = vsel %vm1872, %v3494, 0
      %v3545 = vsel %vm1872, %v3495, 0
      %v3548 = vsel %vm1872, %v3496, 0
      %v3551 = vsel %vm1872, %v3497, 0
      %v3554 = vsel %vm1872, %v3498, 0
      %v3557 = vsel %vm1872, %v3499, 0
      %v3560 = vsel %vm1872, %v3500, 0
      %v3563 = vsel %vm1872, %v3501, 0
      %3565 = vmatprep.subr.bf16.mxu0 0
      %3566 = vmatpush1.bf16.msra.mxu0 0
      %3567 = vmatprep.subr.bf16.mxu0 0
      %3568 = vmatpush1.bf16.msra.mxu0 0
      %3569 = vmatprep.subr.bf16.mxu0 0
      %3570 = vmatpush1.bf16.msra.mxu0 0
      %3571 = vmatprep.subr.bf16.mxu0 0
      %3572 = vmatpush1.bf16.msra.mxu0 0
      %3573 = vmatprep.subr.bf16.mxu0 0
      %3574 = vmatpush1.bf16.msra.mxu0 0
      %3575 = vmatprep.subr.bf16.mxu0 0
      %3576 = vmatpush1.bf16.msra.mxu0 0
      %3577 = vmatprep.subr.bf16.mxu0 0
      %3578 = vmatpush1.bf16.msra.mxu0 0
      %3579 = vmatprep.subr.bf16.mxu0 0
      %3580 = vmatpush1.bf16.msra.mxu0 %v3515
      %3581 = vmatprep.subr.bf16.mxu0 0
      %3582 = vmatpush2.bf16.msra.mxu0 0
      %3583 = vmatprep.subr.bf16.mxu0 0
      %3584 = vmatpush2.bf16.msra.mxu0 0
      %3585 = vmatprep.subr.bf16.mxu0 0
      %3586 = vmatpush2.bf16.msra.mxu0 0
      %3587 = vmatprep.subr.bf16.mxu0 0
      %3588 = vmatpush2.bf16.msra.mxu0 0
      %3589 = vmatprep.subr.bf16.mxu0 0
      %3590 = vmatpush2.bf16.msra.mxu0 0
      %3591 = vmatprep.subr.bf16.mxu0 0
      %3592 = vmatpush2.bf16.msra.mxu0 0
      %3593 = vmatprep.subr.bf16.mxu0 0
      %3594 = vmatpush2.bf16.msra.mxu0 0
      %3595 = vmatprep.subr.bf16.mxu0 0
      %3596 = vmatpush2.bf16.msra.mxu0 0
      %3597 = vmatprep.mubr.bf16.mxu0 0
      %3598 = vmatmul.mubr.bf16.gmra.mxu0 %v3518
      %v3599 = vpop.f32.mrf.mxu0
      %v3600 = vadd.f32 %v3509, %v3599
      %v3601 = vpop.f32.mrf.mxu0
      %v3602 = vpop.f32.mrf.mxu0
      %v3603 = vadd.f32 %v3509, %v3602
      %v3604 = vpop.f32.mrf.mxu0
      %3605 = vmatprep.mubr.bf16.mxu0 0
      %3606 = vmatmul.mubr.bf16.gmra.mxu0 %v3521
      %v3607 = vpop.f32.mrf.mxu0
      %v3608 = vadd.f32 %v3509, %v3607
      %v3609 = vpop.f32.mrf.mxu0
      %v3610 = vpop.f32.mrf.mxu0
      %v3611 = vadd.f32 %v3509, %v3610
      %v3612 = vpop.f32.mrf.mxu0
      %3613 = vmatprep.mubr.bf16.mxu0 0
      %3614 = vmatmul.mubr.bf16.gmra.mxu0 %v3524
      %v3615 = vpop.f32.mrf.mxu0
      %v3616 = vadd.f32 %v3509, %v3615
      %v3617 = vpop.f32.mrf.mxu0
      %v3618 = vpop.f32.mrf.mxu0
      %v3619 = vadd.f32 %v3509, %v3618
      %v3620 = vpop.f32.mrf.mxu0
      %3621 = vmatprep.mubr.bf16.mxu0 0
      %3622 = vmatmul.mubr.bf16.gmra.mxu0 %v3527
      %v3623 = vpop.f32.mrf.mxu0
      %v3624 = vadd.f32 %v3509, %v3623
      %v3625 = vpop.f32.mrf.mxu0
      %v3626 = vpop.f32.mrf.mxu0
      %v3627 = vadd.f32 %v3509, %v3626
      %v3628 = vpop.f32.mrf.mxu0
      %3629 = vmatprep.mubr.bf16.mxu0 0
      %3630 = vmatmul.mubr.bf16.gmra.mxu0 %v3530
      %v3631 = vpop.f32.mrf.mxu0
      %v3632 = vadd.f32 %v3509, %v3631
      %v3633 = vpop.f32.mrf.mxu0
      %v3634 = vpop.f32.mrf.mxu0
      %v3635 = vadd.f32 %v3509, %v3634
      %v3636 = vpop.f32.mrf.mxu0
      %3637 = vmatprep.mubr.bf16.mxu0 0
      %3638 = vmatmul.mubr.bf16.gmra.mxu0 %v3533
      %v3639 = vpop.f32.mrf.mxu0
      %v3640 = vadd.f32 %v3509, %v3639
      %v3641 = vpop.f32.mrf.mxu0
      %v3642 = vpop.f32.mrf.mxu0
      %v3643 = vadd.f32 %v3509, %v3642
      %v3644 = vpop.f32.mrf.mxu0
      %3645 = vmatprep.mubr.bf16.mxu0 0
      %3646 = vmatmul.mubr.bf16.gmra.mxu0 %v3536
      %v3647 = vpop.f32.mrf.mxu0
      %v3648 = vadd.f32 %v3509, %v3647
      %v3649 = vpop.f32.mrf.mxu0
      %v3650 = vpop.f32.mrf.mxu0
      %v3651 = vadd.f32 %v3509, %v3650
      %v3652 = vpop.f32.mrf.mxu0
      %3653 = vmatprep.mubr.bf16.mxu0 0
      %3654 = vmatmul.mubr.bf16.gmra.mxu0 %v3539
      %v3655 = vpop.f32.mrf.mxu0
      %v3656 = vadd.f32 %v3509, %v3655
      %v3657 = vpop.f32.mrf.mxu0
      %v3658 = vpop.f32.mrf.mxu0
      %v3659 = vadd.f32 %v3509, %v3658
      %v3660 = vpop.f32.mrf.mxu0
      %3661 = vmatprep.mubr.bf16.mxu0 0
      %3662 = vmatmul.mubr.bf16.gmra.mxu0 %v3542
      %v3663 = vpop.f32.mrf.mxu0
      %v3664 = vadd.f32 %v3509, %v3663
      %v3665 = vpop.f32.mrf.mxu0
      %v3666 = vpop.f32.mrf.mxu0
      %v3667 = vadd.f32 %v3509, %v3666
      %v3668 = vpop.f32.mrf.mxu0
      %3669 = vmatprep.mubr.bf16.mxu0 0
      %3670 = vmatmul.mubr.bf16.gmra.mxu0 %v3545
      %v3671 = vpop.f32.mrf.mxu0
      %v3672 = vadd.f32 %v3509, %v3671
      %v3673 = vpop.f32.mrf.mxu0
      %v3674 = vpop.f32.mrf.mxu0
      %v3675 = vadd.f32 %v3509, %v3674
      %v3676 = vpop.f32.mrf.mxu0
      %3677 = vmatprep.mubr.bf16.mxu0 0
      %3678 = vmatmul.mubr.bf16.gmra.mxu0 %v3548
      %v3679 = vpop.f32.mrf.mxu0
      %v3680 = vadd.f32 %v3509, %v3679
      %v3681 = vpop.f32.mrf.mxu0
      %v3682 = vpop.f32.mrf.mxu0
      %v3683 = vadd.f32 %v3509, %v3682
      %v3684 = vpop.f32.mrf.mxu0
      %3685 = vmatprep.mubr.bf16.mxu0 0
      %3686 = vmatmul.mubr.bf16.gmra.mxu0 %v3551
      %v3687 = vpop.f32.mrf.mxu0
      %v3688 = vadd.f32 %v3509, %v3687
      %v3689 = vpop.f32.mrf.mxu0
      %v3690 = vpop.f32.mrf.mxu0
      %v3691 = vadd.f32 %v3509, %v3690
      %v3692 = vpop.f32.mrf.mxu0
      %3693 = vmatprep.mubr.bf16.mxu0 0
      %3694 = vmatmul.mubr.bf16.gmra.mxu0 %v3554
      %v3695 = vpop.f32.mrf.mxu0
      %v3696 = vadd.f32 %v3509, %v3695
      %v3697 = vpop.f32.mrf.mxu0
      %v3698 = vpop.f32.mrf.mxu0
      %v3699 = vadd.f32 %v3509, %v3698
      %v3700 = vpop.f32.mrf.mxu0
      %3701 = vmatprep.mubr.bf16.mxu0 0
      %3702 = vmatmul.mubr.bf16.gmra.mxu0 %v3557
      %v3703 = vpop.f32.mrf.mxu0
      %v3704 = vadd.f32 %v3509, %v3703
      %v3705 = vpop.f32.mrf.mxu0
      %v3706 = vpop.f32.mrf.mxu0
      %v3707 = vadd.f32 %v3509, %v3706
      %v3708 = vpop.f32.mrf.mxu0
      %3709 = vmatprep.mubr.bf16.mxu0 0
      %3710 = vmatmul.mubr.bf16.gmra.mxu0 %v3560
      %v3711 = vpop.f32.mrf.mxu0
      %v3712 = vadd.f32 %v3509, %v3711
      %v3713 = vpop.f32.mrf.mxu0
      %v3714 = vpop.f32.mrf.mxu0
      %v3715 = vadd.f32 %v3509, %v3714
      %v3716 = vpop.f32.mrf.mxu0
      %3717 = vmatprep.mubr.bf16.mxu0 0
      %3718 = vmatmul.mubr.bf16.gmra.mxu0 %v3563
      %v3719 = vpop.f32.mrf.mxu0
      %v3720 = vadd.f32 %v3509, %v3719
      %v3721 = vpop.f32.mrf.mxu0
      %v3722 = vpop.f32.mrf.mxu0
      %v3723 = vadd.f32 %v3509, %v3722
      %v3724 = vpop.f32.mrf.mxu0
      %3725 = vdwg.mxu0
      %v3726 = vadd.f32 %v2435, %v3600
      %v3727 = vadd.f32 %v2436, %v3603
      %v3728 = vadd.f32 %v2437, %v3608
      %v3729 = vadd.f32 %v2438, %v3611
      %v3730 = vadd.f32 %v2439, %v3616
      %v3731 = vadd.f32 %v2440, %v3619
      %v3732 = vadd.f32 %v2441, %v3624
      %v3733 = vadd.f32 %v2442, %v3627
      %v3734 = vadd.f32 %v2443, %v3632
      %v3735 = vadd.f32 %v2444, %v3635
      %v3736 = vadd.f32 %v2445, %v3640
      %v3737 = vadd.f32 %v2446, %v3643
      %v3738 = vadd.f32 %v2447, %v3648
      %v3739 = vadd.f32 %v2448, %v3651
      %v3740 = vadd.f32 %v2449, %v3656
      %v3741 = vadd.f32 %v2450, %v3659
      %v3742 = vadd.f32 %v2451, %v3664
      %v3743 = vadd.f32 %v2452, %v3667
      %v3744 = vadd.f32 %v2453, %v3672
      %v3745 = vadd.f32 %v2454, %v3675
      %v3746 = vadd.f32 %v2455, %v3680
      %v3747 = vadd.f32 %v2456, %v3683
      %v3748 = vadd.f32 %v2457, %v3688
      %v3749 = vadd.f32 %v2458, %v3691
      %v3750 = vadd.f32 %v2459, %v3696
      %v3751 = vadd.f32 %v2460, %v3699
      %v3752 = vadd.f32 %v2461, %v3704
      %v3753 = vadd.f32 %v2462, %v3707
      %v3754 = vadd.f32 %v2463, %v3712
      %v3755 = vadd.f32 %v2464, %v3715
      %v3756 = vadd.f32 %v2465, %v3720
      %v3757 = vadd.f32 %v2466, %v3723
      %3758 = vst.msk [vmem:[%s494] sm:$0xff] %vm530, %v3726
      %3759 = vst.msk [vmem:[%s494 + $0x8] sm:$0xff] %vm530, %v3727
      %3760 = vst.msk [vmem:[%s494 + $0x10] sm:$0xff] %vm530, %v3728
      %3761 = vst.msk [vmem:[%s494 + $0x18] sm:$0xff] %vm530, %v3729
      %3762 = vst.msk [vmem:[%s494 + $0x20] sm:$0xff] %vm530, %v3730
      %3763 = vst.msk [vmem:[%s494 + $0x28] sm:$0xff] %vm530, %v3731
      %3764 = vst.msk [vmem:[%s494 + $0x30] sm:$0xff] %vm530, %v3732
      %3765 = vst.msk [vmem:[%s494 + $0x38] sm:$0xff] %vm530, %v3733
      %3766 = vst.msk [vmem:[%s494 + $0x40] sm:$0xff] %vm530, %v3734
      %3767 = vst.msk [vmem:[%s494 + $0x48] sm:$0xff] %vm530, %v3735
      %3768 = vst.msk [vmem:[%s494 + $0x50] sm:$0xff] %vm530, %v3736
      %3769 = vst.msk [vmem:[%s494 + $0x58] sm:$0xff] %vm530, %v3737
      %3770 = vst.msk [vmem:[%s494 + $0x60] sm:$0xff] %vm530, %v3738
      %3771 = vst.msk [vmem:[%s494 + $0x68] sm:$0xff] %vm530, %v3739
      %3772 = vst.msk [vmem:[%s494 + $0x70] sm:$0xff] %vm530, %v3740
      %3773 = vst.msk [vmem:[%s494 + $0x78] sm:$0xff] %vm530, %v3741
      %3774 = vst.msk [vmem:[%s494 + $0x80] sm:$0xff] %vm530, %v3742
      %3775 = vst.msk [vmem:[%s494 + $0x88] sm:$0xff] %vm530, %v3743
      %3776 = vst.msk [vmem:[%s494 + $0x90] sm:$0xff] %vm530, %v3744
      %3777 = vst.msk [vmem:[%s494 + $0x98] sm:$0xff] %vm530, %v3745
      %3778 = vst.msk [vmem:[%s494 + $0xa0] sm:$0xff] %vm530, %v3746
      %3779 = vst.msk [vmem:[%s494 + $0xa8] sm:$0xff] %vm530, %v3747
      %3780 = vst.msk [vmem:[%s494 + $0xb0] sm:$0xff] %vm530, %v3748
      %3781 = vst.msk [vmem:[%s494 + $0xb8] sm:$0xff] %vm530, %v3749
      %3782 = vst.msk [vmem:[%s494 + $0xc0] sm:$0xff] %vm530, %v3750
      %3783 = vst.msk [vmem:[%s494 + $0xc8] sm:$0xff] %vm530, %v3751
      %3784 = vst.msk [vmem:[%s494 + $0xd0] sm:$0xff] %vm530, %v3752
      %3785 = vst.msk [vmem:[%s494 + $0xd8] sm:$0xff] %vm530, %v3753
      %3786 = vst.msk [vmem:[%s494 + $0xe0] sm:$0xff] %vm530, %v3754
      %3787 = vst.msk [vmem:[%s494 + $0xe8] sm:$0xff] %vm530, %v3755
      %3788 = vst.msk [vmem:[%s494 + $0xf0] sm:$0xff] %vm530, %v3756
      %3789 = vst.msk [vmem:[%s494 + $0xf8] sm:$0xff] %vm530, %v3757
      %p3790 = scmp.lt.s32.totalorder %s26, 1
      %s3791 = scalar_select %p3790, %s26, 1
      %s3792 = smul.addr %s3791, 32
      %s3793 = smul.addr %s3792, 8
      %s3794 = scalar_lea.vmem %s15, %s3793
      // Predicated region
      $region81: #{tpu_custom_call.1} parent=79 // pred_check
        %p3795 = pneg %p364
      $region82: #{tpu_custom_call.1} parent=79 // pred_check_branch
        %3797 = sbr.rel (%p3795) target = $region84
      $region83: #{tpu_custom_call.1} parent=79 // pred_region
        _
      $region84: #{tpu_custom_call.1} parent=79 // pred_fallthru
        _
    $region80: #{tpu_custom_call.1} parent=5 // pred_fallthru
      _
    %p3798 = scmp.le.s32.totalorder 2, %s21
    // Predicated region
    $region85: #{tpu_custom_call.1} parent=5 // pred_check
      %p3799 = pneg %p3798
    $region86: #{tpu_custom_call.1} parent=5 // pred_check_branch
      %3801 = sbr.rel (%p3799) target = $region88
    $region87: #{tpu_custom_call.1} parent=5 // pred_region
      %s3802 = ssub.s32 %s21, 2
      // Predicated region
      $region89: #{tpu_custom_call.1} parent=87 // pred_check
        %p3803 = pneg %p370
      $region90: #{tpu_custom_call.1} parent=87 // pred_check_branch
        %3805 = sbr.rel (%p3803) target = $region92
      $region91: #{tpu_custom_call.1} parent=87 // pred_region
        %p3806 = scmp.lt.s32.totalorder %s27, 1
        %s3807 = scalar_select %p3806, %s27, 1
        %s3808 = smul.addr %s3807, 32
        %s3809 = smul.addr %s3808, 8
        %s3810 = scalar_lea.vmem %s15, %s3809
      $region92: #{tpu_custom_call.1} parent=87 // pred_fallthru
        _
    $region88: #{tpu_custom_call.1} parent=5 // pred_fallthru
      _
  $region6: #{tpu_custom_call.1} parent=0 // loop_footer
    %s25 = sadd.s32 1, %s21
  $region7: #{tpu_custom_call.1} parent=0 // loop_footer_branch
    %20 = sbr.rel target = $region3
  $region8: #{tpu_custom_call.1} parent=0 // loop_exit
    _

</llo_original>
